<compile_context>
chip_gen: v7x
topology: tpu7x:2x2x1
jax: 0.10.0
libtpu: 0.0.40
codegen_flags: <defaults>
</compile_context>

<pallas_src>
import jax
import jax.numpy as jnp
from jax.experimental import pallas as pl
from jax.experimental.pallas import tpu as pltpu

EPS = 1e-5  # torch.nn.InstanceNorm1d default


def _instance_norm(y):
    # y: [N, C]; InstanceNorm1d (affine=False, biased var) over the N axis per channel, f32.
    mean = jnp.mean(y, axis=0, keepdims=True)
    var = jnp.mean((y - mean) ** 2, axis=0, keepdims=True)
    return (y - mean) * jax.lax.rsqrt(var + EPS)


_GNN_W_NAMES = ["wq", "bq", "wk", "bk", "wv", "bv", "wm", "bm",
                "w1x", "w1m", "b1", "w2", "b2"]


# ----------------------------------------------------------------------------
# Fully fused SegNet kernel.
#   grid = (B, L); layer axis "arbitrary".  Scratch x_ref [N, D] f32 holds the running
#   descriptor across all L layers of a batch (re-initialized at l == 0 from
#   seg_descriptors + kenc(norm_keypoints)).  Each grid step = one AttentionalPropagation
#   layer (MHA q/k/v proj -> per-head attention -> merge accumulate, MLP residual).
#   At l == L-1 the seg-head MLP is applied and only the logits are written to HBM.
# ----------------------------------------------------------------------------
def _make_segnet_kernel(n_kenc: int, num_heads: int, head_dim: int):
    H, dh = num_heads, head_dim
    scale = 1.0 / (dh ** 0.5)
    bf16 = jnp.bfloat16

    def kernel(*refs):
        kpt_ref, desc_ref = refs[0], refs[1]
        i = 2
        kenc_refs = refs[i:i + 2 * n_kenc]
        i += 2 * n_kenc
        (wq_ref, bq_ref, wk_ref, bk_ref, wv_ref, bv_ref,
         wm_ref, bm_ref, w1x_ref, w1m_ref, b1_ref, w2_ref, b2_ref) = refs[i:i + 13]
        i += 13
        sw1_ref, sb1_ref, sw2_ref, sb2_ref = refs[i:i + 4]
        i += 4
        cls_ref = refs[i]          # output [1, N, n_class]
        x_ref = refs[i + 1]        # VMEM scratch [N, D] f32, resident across layers

        l = pl.program_id(1)

        # -- l == 0: keypoint encoder MLP + residual add (desc = desc + kenc(kpts)) --
        @pl.when(l == 0)
        def _():
            h = kpt_ref[0]                               # [N, Cin0] f32
            for j in range(n_kenc):
                w = kenc_refs[2 * j][...]                # [Cin, Cout] (pre-transposed)
                b = kenc_refs[2 * j + 1][...]            # [1, Cout]
                h = jnp.dot(h, w, preferred_element_type=jnp.float32) + b
                if j < n_kenc - 1:                       # last layer: no norm / act
                    h = jnp.maximum(_instance_norm(h), 0.0)
            x_ref[...] = desc_ref[0] + h

        # -- one AttentionalPropagation layer --
        x = x_ref[...]                                   # [N, D] f32 (VMEM resident)
        x_bf = x.astype(bf16)

        # projections (weights pre-transposed [Cin, Cout], head-major output channels)
        q = jnp.dot(x_bf, wq_ref[0], preferred_element_type=jnp.float32) + bq_ref[0]
        k = jnp.dot(x_bf, wk_ref[0], preferred_element_type=jnp.float32) + bk_ref[0]
        v = jnp.dot(x_bf, wv_ref[0], preferred_element_type=jnp.float32) + bv_ref[0]
        q = q * scale                                    # fold 1/sqrt(dh) into q

        # per-head attention; msg accumulated through per-head Wm slices (no concat)
        msg = jnp.zeros_like(x)
        for h_idx in range(H):                           # static loop, H small
            sl = slice(h_idx * dh, (h_idx + 1) * dh)
            qh = q[:, sl].astype(bf16)
            kh = k[:, sl].astype(bf16)
            vh = v[:, sl].astype(bf16)
            s = jax.lax.dot_general(qh, kh, (((1,), (1,)), ((), ())),
                                    preferred_element_type=jnp.float32)   # [N,N] = q @ k^T
            s = s - jnp.max(s, axis=-1, keepdims=True)
            p = jnp.exp(s)
            p = p * pl.reciprocal(jnp.sum(p, axis=-1, keepdims=True), approx=True)
            oh = jnp.dot(p.astype(bf16), vh, preferred_element_type=jnp.float32)  # [N,dh]
            msg = msg + jnp.dot(oh.astype(bf16), wm_ref[0, h_idx],
                                preferred_element_type=jnp.float32)       # += oh @ Wm_h
        msg = msg + bm_ref[0]

        # MLP([2D,2D,D]) on cat([x, msg]) via split matmul, InstanceNorm + ReLU, + residual
        h1 = (jnp.dot(x_bf, w1x_ref[0], preferred_element_type=jnp.float32)
              + jnp.dot(msg.astype(bf16), w1m_ref[0], preferred_element_type=jnp.float32)
              + b1_ref[0])
        h1 = jnp.maximum(_instance_norm(h1), 0.0)
        delta = jnp.dot(h1.astype(bf16), w2_ref[0],
                        preferred_element_type=jnp.float32) + b2_ref[0]
        x_new = x + delta                                # desc = desc + layer(desc, desc)
        x_ref[...] = x_new

        # -- l == last: seg head MLP([D, output_dim, n_class]); only logits hit HBM --
        @pl.when(l == pl.num_programs(1) - 1)
        def _():
            xb = x_new.astype(bf16)
            s1 = jnp.dot(xb, sw1_ref[...], preferred_element_type=jnp.float32) + sb1_ref[...]
            s1 = jnp.maximum(_instance_norm(s1), 0.0)
            cls_ref[0] = (jnp.dot(s1.astype(bf16), sw2_ref[...],
                                  preferred_element_type=jnp.float32) + sb2_ref[...])

    return kernel


def segnet_forward(params, seg_descriptors, norm_keypoints, *, num_heads):
    """Channel-last SegNet forward: returns {'prediction': [B, N, n_class] f32}."""
    B, N, D = seg_descriptors.shape
    c_in = norm_keypoints.shape[-1]
    kenc_params = params["kenc"]
    gnn = params["gnn"]
    sw1, sb1, sw2, sb2 = params["seg"]
    n_class = sw2.shape[1]
    L = gnn["wq"].shape[0]

    # keypoint-encoder weights: constant index_map -> DMA'd once, VMEM-resident
    flat_kenc, kenc_specs = [], []
    for w, b in kenc_params:
        flat_kenc += [w, b]
        kenc_specs += [pl.BlockSpec(w.shape, lambda bi, li: (0, 0)),
                       pl.BlockSpec(b.shape, lambda bi, li: (0, 0))]

    # GNN weights: layer-stacked, streamed along the "arbitrary" layer axis
    gnn_ws = [gnn[n] for n in _GNN_W_NAMES]

    def layer_spec(arr):
        zeros = (0,) * (arr.ndim - 1)
        return pl.BlockSpec((1,) + arr.shape[1:], lambda bi, li, z=zeros: (li,) + z)

    # seg-head weights: constant index_map -> VMEM-resident
    seg_ws = [sw1, sb1, sw2, sb2]
    seg_specs = [pl.BlockSpec(w.shape, lambda bi, li: (0, 0)) for w in seg_ws]

    cls_out = pl.pallas_call(
        _make_segnet_kernel(len(kenc_params), num_heads, D // num_heads),
        out_shape=jax.ShapeDtypeStruct((B, N, n_class), jnp.float32),
        grid=(B, L),
        in_specs=[pl.BlockSpec((1, N, c_in), lambda bi, li: (bi, 0, 0)),
                  pl.BlockSpec((1, N, D), lambda bi, li: (bi, 0, 0))]
                 + kenc_specs
                 + [layer_spec(w) for w in gnn_ws]
                 + seg_specs,
        out_specs=pl.BlockSpec((1, N, n_class), lambda bi, li: (bi, 0, 0)),
        scratch_shapes=[pltpu.VMEM((N, D), jnp.float32)],
        compiler_params=pltpu.CompilerParams(
            dimension_semantics=("parallel", "arbitrary")),
    )(norm_keypoints, seg_descriptors, *flat_kenc, *gnn_ws, *seg_ws)

    # PyTorch returns cls_output.transpose(-1,-2) -> [B, N, n_class]; channel-last already is.
    return {"prediction": cls_out}
    # TODO(synk): with_sc branch (extra MLP -> 'sc' output) omitted; disabled in default config.


# ----------------------------------------------------------------------------
# Parameter construction (deterministic, synthetic). Weights are generated in PyTorch
# [Cout, Cin] layout, permuted to head-major where needed, then transposed to [Cin, Cout]
# (and cast to bf16 for the GNN / seg head) at build time — no in-kernel transposes.
# ----------------------------------------------------------------------------
def _rand_conv(key, c_out, c_in, zero_bias=False, scale=0.1):
    kw, kb = jax.random.split(key)
    w = scale * jax.random.normal(kw, (c_out, c_in), jnp.float32)
    b = (jnp.zeros((c_out,), jnp.float32) if zero_bias
         else scale * jax.random.normal(kb, (c_out,), jnp.float32))
    return w, b


def make_segnet_params(key, *, descriptor_dim, output_dim, n_class,
                       keypoint_encoder, n_layers, num_heads, with_score=False):
    D, H = descriptor_dim, num_heads
    dh = D // H
    # torch multi-head split: channel c -> (d=c//H, h=c%H); head-major order is c'=h*dh+d
    perm = jnp.arange(D).reshape(dh, H).T.reshape(-1)
    k_kenc, k_gnn, k_seg = jax.random.split(key, 3)

    # keypoint encoder MLP (f32): channels [2|3, *keypoint_encoder, D]
    ch = [3 if with_score else 2] + list(keypoint_encoder) + [D]
    kk = jax.random.split(k_kenc, len(ch) - 1)
    kenc = []
    for i in range(len(ch) - 1):
        last = i == len(ch) - 2
        w, b = _rand_conv(kk[i], ch[i + 1], ch[i], zero_bias=last)  # encoder[-1].bias = 0
        kenc.append((w.T, b[None, :]))                               # [Cin, Cout], [1, Cout]

    # GNN layers: layer-stacked, bf16 matmul weights, f32 biases
    acc = {n: [] for n in _GNN_W_NAMES}
    for lk in jax.random.split(k_gnn, n_layers):
        ks = jax.random.split(lk, 6)
        for name, kp in zip(("q", "k", "v"), ks[:3]):
            w, b = _rand_conv(kp, D, D)
            acc["w" + name].append(w[perm].T.astype(jnp.bfloat16))   # head-major out channels
            acc["b" + name].append(b[perm][None, :])
        wm, bm = _rand_conv(ks[3], D, D)
        wm_t = wm[:, perm].T                                         # merge eats head-major in
        acc["wm"].append(wm_t.reshape(H, dh, D).astype(jnp.bfloat16))
        acc["bm"].append(bm[None, :])
        w1, b1 = _rand_conv(ks[4], 2 * D, 2 * D)
        w1_t = w1.T                                                  # [2D, 2D]
        acc["w1x"].append(w1_t[:D].astype(jnp.bfloat16))             # rows for x  (cat first)
        acc["w1m"].append(w1_t[D:].astype(jnp.bfloat16))             # rows for msg
        acc["b1"].append(b1[None, :])
        w2, b2 = _rand_conv(ks[5], D, 2 * D, zero_bias=True)         # mlp[-1].bias = 0
        acc["w2"].append(w2.T.astype(jnp.bfloat16))
        acc["b2"].append(b2[None, :])
    gnn = {k: jnp.stack(v) for k, v in acc.items()}

    # seg head MLP([D, output_dim, n_class])
    ks = jax.random.split(k_seg, 2)
    w1, b1 = _rand_conv(ks[0], output_dim, D)
    w2, b2 = _rand_conv(ks[1], n_class, output_dim)
    seg = (w1.T.astype(jnp.bfloat16), b1[None, :],
           w2.T.astype(jnp.bfloat16), b2[None, :])

    return {"kenc": kenc, "gnn": gnn, "seg": seg}


if __name__ == "__main__":
    # Small config consistent with the module structure
    B, N = 2, 16
    DESC_DIM = 32        # descriptor_dim (divisible by 4 heads)
    OUT_DIM = 64         # output_dim
    N_CLASS = 16         # n_class
    KENC_LAYERS = [16, 32]
    N_LAYERS = 2
    HEADS = 4

    root = jax.random.PRNGKey(0)
    k_params, k_desc, k_kpts = jax.random.split(root, 3)

    params = make_segnet_params(
        k_params,
        descriptor_dim=DESC_DIM, output_dim=OUT_DIM, n_class=N_CLASS,
        keypoint_encoder=KENC_LAYERS, n_layers=N_LAYERS, num_heads=HEADS,
        with_score=False,
    )

    # data['seg_descriptors']: [B, N, D] (channel-last); data['norm_keypoints']: [B, N, 2]
    seg_descriptors = jax.random.normal(k_desc, (B, N, DESC_DIM), jnp.float32)
    norm_keypoints = jax.random.uniform(k_kpts, (B, N, 2), jnp.float32, minval=-1.0, maxval=1.0)

    out = segnet_forward(params, seg_descriptors, norm_keypoints, num_heads=HEADS)
    pred = jax.block_until_ready(out["prediction"])
    assert pred.shape == (B, N, N_CLASS) and pred.dtype == jnp.float32
    print("KERNEL_OK")
</pallas_src>

<mosaic_0001>
module attributes {stable_mosaic.version = 11 : i64} {
  func.func @kernel(%arg0: i32, %arg1: i32, %arg2: memref<1x16x2xf32, #tpu.memory_space<vmem>>, %arg3: memref<1x16x32xf32, #tpu.memory_space<vmem>>, %arg4: memref<2x16xf32, #tpu.memory_space<vmem>>, %arg5: memref<1x16xf32, #tpu.memory_space<vmem>>, %arg6: memref<16x32xf32, #tpu.memory_space<vmem>>, %arg7: memref<1x32xf32, #tpu.memory_space<vmem>>, %arg8: memref<32x32xf32, #tpu.memory_space<vmem>>, %arg9: memref<1x32xf32, #tpu.memory_space<vmem>>, %arg10: memref<1x32x32xbf16, #tpu.memory_space<vmem>>, %arg11: memref<1x1x32xf32, #tpu.memory_space<vmem>>, %arg12: memref<1x32x32xbf16, #tpu.memory_space<vmem>>, %arg13: memref<1x1x32xf32, #tpu.memory_space<vmem>>, %arg14: memref<1x32x32xbf16, #tpu.memory_space<vmem>>, %arg15: memref<1x1x32xf32, #tpu.memory_space<vmem>>, %arg16: memref<1x4x8x32xbf16, #tpu.memory_space<vmem>>, %arg17: memref<1x1x32xf32, #tpu.memory_space<vmem>>, %arg18: memref<1x32x64xbf16, #tpu.memory_space<vmem>>, %arg19: memref<1x32x64xbf16, #tpu.memory_space<vmem>>, %arg20: memref<1x1x64xf32, #tpu.memory_space<vmem>>, %arg21: memref<1x64x32xbf16, #tpu.memory_space<vmem>>, %arg22: memref<1x1x32xf32, #tpu.memory_space<vmem>>, %arg23: memref<32x64xbf16, #tpu.memory_space<vmem>>, %arg24: memref<1x64xf32, #tpu.memory_space<vmem>>, %arg25: memref<64x16xbf16, #tpu.memory_space<vmem>>, %arg26: memref<1x16xf32, #tpu.memory_space<vmem>>, %arg27: memref<1x16x16xf32, #tpu.memory_space<vmem>>, %arg28: memref<16x32xf32, #tpu.memory_space<vmem>>) attributes {dimension_semantics = [#tpu.dimension_semantics<parallel>, #tpu.dimension_semantics<arbitrary>], iteration_bounds = array<i64: 2, 2>, scalar_prefetch = 0 : i64, scratch_operands = 1 : i64, tpu.core_type = #tpu.core_type<tc>, window_params = [{transform_indices = @transform_0, window_bounds = array<i64: 1, 16, 2>}, {transform_indices = @transform_1, window_bounds = array<i64: 1, 16, 32>}, {pipeline_mode = #tpu.pipeline_mode<synchronous>, transform_indices = @transform_2, window_bounds = array<i64: 2, 16>}, {pipeline_mode = #tpu.pipeline_mode<synchronous>, transform_indices = @transform_3, window_bounds = array<i64: 1, 16>}, {pipeline_mode = #tpu.pipeline_mode<synchronous>, transform_indices = @transform_4, window_bounds = array<i64: 16, 32>}, {pipeline_mode = #tpu.pipeline_mode<synchronous>, transform_indices = @transform_5, window_bounds = array<i64: 1, 32>}, {pipeline_mode = #tpu.pipeline_mode<synchronous>, transform_indices = @transform_6, window_bounds = array<i64: 32, 32>}, {pipeline_mode = #tpu.pipeline_mode<synchronous>, transform_indices = @transform_7, window_bounds = array<i64: 1, 32>}, {transform_indices = @transform_8, window_bounds = array<i64: 1, 32, 32>}, {transform_indices = @transform_9, window_bounds = array<i64: 1, 1, 32>}, {transform_indices = @transform_10, window_bounds = array<i64: 1, 32, 32>}, {transform_indices = @transform_11, window_bounds = array<i64: 1, 1, 32>}, {transform_indices = @transform_12, window_bounds = array<i64: 1, 32, 32>}, {transform_indices = @transform_13, window_bounds = array<i64: 1, 1, 32>}, {transform_indices = @transform_14, window_bounds = array<i64: 1, 4, 8, 32>}, {transform_indices = @transform_15, window_bounds = array<i64: 1, 1, 32>}, {transform_indices = @transform_16, window_bounds = array<i64: 1, 32, 64>}, {transform_indices = @transform_17, window_bounds = array<i64: 1, 32, 64>}, {transform_indices = @transform_18, window_bounds = array<i64: 1, 1, 64>}, {transform_indices = @transform_19, window_bounds = array<i64: 1, 64, 32>}, {transform_indices = @transform_20, window_bounds = array<i64: 1, 1, 32>}, {pipeline_mode = #tpu.pipeline_mode<synchronous>, transform_indices = @transform_21, window_bounds = array<i64: 32, 64>}, {pipeline_mode = #tpu.pipeline_mode<synchronous>, transform_indices = @transform_22, window_bounds = array<i64: 1, 64>}, {pipeline_mode = #tpu.pipeline_mode<synchronous>, transform_indices = @transform_23, window_bounds = array<i64: 64, 16>}, {pipeline_mode = #tpu.pipeline_mode<synchronous>, transform_indices = @transform_24, window_bounds = array<i64: 1, 16>}, {transform_indices = @transform_25, window_bounds = array<i64: 1, 16, 16>}]} {
    %c0_i32 = arith.constant 0 : i32
    %0 = arith.cmpi eq, %arg1, %c0_i32 : i32
    %1 = arith.extui %0 : i1 to i32
    %c0_i32_0 = arith.constant 0 : i32
    %2 = arith.cmpi ne, %1, %c0_i32_0 : i32
    scf.if %2 {
      %c0_87 = arith.constant 0 : index
      %c0_88 = arith.constant 0 : index
      %c0_89 = arith.constant 0 : index
      %174 = vector.load %arg2[%c0_87, %c0_88, %c0_89] : memref<1x16x2xf32, #tpu.memory_space<vmem>>, vector<1x16x2xf32>
      %175 = vector.shape_cast %174 : vector<1x16x2xf32> to vector<16x2xf32>
      %c0_90 = arith.constant 0 : index
      %c0_91 = arith.constant 0 : index
      %176 = vector.load %arg4[%c0_90, %c0_91] : memref<2x16xf32, #tpu.memory_space<vmem>>, vector<2x16xf32>
      %c0_92 = arith.constant 0 : index
      %c0_93 = arith.constant 0 : index
      %177 = vector.load %arg5[%c0_92, %c0_93] : memref<1x16xf32, #tpu.memory_space<vmem>>, vector<1x16xf32>
      %cst_94 = arith.constant dense<0.000000e+00> : vector<16x16xf32>
      %178 = tpu.matmul %175, %176, %cst_94 {dimension_numbers = #tpu.dot_dimension_numbers<[1], [0], [0], [1], [0, 0, 1, 1], [], []>} : vector<16x2xf32>, vector<2x16xf32>, vector<16x16xf32> -> vector<16x16xf32>
      %179 = vector.broadcast %177 : vector<1x16xf32> to vector<16x16xf32>
      %180 = arith.addf %178, %179 : vector<16x16xf32>
      %cst_95 = arith.constant dense<0.000000e+00> : vector<16xf32>
      %181 = vector.multi_reduction <add>, %180, %cst_95 [0] : vector<16x16xf32> to vector<16xf32>
      %182 = vector.shape_cast %181 : vector<16xf32> to vector<1x16xf32>
      %cst_96 = arith.constant 1.600000e+01 : f32
      %183 = vector.broadcast %cst_96 : f32 to vector<1x16xf32>
      %184 = arith.divf %182, %183 : vector<1x16xf32>
      %185 = vector.broadcast %184 : vector<1x16xf32> to vector<16x16xf32>
      %186 = arith.subf %180, %185 : vector<16x16xf32>
      %187 = arith.mulf %186, %186 : vector<16x16xf32>
      %cst_97 = arith.constant dense<0.000000e+00> : vector<16xf32>
      %188 = vector.multi_reduction <add>, %187, %cst_97 [0] : vector<16x16xf32> to vector<16xf32>
      %189 = vector.shape_cast %188 : vector<16xf32> to vector<1x16xf32>
      %cst_98 = arith.constant 1.600000e+01 : f32
      %190 = vector.broadcast %cst_98 : f32 to vector<1x16xf32>
      %191 = arith.divf %189, %190 : vector<1x16xf32>
      %192 = vector.broadcast %184 : vector<1x16xf32> to vector<16x16xf32>
      %193 = arith.subf %180, %192 : vector<16x16xf32>
      %cst_99 = arith.constant 9.99999974E-6 : f32
      %194 = vector.broadcast %cst_99 : f32 to vector<1x16xf32>
      %195 = arith.addf %191, %194 : vector<1x16xf32>
      %196 = math.rsqrt %195 : vector<1x16xf32>
      %197 = vector.broadcast %196 : vector<1x16xf32> to vector<16x16xf32>
      %198 = arith.mulf %193, %197 : vector<16x16xf32>
      %cst_100 = arith.constant 0.000000e+00 : f32
      %199 = vector.broadcast %cst_100 : f32 to vector<16x16xf32>
      %200 = arith.maximumf %198, %199 : vector<16x16xf32>
      %c0_101 = arith.constant 0 : index
      %c0_102 = arith.constant 0 : index
      %201 = vector.load %arg6[%c0_101, %c0_102] : memref<16x32xf32, #tpu.memory_space<vmem>>, vector<16x32xf32>
      %c0_103 = arith.constant 0 : index
      %c0_104 = arith.constant 0 : index
      %202 = vector.load %arg7[%c0_103, %c0_104] : memref<1x32xf32, #tpu.memory_space<vmem>>, vector<1x32xf32>
      %cst_105 = arith.constant dense<0.000000e+00> : vector<16x32xf32>
      %203 = tpu.matmul %200, %201, %cst_105 {dimension_numbers = #tpu.dot_dimension_numbers<[1], [0], [0], [1], [0, 0, 1, 1], [], []>} : vector<16x16xf32>, vector<16x32xf32>, vector<16x32xf32> -> vector<16x32xf32>
      %204 = vector.broadcast %202 : vector<1x32xf32> to vector<16x32xf32>
      %205 = arith.addf %203, %204 : vector<16x32xf32>
      %cst_106 = arith.constant dense<0.000000e+00> : vector<32xf32>
      %206 = vector.multi_reduction <add>, %205, %cst_106 [0] : vector<16x32xf32> to vector<32xf32>
      %207 = vector.shape_cast %206 : vector<32xf32> to vector<1x32xf32>
      %cst_107 = arith.constant 1.600000e+01 : f32
      %208 = vector.broadcast %cst_107 : f32 to vector<1x32xf32>
      %209 = arith.divf %207, %208 : vector<1x32xf32>
      %210 = vector.broadcast %209 : vector<1x32xf32> to vector<16x32xf32>
      %211 = arith.subf %205, %210 : vector<16x32xf32>
      %212 = arith.mulf %211, %211 : vector<16x32xf32>
      %cst_108 = arith.constant dense<0.000000e+00> : vector<32xf32>
      %213 = vector.multi_reduction <add>, %212, %cst_108 [0] : vector<16x32xf32> to vector<32xf32>
      %214 = vector.shape_cast %213 : vector<32xf32> to vector<1x32xf32>
      %cst_109 = arith.constant 1.600000e+01 : f32
      %215 = vector.broadcast %cst_109 : f32 to vector<1x32xf32>
      %216 = arith.divf %214, %215 : vector<1x32xf32>
      %217 = vector.broadcast %209 : vector<1x32xf32> to vector<16x32xf32>
      %218 = arith.subf %205, %217 : vector<16x32xf32>
      %cst_110 = arith.constant 9.99999974E-6 : f32
      %219 = vector.broadcast %cst_110 : f32 to vector<1x32xf32>
      %220 = arith.addf %216, %219 : vector<1x32xf32>
      %221 = math.rsqrt %220 : vector<1x32xf32>
      %222 = vector.broadcast %221 : vector<1x32xf32> to vector<16x32xf32>
      %223 = arith.mulf %218, %222 : vector<16x32xf32>
      %cst_111 = arith.constant 0.000000e+00 : f32
      %224 = vector.broadcast %cst_111 : f32 to vector<16x32xf32>
      %225 = arith.maximumf %223, %224 : vector<16x32xf32>
      %c0_112 = arith.constant 0 : index
      %c0_113 = arith.constant 0 : index
      %226 = vector.load %arg8[%c0_112, %c0_113] : memref<32x32xf32, #tpu.memory_space<vmem>>, vector<32x32xf32>
      %c0_114 = arith.constant 0 : index
      %c0_115 = arith.constant 0 : index
      %227 = vector.load %arg9[%c0_114, %c0_115] : memref<1x32xf32, #tpu.memory_space<vmem>>, vector<1x32xf32>
      %cst_116 = arith.constant dense<0.000000e+00> : vector<16x32xf32>
      %228 = tpu.matmul %225, %226, %cst_116 {dimension_numbers = #tpu.dot_dimension_numbers<[1], [0], [0], [1], [0, 0, 1, 1], [], []>} : vector<16x32xf32>, vector<32x32xf32>, vector<16x32xf32> -> vector<16x32xf32>
      %229 = vector.broadcast %227 : vector<1x32xf32> to vector<16x32xf32>
      %230 = arith.addf %228, %229 : vector<16x32xf32>
      %c0_117 = arith.constant 0 : index
      %c0_118 = arith.constant 0 : index
      %c0_119 = arith.constant 0 : index
      %231 = vector.load %arg3[%c0_117, %c0_118, %c0_119] : memref<1x16x32xf32, #tpu.memory_space<vmem>>, vector<1x16x32xf32>
      %232 = vector.shape_cast %231 : vector<1x16x32xf32> to vector<16x32xf32>
      %233 = arith.addf %232, %230 : vector<16x32xf32>
      %c0_120 = arith.constant 0 : index
      %c0_121 = arith.constant 0 : index
      %234 = vector.load %arg28[%c0_120, %c0_121] : memref<16x32xf32, #tpu.memory_space<vmem>>, vector<16x32xf32>
      tpu.vector_store %arg28[%c0_120, %c0_121], %233 {strides = array<i32>} : memref<16x32xf32, #tpu.memory_space<vmem>>, vector<16x32xf32>,
    } else {
    }
    %c0 = arith.constant 0 : index
    %c0_1 = arith.constant 0 : index
    %3 = vector.load %arg28[%c0, %c0_1] : memref<16x32xf32, #tpu.memory_space<vmem>>, vector<16x32xf32>
    %4 = arith.truncf %3 : vector<16x32xf32> to vector<16x32xbf16>
    %c0_2 = arith.constant 0 : index
    %c0_3 = arith.constant 0 : index
    %c0_4 = arith.constant 0 : index
    %5 = vector.load %arg10[%c0_2, %c0_3, %c0_4] : memref<1x32x32xbf16, #tpu.memory_space<vmem>>, vector<1x32x32xbf16>
    %6 = vector.shape_cast %5 : vector<1x32x32xbf16> to vector<32x32xbf16>
    %cst = arith.constant dense<0.000000e+00> : vector<16x32xf32>
    %7 = tpu.matmul %4, %6, %cst {dimension_numbers = #tpu.dot_dimension_numbers<[1], [0], [0], [1], [0, 0, 1, 1], [], []>} : vector<16x32xbf16>, vector<32x32xbf16>, vector<16x32xf32> -> vector<16x32xf32>
    %c0_5 = arith.constant 0 : index
    %c0_6 = arith.constant 0 : index
    %c0_7 = arith.constant 0 : index
    %8 = vector.load %arg11[%c0_5, %c0_6, %c0_7] : memref<1x1x32xf32, #tpu.memory_space<vmem>>, vector<1x1x32xf32>
    %9 = vector.shape_cast %8 : vector<1x1x32xf32> to vector<1x32xf32>
    %10 = vector.broadcast %9 : vector<1x32xf32> to vector<16x32xf32>
    %11 = arith.addf %7, %10 : vector<16x32xf32>
    %c0_8 = arith.constant 0 : index
    %c0_9 = arith.constant 0 : index
    %c0_10 = arith.constant 0 : index
    %12 = vector.load %arg12[%c0_8, %c0_9, %c0_10] : memref<1x32x32xbf16, #tpu.memory_space<vmem>>, vector<1x32x32xbf16>
    %13 = vector.shape_cast %12 : vector<1x32x32xbf16> to vector<32x32xbf16>
    %cst_11 = arith.constant dense<0.000000e+00> : vector<16x32xf32>
    %14 = tpu.matmul %4, %13, %cst_11 {dimension_numbers = #tpu.dot_dimension_numbers<[1], [0], [0], [1], [0, 0, 1, 1], [], []>} : vector<16x32xbf16>, vector<32x32xbf16>, vector<16x32xf32> -> vector<16x32xf32>
    %c0_12 = arith.constant 0 : index
    %c0_13 = arith.constant 0 : index
    %c0_14 = arith.constant 0 : index
    %15 = vector.load %arg13[%c0_12, %c0_13, %c0_14] : memref<1x1x32xf32, #tpu.memory_space<vmem>>, vector<1x1x32xf32>
    %16 = vector.shape_cast %15 : vector<1x1x32xf32> to vector<1x32xf32>
    %17 = vector.broadcast %16 : vector<1x32xf32> to vector<16x32xf32>
    %18 = arith.addf %14, %17 : vector<16x32xf32>
    %c0_15 = arith.constant 0 : index
    %c0_16 = arith.constant 0 : index
    %c0_17 = arith.constant 0 : index
    %19 = vector.load %arg14[%c0_15, %c0_16, %c0_17] : memref<1x32x32xbf16, #tpu.memory_space<vmem>>, vector<1x32x32xbf16>
    %20 = vector.shape_cast %19 : vector<1x32x32xbf16> to vector<32x32xbf16>
    %cst_18 = arith.constant dense<0.000000e+00> : vector<16x32xf32>
    %21 = tpu.matmul %4, %20, %cst_18 {dimension_numbers = #tpu.dot_dimension_numbers<[1], [0], [0], [1], [0, 0, 1, 1], [], []>} : vector<16x32xbf16>, vector<32x32xbf16>, vector<16x32xf32> -> vector<16x32xf32>
    %c0_19 = arith.constant 0 : index
    %c0_20 = arith.constant 0 : index
    %c0_21 = arith.constant 0 : index
    %22 = vector.load %arg15[%c0_19, %c0_20, %c0_21] : memref<1x1x32xf32, #tpu.memory_space<vmem>>, vector<1x1x32xf32>
    %23 = vector.shape_cast %22 : vector<1x1x32xf32> to vector<1x32xf32>
    %24 = vector.broadcast %23 : vector<1x32xf32> to vector<16x32xf32>
    %25 = arith.addf %21, %24 : vector<16x32xf32>
    %cst_22 = arith.constant 0.353553385 : f32
    %26 = vector.broadcast %cst_22 : f32 to vector<16x32xf32>
    %27 = arith.mulf %11, %26 : vector<16x32xf32>
    %cst_23 = arith.constant 0.000000e+00 : f32
    %28 = vector.broadcast %cst_23 : f32 to vector<16x32xf32>
    %29 = vector.extract_strided_slice %27 {offsets = [0, 0], sizes = [16, 8], strides = [1, 1]} : vector<16x32xf32> to vector<16x8xf32>
    %30 = arith.truncf %29 : vector<16x8xf32> to vector<16x8xbf16>
    %31 = vector.extract_strided_slice %18 {offsets = [0, 0], sizes = [16, 8], strides = [1, 1]} : vector<16x32xf32> to vector<16x8xf32>
    %32 = arith.truncf %31 : vector<16x8xf32> to vector<16x8xbf16>
    %33 = vector.extract_strided_slice %25 {offsets = [0, 0], sizes = [16, 8], strides = [1, 1]} : vector<16x32xf32> to vector<16x8xf32>
    %34 = arith.truncf %33 : vector<16x8xf32> to vector<16x8xbf16>
    %cst_24 = arith.constant dense<0.000000e+00> : vector<16x16xf32>
    %35 = tpu.matmul %30, %32, %cst_24 {dimension_numbers = #tpu.dot_dimension_numbers<[1], [1], [0], [0], [0, 0, 1, 0], [], []>} : vector<16x8xbf16>, vector<16x8xbf16>, vector<16x16xf32> -> vector<16x16xf32>
    %cst_25 = arith.constant dense<0xFF800000> : vector<16xf32>
    %36 = vector.multi_reduction <maximumf>, %35, %cst_25 [1] : vector<16x16xf32> to vector<16xf32>
    %37 = vector.shape_cast %36 : vector<16xf32> to vector<16x1xf32>
    %38 = vector.broadcast %37 : vector<16x1xf32> to vector<16x16xf32>
    %39 = arith.subf %35, %38 : vector<16x16xf32>
    %40 = math.exp %39 : vector<16x16xf32>
    %cst_26 = arith.constant dense<0.000000e+00> : vector<16xf32>
    %41 = vector.multi_reduction <add>, %40, %cst_26 [1] : vector<16x16xf32> to vector<16xf32>
    %42 = vector.shape_cast %41 : vector<16xf32> to vector<16x1xf32>
    %43 = tpu.reciprocal %42 {approx = true} : vector<16x1xf32> -> vector<16x1xf32>
    %44 = vector.broadcast %43 : vector<16x1xf32> to vector<16x16xf32>
    %45 = arith.mulf %40, %44 : vector<16x16xf32>
    %46 = arith.truncf %45 : vector<16x16xf32> to vector<16x16xbf16>
    %cst_27 = arith.constant dense<0.000000e+00> : vector<16x8xf32>
    %47 = tpu.matmul %46, %34, %cst_27 {dimension_numbers = #tpu.dot_dimension_numbers<[1], [0], [0], [1], [0, 0, 1, 1], [], []>} : vector<16x16xbf16>, vector<16x8xbf16>, vector<16x8xf32> -> vector<16x8xf32>
    %48 = arith.truncf %47 : vector<16x8xf32> to vector<16x8xbf16>
    %c0_28 = arith.constant 0 : index
    %c0_29 = arith.constant 0 : index
    %c0_30 = arith.constant 0 : index
    %c0_31 = arith.constant 0 : index
    %49 = vector.load %arg16[%c0_28, %c0_29, %c0_30, %c0_31] : memref<1x4x8x32xbf16, #tpu.memory_space<vmem>>, vector<1x1x8x32xbf16>
    %50 = vector.shape_cast %49 : vector<1x1x8x32xbf16> to vector<8x32xbf16>
    %cst_32 = arith.constant dense<0.000000e+00> : vector<16x32xf32>
    %51 = tpu.matmul %48, %50, %cst_32 {dimension_numbers = #tpu.dot_dimension_numbers<[1], [0], [0], [1], [0, 0, 1, 1], [], []>} : vector<16x8xbf16>, vector<8x32xbf16>, vector<16x32xf32> -> vector<16x32xf32>
    %52 = arith.addf %28, %51 : vector<16x32xf32>
    %53 = vector.extract_strided_slice %27 {offsets = [0, 8], sizes = [16, 8], strides = [1, 1]} : vector<16x32xf32> to vector<16x8xf32>
    %54 = arith.truncf %53 : vector<16x8xf32> to vector<16x8xbf16>
    %55 = vector.extract_strided_slice %18 {offsets = [0, 8], sizes = [16, 8], strides = [1, 1]} : vector<16x32xf32> to vector<16x8xf32>
    %56 = arith.truncf %55 : vector<16x8xf32> to vector<16x8xbf16>
    %57 = vector.extract_strided_slice %25 {offsets = [0, 8], sizes = [16, 8], strides = [1, 1]} : vector<16x32xf32> to vector<16x8xf32>
    %58 = arith.truncf %57 : vector<16x8xf32> to vector<16x8xbf16>
    %cst_33 = arith.constant dense<0.000000e+00> : vector<16x16xf32>
    %59 = tpu.matmul %54, %56, %cst_33 {dimension_numbers = #tpu.dot_dimension_numbers<[1], [1], [0], [0], [0, 0, 1, 0], [], []>} : vector<16x8xbf16>, vector<16x8xbf16>, vector<16x16xf32> -> vector<16x16xf32>
    %cst_34 = arith.constant dense<0xFF800000> : vector<16xf32>
    %60 = vector.multi_reduction <maximumf>, %59, %cst_34 [1] : vector<16x16xf32> to vector<16xf32>
    %61 = vector.shape_cast %60 : vector<16xf32> to vector<16x1xf32>
    %62 = vector.broadcast %61 : vector<16x1xf32> to vector<16x16xf32>
    %63 = arith.subf %59, %62 : vector<16x16xf32>
    %64 = math.exp %63 : vector<16x16xf32>
    %cst_35 = arith.constant dense<0.000000e+00> : vector<16xf32>
    %65 = vector.multi_reduction <add>, %64, %cst_35 [1] : vector<16x16xf32> to vector<16xf32>
    %66 = vector.shape_cast %65 : vector<16xf32> to vector<16x1xf32>
    %67 = tpu.reciprocal %66 {approx = true} : vector<16x1xf32> -> vector<16x1xf32>
    %68 = vector.broadcast %67 : vector<16x1xf32> to vector<16x16xf32>
    %69 = arith.mulf %64, %68 : vector<16x16xf32>
    %70 = arith.truncf %69 : vector<16x16xf32> to vector<16x16xbf16>
    %cst_36 = arith.constant dense<0.000000e+00> : vector<16x8xf32>
    %71 = tpu.matmul %70, %58, %cst_36 {dimension_numbers = #tpu.dot_dimension_numbers<[1], [0], [0], [1], [0, 0, 1, 1], [], []>} : vector<16x16xbf16>, vector<16x8xbf16>, vector<16x8xf32> -> vector<16x8xf32>
    %72 = arith.truncf %71 : vector<16x8xf32> to vector<16x8xbf16>
    %c0_37 = arith.constant 0 : index
    %c1 = arith.constant 1 : index
    %c0_38 = arith.constant 0 : index
    %c0_39 = arith.constant 0 : index
    %73 = vector.load %arg16[%c0_37, %c1, %c0_38, %c0_39] : memref<1x4x8x32xbf16, #tpu.memory_space<vmem>>, vector<1x1x8x32xbf16>
    %74 = vector.shape_cast %73 : vector<1x1x8x32xbf16> to vector<8x32xbf16>
    %cst_40 = arith.constant dense<0.000000e+00> : vector<16x32xf32>
    %75 = tpu.matmul %72, %74, %cst_40 {dimension_numbers = #tpu.dot_dimension_numbers<[1], [0], [0], [1], [0, 0, 1, 1], [], []>} : vector<16x8xbf16>, vector<8x32xbf16>, vector<16x32xf32> -> vector<16x32xf32>
    %76 = arith.addf %52, %75 : vector<16x32xf32>
    %77 = vector.extract_strided_slice %27 {offsets = [0, 16], sizes = [16, 8], strides = [1, 1]} : vector<16x32xf32> to vector<16x8xf32>
    %78 = arith.truncf %77 : vector<16x8xf32> to vector<16x8xbf16>
    %79 = vector.extract_strided_slice %18 {offsets = [0, 16], sizes = [16, 8], strides = [1, 1]} : vector<16x32xf32> to vector<16x8xf32>
    %80 = arith.truncf %79 : vector<16x8xf32> to vector<16x8xbf16>
    %81 = vector.extract_strided_slice %25 {offsets = [0, 16], sizes = [16, 8], strides = [1, 1]} : vector<16x32xf32> to vector<16x8xf32>
    %82 = arith.truncf %81 : vector<16x8xf32> to vector<16x8xbf16>
    %cst_41 = arith.constant dense<0.000000e+00> : vector<16x16xf32>
    %83 = tpu.matmul %78, %80, %cst_41 {dimension_numbers = #tpu.dot_dimension_numbers<[1], [1], [0], [0], [0, 0, 1, 0], [], []>} : vector<16x8xbf16>, vector<16x8xbf16>, vector<16x16xf32> -> vector<16x16xf32>
    %cst_42 = arith.constant dense<0xFF800000> : vector<16xf32>
    %84 = vector.multi_reduction <maximumf>, %83, %cst_42 [1] : vector<16x16xf32> to vector<16xf32>
    %85 = vector.shape_cast %84 : vector<16xf32> to vector<16x1xf32>
    %86 = vector.broadcast %85 : vector<16x1xf32> to vector<16x16xf32>
    %87 = arith.subf %83, %86 : vector<16x16xf32>
    %88 = math.exp %87 : vector<16x16xf32>
    %cst_43 = arith.constant dense<0.000000e+00> : vector<16xf32>
    %89 = vector.multi_reduction <add>, %88, %cst_43 [1] : vector<16x16xf32> to vector<16xf32>
    %90 = vector.shape_cast %89 : vector<16xf32> to vector<16x1xf32>
    %91 = tpu.reciprocal %90 {approx = true} : vector<16x1xf32> -> vector<16x1xf32>
    %92 = vector.broadcast %91 : vector<16x1xf32> to vector<16x16xf32>
    %93 = arith.mulf %88, %92 : vector<16x16xf32>
    %94 = arith.truncf %93 : vector<16x16xf32> to vector<16x16xbf16>
    %cst_44 = arith.constant dense<0.000000e+00> : vector<16x8xf32>
    %95 = tpu.matmul %94, %82, %cst_44 {dimension_numbers = #tpu.dot_dimension_numbers<[1], [0], [0], [1], [0, 0, 1, 1], [], []>} : vector<16x16xbf16>, vector<16x8xbf16>, vector<16x8xf32> -> vector<16x8xf32>
    %96 = arith.truncf %95 : vector<16x8xf32> to vector<16x8xbf16>
    %c0_45 = arith.constant 0 : index
    %c2 = arith.constant 2 : index
    %c0_46 = arith.constant 0 : index
    %c0_47 = arith.constant 0 : index
    %97 = vector.load %arg16[%c0_45, %c2, %c0_46, %c0_47] : memref<1x4x8x32xbf16, #tpu.memory_space<vmem>>, vector<1x1x8x32xbf16>
    %98 = vector.shape_cast %97 : vector<1x1x8x32xbf16> to vector<8x32xbf16>
    %cst_48 = arith.constant dense<0.000000e+00> : vector<16x32xf32>
    %99 = tpu.matmul %96, %98, %cst_48 {dimension_numbers = #tpu.dot_dimension_numbers<[1], [0], [0], [1], [0, 0, 1, 1], [], []>} : vector<16x8xbf16>, vector<8x32xbf16>, vector<16x32xf32> -> vector<16x32xf32>
    %100 = arith.addf %76, %99 : vector<16x32xf32>
    %101 = vector.extract_strided_slice %27 {offsets = [0, 24], sizes = [16, 8], strides = [1, 1]} : vector<16x32xf32> to vector<16x8xf32>
    %102 = arith.truncf %101 : vector<16x8xf32> to vector<16x8xbf16>
    %103 = vector.extract_strided_slice %18 {offsets = [0, 24], sizes = [16, 8], strides = [1, 1]} : vector<16x32xf32> to vector<16x8xf32>
    %104 = arith.truncf %103 : vector<16x8xf32> to vector<16x8xbf16>
    %105 = vector.extract_strided_slice %25 {offsets = [0, 24], sizes = [16, 8], strides = [1, 1]} : vector<16x32xf32> to vector<16x8xf32>
    %106 = arith.truncf %105 : vector<16x8xf32> to vector<16x8xbf16>
    %cst_49 = arith.constant dense<0.000000e+00> : vector<16x16xf32>
    %107 = tpu.matmul %102, %104, %cst_49 {dimension_numbers = #tpu.dot_dimension_numbers<[1], [1], [0], [0], [0, 0, 1, 0], [], []>} : vector<16x8xbf16>, vector<16x8xbf16>, vector<16x16xf32> -> vector<16x16xf32>
    %cst_50 = arith.constant dense<0xFF800000> : vector<16xf32>
    %108 = vector.multi_reduction <maximumf>, %107, %cst_50 [1] : vector<16x16xf32> to vector<16xf32>
    %109 = vector.shape_cast %108 : vector<16xf32> to vector<16x1xf32>
    %110 = vector.broadcast %109 : vector<16x1xf32> to vector<16x16xf32>
    %111 = arith.subf %107, %110 : vector<16x16xf32>
    %112 = math.exp %111 : vector<16x16xf32>
    %cst_51 = arith.constant dense<0.000000e+00> : vector<16xf32>
    %113 = vector.multi_reduction <add>, %112, %cst_51 [1] : vector<16x16xf32> to vector<16xf32>
    %114 = vector.shape_cast %113 : vector<16xf32> to vector<16x1xf32>
    %115 = tpu.reciprocal %114 {approx = true} : vector<16x1xf32> -> vector<16x1xf32>
    %116 = vector.broadcast %115 : vector<16x1xf32> to vector<16x16xf32>
    %117 = arith.mulf %112, %116 : vector<16x16xf32>
    %118 = arith.truncf %117 : vector<16x16xf32> to vector<16x16xbf16>
    %cst_52 = arith.constant dense<0.000000e+00> : vector<16x8xf32>
    %119 = tpu.matmul %118, %106, %cst_52 {dimension_numbers = #tpu.dot_dimension_numbers<[1], [0], [0], [1], [0, 0, 1, 1], [], []>} : vector<16x16xbf16>, vector<16x8xbf16>, vector<16x8xf32> -> vector<16x8xf32>
    %120 = arith.truncf %119 : vector<16x8xf32> to vector<16x8xbf16>
    %c0_53 = arith.constant 0 : index
    %c3 = arith.constant 3 : index
    %c0_54 = arith.constant 0 : index
    %c0_55 = arith.constant 0 : index
    %121 = vector.load %arg16[%c0_53, %c3, %c0_54, %c0_55] : memref<1x4x8x32xbf16, #tpu.memory_space<vmem>>, vector<1x1x8x32xbf16>
    %122 = vector.shape_cast %121 : vector<1x1x8x32xbf16> to vector<8x32xbf16>
    %cst_56 = arith.constant dense<0.000000e+00> : vector<16x32xf32>
    %123 = tpu.matmul %120, %122, %cst_56 {dimension_numbers = #tpu.dot_dimension_numbers<[1], [0], [0], [1], [0, 0, 1, 1], [], []>} : vector<16x8xbf16>, vector<8x32xbf16>, vector<16x32xf32> -> vector<16x32xf32>
    %124 = arith.addf %100, %123 : vector<16x32xf32>
    %c0_57 = arith.constant 0 : index
    %c0_58 = arith.constant 0 : index
    %c0_59 = arith.constant 0 : index
    %125 = vector.load %arg17[%c0_57, %c0_58, %c0_59] : memref<1x1x32xf32, #tpu.memory_space<vmem>>, vector<1x1x32xf32>
    %126 = vector.shape_cast %125 : vector<1x1x32xf32> to vector<1x32xf32>
    %127 = vector.broadcast %126 : vector<1x32xf32> to vector<16x32xf32>
    %128 = arith.addf %124, %127 : vector<16x32xf32>
    %c0_60 = arith.constant 0 : index
    %c0_61 = arith.constant 0 : index
    %c0_62 = arith.constant 0 : index
    %129 = vector.load %arg18[%c0_60, %c0_61, %c0_62] : memref<1x32x64xbf16, #tpu.memory_space<vmem>>, vector<1x32x64xbf16>
    %130 = vector.shape_cast %129 : vector<1x32x64xbf16> to vector<32x64xbf16>
    %cst_63 = arith.constant dense<0.000000e+00> : vector<16x64xf32>
    %131 = tpu.matmul %4, %130, %cst_63 {dimension_numbers = #tpu.dot_dimension_numbers<[1], [0], [0], [1], [0, 0, 1, 1], [], []>} : vector<16x32xbf16>, vector<32x64xbf16>, vector<16x64xf32> -> vector<16x64xf32>
    %132 = arith.truncf %128 : vector<16x32xf32> to vector<16x32xbf16>
    %c0_64 = arith.constant 0 : index
    %c0_65 = arith.constant 0 : index
    %c0_66 = arith.constant 0 : index
    %133 = vector.load %arg19[%c0_64, %c0_65, %c0_66] : memref<1x32x64xbf16, #tpu.memory_space<vmem>>, vector<1x32x64xbf16>
    %134 = vector.shape_cast %133 : vector<1x32x64xbf16> to vector<32x64xbf16>
    %cst_67 = arith.constant dense<0.000000e+00> : vector<16x64xf32>
    %135 = tpu.matmul %132, %134, %cst_67 {dimension_numbers = #tpu.dot_dimension_numbers<[1], [0], [0], [1], [0, 0, 1, 1], [], []>} : vector<16x32xbf16>, vector<32x64xbf16>, vector<16x64xf32> -> vector<16x64xf32>
    %136 = arith.addf %131, %135 : vector<16x64xf32>
    %c0_68 = arith.constant 0 : index
    %c0_69 = arith.constant 0 : index
    %c0_70 = arith.constant 0 : index
    %137 = vector.load %arg20[%c0_68, %c0_69, %c0_70] : memref<1x1x64xf32, #tpu.memory_space<vmem>>, vector<1x1x64xf32>
    %138 = vector.shape_cast %137 : vector<1x1x64xf32> to vector<1x64xf32>
    %139 = vector.broadcast %138 : vector<1x64xf32> to vector<16x64xf32>
    %140 = arith.addf %136, %139 : vector<16x64xf32>
    %cst_71 = arith.constant dense<0.000000e+00> : vector<64xf32>
    %141 = vector.multi_reduction <add>, %140, %cst_71 [0] : vector<16x64xf32> to vector<64xf32>
    %142 = vector.shape_cast %141 : vector<64xf32> to vector<1x64xf32>
    %cst_72 = arith.constant 1.600000e+01 : f32
    %143 = vector.broadcast %cst_72 : f32 to vector<1x64xf32>
    %144 = arith.divf %142, %143 : vector<1x64xf32>
    %145 = vector.broadcast %144 : vector<1x64xf32> to vector<16x64xf32>
    %146 = arith.subf %140, %145 : vector<16x64xf32>
    %147 = arith.mulf %146, %146 : vector<16x64xf32>
    %cst_73 = arith.constant dense<0.000000e+00> : vector<64xf32>
    %148 = vector.multi_reduction <add>, %147, %cst_73 [0] : vector<16x64xf32> to vector<64xf32>
    %149 = vector.shape_cast %148 : vector<64xf32> to vector<1x64xf32>
    %cst_74 = arith.constant 1.600000e+01 : f32
    %150 = vector.broadcast %cst_74 : f32 to vector<1x64xf32>
    %151 = arith.divf %149, %150 : vector<1x64xf32>
    %152 = vector.broadcast %144 : vector<1x64xf32> to vector<16x64xf32>
    %153 = arith.subf %140, %152 : vector<16x64xf32>
    %cst_75 = arith.constant 9.99999974E-6 : f32
    %154 = vector.broadcast %cst_75 : f32 to vector<1x64xf32>
    %155 = arith.addf %151, %154 : vector<1x64xf32>
    %156 = math.rsqrt %155 : vector<1x64xf32>
    %157 = vector.broadcast %156 : vector<1x64xf32> to vector<16x64xf32>
    %158 = arith.mulf %153, %157 : vector<16x64xf32>
    %cst_76 = arith.constant 0.000000e+00 : f32
    %159 = vector.broadcast %cst_76 : f32 to vector<16x64xf32>
    %160 = arith.maximumf %158, %159 : vector<16x64xf32>
    %161 = arith.truncf %160 : vector<16x64xf32> to vector<16x64xbf16>
    %c0_77 = arith.constant 0 : index
    %c0_78 = arith.constant 0 : index
    %c0_79 = arith.constant 0 : index
    %162 = vector.load %arg21[%c0_77, %c0_78, %c0_79] : memref<1x64x32xbf16, #tpu.memory_space<vmem>>, vector<1x64x32xbf16>
    %163 = vector.shape_cast %162 : vector<1x64x32xbf16> to vector<64x32xbf16>
    %cst_80 = arith.constant dense<0.000000e+00> : vector<16x32xf32>
    %164 = tpu.matmul %161, %163, %cst_80 {dimension_numbers = #tpu.dot_dimension_numbers<[1], [0], [0], [1], [0, 0, 1, 1], [], []>} : vector<16x64xbf16>, vector<64x32xbf16>, vector<16x32xf32> -> vector<16x32xf32>
    %c0_81 = arith.constant 0 : index
    %c0_82 = arith.constant 0 : index
    %c0_83 = arith.constant 0 : index
    %165 = vector.load %arg22[%c0_81, %c0_82, %c0_83] : memref<1x1x32xf32, #tpu.memory_space<vmem>>, vector<1x1x32xf32>
    %166 = vector.shape_cast %165 : vector<1x1x32xf32> to vector<1x32xf32>
    %167 = vector.broadcast %166 : vector<1x32xf32> to vector<16x32xf32>
    %168 = arith.addf %164, %167 : vector<16x32xf32>
    %169 = arith.addf %3, %168 : vector<16x32xf32>
    %c0_84 = arith.constant 0 : index
    %c0_85 = arith.constant 0 : index
    %170 = vector.load %arg28[%c0_84, %c0_85] : memref<16x32xf32, #tpu.memory_space<vmem>>, vector<16x32xf32>
    tpu.vector_store %arg28[%c0_84, %c0_85], %169 {strides = array<i32>} : memref<16x32xf32, #tpu.memory_space<vmem>>, vector<16x32xf32>,
    %c1_i32 = arith.constant 1 : i32
    %171 = arith.cmpi eq, %arg1, %c1_i32 : i32
    %172 = arith.extui %171 : i1 to i32
    %c0_i32_86 = arith.constant 0 : i32
    %173 = arith.cmpi ne, %172, %c0_i32_86 : i32
    scf.if %173 {
      %174 = arith.truncf %169 : vector<16x32xf32> to vector<16x32xbf16>
      %c0_87 = arith.constant 0 : index
      %c0_88 = arith.constant 0 : index
      %175 = vector.load %arg23[%c0_87, %c0_88] : memref<32x64xbf16, #tpu.memory_space<vmem>>, vector<32x64xbf16>
      %cst_89 = arith.constant dense<0.000000e+00> : vector<16x64xf32>
      %176 = tpu.matmul %174, %175, %cst_89 {dimension_numbers = #tpu.dot_dimension_numbers<[1], [0], [0], [1], [0, 0, 1, 1], [], []>} : vector<16x32xbf16>, vector<32x64xbf16>, vector<16x64xf32> -> vector<16x64xf32>
      %c0_90 = arith.constant 0 : index
      %c0_91 = arith.constant 0 : index
      %177 = vector.load %arg24[%c0_90, %c0_91] : memref<1x64xf32, #tpu.memory_space<vmem>>, vector<1x64xf32>
      %178 = vector.broadcast %177 : vector<1x64xf32> to vector<16x64xf32>
      %179 = arith.addf %176, %178 : vector<16x64xf32>
      %cst_92 = arith.constant dense<0.000000e+00> : vector<64xf32>
      %180 = vector.multi_reduction <add>, %179, %cst_92 [0] : vector<16x64xf32> to vector<64xf32>
      %181 = vector.shape_cast %180 : vector<64xf32> to vector<1x64xf32>
      %cst_93 = arith.constant 1.600000e+01 : f32
      %182 = vector.broadcast %cst_93 : f32 to vector<1x64xf32>
      %183 = arith.divf %181, %182 : vector<1x64xf32>
      %184 = vector.broadcast %183 : vector<1x64xf32> to vector<16x64xf32>
      %185 = arith.subf %179, %184 : vector<16x64xf32>
      %186 = arith.mulf %185, %185 : vector<16x64xf32>
      %cst_94 = arith.constant dense<0.000000e+00> : vector<64xf32>
      %187 = vector.multi_reduction <add>, %186, %cst_94 [0] : vector<16x64xf32> to vector<64xf32>
      %188 = vector.shape_cast %187 : vector<64xf32> to vector<1x64xf32>
      %cst_95 = arith.constant 1.600000e+01 : f32
      %189 = vector.broadcast %cst_95 : f32 to vector<1x64xf32>
      %190 = arith.divf %188, %189 : vector<1x64xf32>
      %191 = vector.broadcast %183 : vector<1x64xf32> to vector<16x64xf32>
      %192 = arith.subf %179, %191 : vector<16x64xf32>
      %cst_96 = arith.constant 9.99999974E-6 : f32
      %193 = vector.broadcast %cst_96 : f32 to vector<1x64xf32>
      %194 = arith.addf %190, %193 : vector<1x64xf32>
      %195 = math.rsqrt %194 : vector<1x64xf32>
      %196 = vector.broadcast %195 : vector<1x64xf32> to vector<16x64xf32>
      %197 = arith.mulf %192, %196 : vector<16x64xf32>
      %cst_97 = arith.constant 0.000000e+00 : f32
      %198 = vector.broadcast %cst_97 : f32 to vector<16x64xf32>
      %199 = arith.maximumf %197, %198 : vector<16x64xf32>
      %200 = arith.truncf %199 : vector<16x64xf32> to vector<16x64xbf16>
      %c0_98 = arith.constant 0 : index
      %c0_99 = arith.constant 0 : index
      %201 = vector.load %arg25[%c0_98, %c0_99] : memref<64x16xbf16, #tpu.memory_space<vmem>>, vector<64x16xbf16>
      %cst_100 = arith.constant dense<0.000000e+00> : vector<16x16xf32>
      %202 = tpu.matmul %200, %201, %cst_100 {dimension_numbers = #tpu.dot_dimension_numbers<[1], [0], [0], [1], [0, 0, 1, 1], [], []>} : vector<16x64xbf16>, vector<64x16xbf16>, vector<16x16xf32> -> vector<16x16xf32>
      %c0_101 = arith.constant 0 : index
      %c0_102 = arith.constant 0 : index
      %203 = vector.load %arg26[%c0_101, %c0_102] : memref<1x16xf32, #tpu.memory_space<vmem>>, vector<1x16xf32>
      %204 = vector.broadcast %203 : vector<1x16xf32> to vector<16x16xf32>
      %205 = arith.addf %202, %204 : vector<16x16xf32>
      %c0_103 = arith.constant 0 : index
      %c0_104 = arith.constant 0 : index
      %c0_105 = arith.constant 0 : index
      %206 = vector.load %arg27[%c0_103, %c0_104, %c0_105] : memref<1x16x16xf32, #tpu.memory_space<vmem>>, vector<1x16x16xf32>
      %207 = vector.shape_cast %206 : vector<1x16x16xf32> to vector<16x16xf32>
      %208 = vector.shape_cast %205 : vector<16x16xf32> to vector<1x16x16xf32>
      tpu.vector_store %arg27[%c0_103, %c0_104, %c0_105], %208 {strides = array<i32>} : memref<1x16x16xf32, #tpu.memory_space<vmem>>, vector<1x16x16xf32>,
    } else {
    }
    return
  }
  func.func @transform_0(%arg0: i32, %arg1: i32) -> (i32, i32, i32) {
    %c0_i32 = arith.constant 0 : i32
    %c0_i32_0 = arith.constant 0 : i32
    %c0_i32_1 = arith.constant 0 : i32
    return %arg0, %c0_i32, %c0_i32_0 : i32, i32, i32
  }
  func.func @transform_1(%arg0: i32, %arg1: i32) -> (i32, i32, i32) {
    %c0_i32 = arith.constant 0 : i32
    %c0_i32_0 = arith.constant 0 : i32
    %c0_i32_1 = arith.constant 0 : i32
    return %arg0, %c0_i32, %c0_i32_0 : i32, i32, i32
  }
  func.func @transform_2(%arg0: i32, %arg1: i32) -> (i32, i32) {
    %c0_i32 = arith.constant 0 : i32
    %c0_i32_0 = arith.constant 0 : i32
    %c0_i32_1 = arith.constant 0 : i32
    return %c0_i32, %c0_i32_0 : i32, i32
  }
  func.func @transform_3(%arg0: i32, %arg1: i32) -> (i32, i32) {
    %c0_i32 = arith.constant 0 : i32
    %c0_i32_0 = arith.constant 0 : i32
    %c0_i32_1 = arith.constant 0 : i32
    return %c0_i32, %c0_i32_0 : i32, i32
  }
  func.func @transform_4(%arg0: i32, %arg1: i32) -> (i32, i32) {
    %c0_i32 = arith.constant 0 : i32
    %c0_i32_0 = arith.constant 0 : i32
    %c0_i32_1 = arith.constant 0 : i32
    return %c0_i32, %c0_i32_0 : i32, i32
  }
  func.func @transform_5(%arg0: i32, %arg1: i32) -> (i32, i32) {
    %c0_i32 = arith.constant 0 : i32
    %c0_i32_0 = arith.constant 0 : i32
    %c0_i32_1 = arith.constant 0 : i32
    return %c0_i32, %c0_i32_0 : i32, i32
  }
  func.func @transform_6(%arg0: i32, %arg1: i32) -> (i32, i32) {
    %c0_i32 = arith.constant 0 : i32
    %c0_i32_0 = arith.constant 0 : i32
    %c0_i32_1 = arith.constant 0 : i32
    return %c0_i32, %c0_i32_0 : i32, i32
  }
  func.func @transform_7(%arg0: i32, %arg1: i32) -> (i32, i32) {
    %c0_i32 = arith.constant 0 : i32
    %c0_i32_0 = arith.constant 0 : i32
    %c0_i32_1 = arith.constant 0 : i32
    return %c0_i32, %c0_i32_0 : i32, i32
  }
  func.func @transform_8(%arg0: i32, %arg1: i32) -> (i32, i32, i32) {
    %c0_i32 = arith.constant 0 : i32
    %c0_i32_0 = arith.constant 0 : i32
    %c0_i32_1 = arith.constant 0 : i32
    return %arg1, %c0_i32, %c0_i32_0 : i32, i32, i32
  }
  func.func @transform_9(%arg0: i32, %arg1: i32) -> (i32, i32, i32) {
    %c0_i32 = arith.constant 0 : i32
    %c0_i32_0 = arith.constant 0 : i32
    %c0_i32_1 = arith.constant 0 : i32
    return %arg1, %c0_i32, %c0_i32_0 : i32, i32, i32
  }
  func.func @transform_10(%arg0: i32, %arg1: i32) -> (i32, i32, i32) {
    %c0_i32 = arith.constant 0 : i32
    %c0_i32_0 = arith.constant 0 : i32
    %c0_i32_1 = arith.constant 0 : i32
    return %arg1, %c0_i32, %c0_i32_0 : i32, i32, i32
  }
  func.func @transform_11(%arg0: i32, %arg1: i32) -> (i32, i32, i32) {
    %c0_i32 = arith.constant 0 : i32
    %c0_i32_0 = arith.constant 0 : i32
    %c0_i32_1 = arith.constant 0 : i32
    return %arg1, %c0_i32, %c0_i32_0 : i32, i32, i32
  }
  func.func @transform_12(%arg0: i32, %arg1: i32) -> (i32, i32, i32) {
    %c0_i32 = arith.constant 0 : i32
    %c0_i32_0 = arith.constant 0 : i32
    %c0_i32_1 = arith.constant 0 : i32
    return %arg1, %c0_i32, %c0_i32_0 : i32, i32, i32
  }
  func.func @transform_13(%arg0: i32, %arg1: i32) -> (i32, i32, i32) {
    %c0_i32 = arith.constant 0 : i32
    %c0_i32_0 = arith.constant 0 : i32
    %c0_i32_1 = arith.constant 0 : i32
    return %arg1, %c0_i32, %c0_i32_0 : i32, i32, i32
  }
  func.func @transform_14(%arg0: i32, %arg1: i32) -> (i32, i32, i32, i32) {
    %c0_i32 = arith.constant 0 : i32
    %c0_i32_0 = arith.constant 0 : i32
    %c0_i32_1 = arith.constant 0 : i32
    %c0_i32_2 = arith.constant 0 : i32
    return %arg1, %c0_i32, %c0_i32_0, %c0_i32_1 : i32, i32, i32, i32
  }
  func.func @transform_15(%arg0: i32, %arg1: i32) -> (i32, i32, i32) {
    %c0_i32 = arith.constant 0 : i32
    %c0_i32_0 = arith.constant 0 : i32
    %c0_i32_1 = arith.constant 0 : i32
    return %arg1, %c0_i32, %c0_i32_0 : i32, i32, i32
  }
  func.func @transform_16(%arg0: i32, %arg1: i32) -> (i32, i32, i32) {
    %c0_i32 = arith.constant 0 : i32
    %c0_i32_0 = arith.constant 0 : i32
    %c0_i32_1 = arith.constant 0 : i32
    return %arg1, %c0_i32, %c0_i32_0 : i32, i32, i32
  }
  func.func @transform_17(%arg0: i32, %arg1: i32) -> (i32, i32, i32) {
    %c0_i32 = arith.constant 0 : i32
    %c0_i32_0 = arith.constant 0 : i32
    %c0_i32_1 = arith.constant 0 : i32
    return %arg1, %c0_i32, %c0_i32_0 : i32, i32, i32
  }
  func.func @transform_18(%arg0: i32, %arg1: i32) -> (i32, i32, i32) {
    %c0_i32 = arith.constant 0 : i32
    %c0_i32_0 = arith.constant 0 : i32
    %c0_i32_1 = arith.constant 0 : i32
    return %arg1, %c0_i32, %c0_i32_0 : i32, i32, i32
  }
  func.func @transform_19(%arg0: i32, %arg1: i32) -> (i32, i32, i32) {
    %c0_i32 = arith.constant 0 : i32
    %c0_i32_0 = arith.constant 0 : i32
    %c0_i32_1 = arith.constant 0 : i32
    return %arg1, %c0_i32, %c0_i32_0 : i32, i32, i32
  }
  func.func @transform_20(%arg0: i32, %arg1: i32) -> (i32, i32, i32) {
    %c0_i32 = arith.constant 0 : i32
    %c0_i32_0 = arith.constant 0 : i32
    %c0_i32_1 = arith.constant 0 : i32
    return %arg1, %c0_i32, %c0_i32_0 : i32, i32, i32
  }
  func.func @transform_21(%arg0: i32, %arg1: i32) -> (i32, i32) {
    %c0_i32 = arith.constant 0 : i32
    %c0_i32_0 = arith.constant 0 : i32
    %c0_i32_1 = arith.constant 0 : i32
    return %c0_i32, %c0_i32_0 : i32, i32
  }
  func.func @transform_22(%arg0: i32, %arg1: i32) -> (i32, i32) {
    %c0_i32 = arith.constant 0 : i32
    %c0_i32_0 = arith.constant 0 : i32
    %c0_i32_1 = arith.constant 0 : i32
    return %c0_i32, %c0_i32_0 : i32, i32
  }
  func.func @transform_23(%arg0: i32, %arg1: i32) -> (i32, i32) {
    %c0_i32 = arith.constant 0 : i32
    %c0_i32_0 = arith.constant 0 : i32
    %c0_i32_1 = arith.constant 0 : i32
    return %c0_i32, %c0_i32_0 : i32, i32
  }
  func.func @transform_24(%arg0: i32, %arg1: i32) -> (i32, i32) {
    %c0_i32 = arith.constant 0 : i32
    %c0_i32_0 = arith.constant 0 : i32
    %c0_i32_1 = arith.constant 0 : i32
    return %c0_i32, %c0_i32_0 : i32, i32
  }
  func.func @transform_25(%arg0: i32, %arg1: i32) -> (i32, i32, i32) {
    %c0_i32 = arith.constant 0 : i32
    %c0_i32_0 = arith.constant 0 : i32
    %c0_i32_1 = arith.constant 0 : i32
    return %arg0, %c0_i32, %c0_i32_0 : i32, i32, i32
  }
}

</mosaic_0001>

<llo_original>
// kernel: tpu_custom_call.1
$region0: #{tpu_custom_call.1}
  #allocation0 [shape = 'u32[]', space=smem, size = 0x4, offset = 0x4, fixed_abs, tag = 'smem constant byte address 0x4 - core index']
  #allocation1 [shape = 'u32[144,128]{1,0:T(1,128)}', space=vmem, size = 0x12000, scoped, tag = 'internal scratch']
  #allocation2 [shape = 'f32[16,32]{1,0:T(8,128)}', space=vmem, size = 0x2000, scoped, tag = 'scratch operand']
  %s0 = inlined_call_operand.vmem [shape: f32[2,16,2], index: 0, kind: input, shape index: {}]
  %s1 = inlined_call_operand.vmem [shape: f32[2,16,32], index: 1, kind: input, shape index: {}]
  %s2 = inlined_call_operand.hbm [shape: f32[2,16], index: 2, kind: input, shape index: {}]
  %s3 = inlined_call_operand.hbm [shape: f32[1,16], index: 3, kind: input, shape index: {}]
  %s4 = inlined_call_operand.hbm [shape: f32[16,32], index: 4, kind: input, shape index: {}]
  %s5 = inlined_call_operand.hbm [shape: f32[1,32], index: 5, kind: input, shape index: {}]
  %s6 = inlined_call_operand.vmem [shape: f32[32,32], index: 6, kind: input, shape index: {}]
  %s7 = inlined_call_operand.hbm [shape: f32[1,32], index: 7, kind: input, shape index: {}]
  %s8 = inlined_call_operand.vmem [shape: bf16[2,32,32], index: 8, kind: input, shape index: {}]
  %s9 = inlined_call_operand.hbm [shape: f32[2,1,32], index: 9, kind: input, shape index: {}]
  %s10 = inlined_call_operand.vmem [shape: bf16[2,32,32], index: 10, kind: input, shape index: {}]
  %s11 = inlined_call_operand.hbm [shape: f32[2,1,32], index: 11, kind: input, shape index: {}]
  %s12 = inlined_call_operand.vmem [shape: bf16[2,32,32], index: 12, kind: input, shape index: {}]
  %s13 = inlined_call_operand.hbm [shape: f32[2,1,32], index: 13, kind: input, shape index: {}]
  %s14 = inlined_call_operand.vmem [shape: bf16[2,4,8,32], index: 14, kind: input, shape index: {}]
  %s15 = inlined_call_operand.hbm [shape: f32[2,1,32], index: 15, kind: input, shape index: {}]
  %s16 = inlined_call_operand.hbm [shape: bf16[2,32,64], index: 16, kind: input, shape index: {}]
  %s17 = inlined_call_operand.hbm [shape: bf16[2,32,64], index: 17, kind: input, shape index: {}]
  %s18 = inlined_call_operand.hbm [shape: f32[2,1,64], index: 18, kind: input, shape index: {}]
  %s19 = inlined_call_operand.vmem [shape: bf16[2,64,32], index: 19, kind: input, shape index: {}]
  %s20 = inlined_call_operand.vmem [shape: f32[2,1,32], index: 20, kind: input, shape index: {}]
  %s21 = inlined_call_operand.vmem [shape: bf16[32,64], index: 21, kind: input, shape index: {}]
  %s22 = inlined_call_operand.vmem [shape: f32[1,64], index: 22, kind: input, shape index: {}]
  %s23 = inlined_call_operand.vmem [shape: bf16[64,16], index: 23, kind: input, shape index: {}]
  %s24 = inlined_call_operand.vmem [shape: f32[1,16], index: 24, kind: input, shape index: {}]
  %s25 = inlined_call_operand.hbm [shape: f32[2,16,16], index: 25, kind: output, shape index: {}]
  %s26 = sld [smem:[#allocation0]]
  $region189: #{tpu_custom_call.1} parent=0
    _
  %s28 = ssub.s32 1, %s26
  %s29 = scalar_select 0, %s28, %s26
  $region1: #{tpu_custom_call.1} parent=0
    #allocation3 [shape = 'u8[1024]{0}', space=vmem, size = 0x400, scoped, tag = 'input window, operand 2, single buffered']
    #allocation4 [shape = 's32[2]{0}', space=sflag, size = 0x8, scoped, tag = 'scoped memory for tpu_custom_call.1']
    #allocation5 [shape = 's32[2]{0}', space=sflag, size = 0x8, scoped, tag = 'scoped memory for tpu_custom_call.1']
    #allocation6 [shape = 'u8[512]{0}', space=vmem, size = 0x400, scoped, tag = 'input window, operand 3, single buffered']
    #allocation7 [shape = 's32[1]{0}', space=sflag, size = 0x4, scoped, tag = 'scoped memory for tpu_custom_call.1']
    #allocation8 [shape = 'u8[8192]{0}', space=vmem, size = 0x2000, scoped, tag = 'input window, operand 4, single buffered']
    #allocation9 [shape = 'u8[512]{0}', space=vmem, size = 0x400, scoped, tag = 'input window, operand 5, single buffered']
    #allocation10 [shape = 's32[1]{0}', space=sflag, size = 0x4, scoped, tag = 'scoped memory for tpu_custom_call.1']
    #allocation11 [shape = 'u8[512]{0}', space=vmem, size = 0x400, scoped, tag = 'input window, operand 7, single buffered']
    #allocation12 [shape = 'u8[1024]{0}', space=vmem, size = 0x400, scoped, tag = 'input window, operand 9']
    #allocation13 [shape = 's32[2]{0}', space=sflag, size = 0x8, scoped, tag = 'scoped memory for tpu_custom_call.1']
    #allocation14 [shape = 'u8[1024]{0}', space=vmem, size = 0x400, scoped, tag = 'input window, operand 11']
    #allocation15 [shape = 'u8[1024]{0}', space=vmem, size = 0x400, scoped, tag = 'input window, operand 13']
    #allocation16 [shape = 's32[2]{0}', space=sflag, size = 0x8, scoped, tag = 'scoped memory for tpu_custom_call.1']
    #allocation17 [shape = 'u8[1024]{0}', space=vmem, size = 0x400, scoped, tag = 'input window, operand 15']
    #allocation18 [shape = 'u8[16384]{0}', space=vmem, size = 0x4000, scoped, tag = 'input window, operand 16']
    #allocation19 [shape = 's32[2]{0}', space=sflag, size = 0x8, scoped, tag = 'scoped memory for tpu_custom_call.1']
    #allocation20 [shape = 'u8[16384]{0}', space=vmem, size = 0x4000, scoped, tag = 'input window, operand 17']
    #allocation21 [shape = 'u8[1024]{0}', space=vmem, size = 0x400, scoped, tag = 'input window, operand 18']
    #allocation22 [shape = 's32[2]{0}', space=sflag, size = 0x8, scoped, tag = 'scoped memory for tpu_custom_call.1']
    #allocation23 [shape = 'u8[16384]{0}', space=vmem, size = 0x4000, scoped, tag = 'output window, operand 0']
    %30 = vsyncpa [#allocation4], 0
    %31 = vsyncpa [#allocation7], 0
    %32 = vsyncpa [#allocation10], 0
    %33 = vsyncpa [#allocation13], 0
    %s34 = scalar_lea.sflag [#allocation13], 1
    %35 = vsyncpa %s34, 0
    %36 = vsyncpa [#allocation16], 0
    %s37 = scalar_lea.sflag [#allocation16], 1
    %38 = vsyncpa %s37, 0
    %39 = vsyncpa [#allocation19], 0
    %s40 = scalar_lea.sflag [#allocation19], 1
    %41 = vsyncpa %s40, 0
    %42 = vsyncpa [#allocation22], 0
    %s43 = scalar_lea.sflag [#allocation22], 1
    %44 = vsyncpa %s43, 0
    %45 = vsyncpa [#allocation5], 0
    %s46 = scalar_lea.sflag [#allocation5], 1
    %47 = vsyncpa %s46, 0
    loop: start=0, step=1, limit=6
    $region2: #{tpu_custom_call.1} parent=1 // loop_pre_header
      _
    $region3: #{tpu_custom_call.1} parent=1 // loop_header
      %s49 = sphi 0, %s53
      %p50 = scmp.ge.s32.totalorder %s49, 6
      %s56 = sphi 0, %s68
      %s57 = sphi 0, %s64
      %s58 = sphi 0, %s56
      %s59 = sphi 0, %s57
      %s60 = sphi 0, %s58
      %s61 = sphi 0, %s59
      %s71 = sphi 0, %s73
      %s74 = sphi 0, %s71
      %s75 = sphi 0, %s74
      %s91 = sphi 0, %s75
      %s97 = sphi 0, %s99
      %s100 = sphi 0, %s97
      %s101 = sphi 0, %s100
      %s117 = sphi 0, %s101
      %s121 = sphi 0, %s121
      %s123 = sphi 0, %s121
      %s124 = sphi 0, %s123
      %s138 = sphi 0, %s124
      %s142 = sphi 0, %s142
      %s144 = sphi 0, %s142
      %s145 = sphi 0, %s144
      %s159 = sphi 0, %s145
      %s163 = sphi 0, %s163
      %s165 = sphi 0, %s163
      %s166 = sphi 0, %s165
      %s180 = sphi 0, %s166
      %s184 = sphi 0, %s184
      %s186 = sphi 0, %s184
      %s187 = sphi 0, %s186
      %s201 = sphi 0, %s187
      %s205 = sphi 0, %s205
      %s207 = sphi 0, %s205
      %s208 = sphi 0, %s207
      %s222 = sphi 0, %s208
      %s226 = sphi 0, %s226
      %s228 = sphi 0, %s226
      %s229 = sphi 0, %s228
      %s243 = sphi 0, %s229
      %s249 = sphi 0, %s251
      %s252 = sphi 0, %s249
      %s253 = sphi 0, %s252
      %s269 = sphi 0, %s253
      %s275 = sphi 0, %s277
      %s278 = sphi 0, %s275
      %s279 = sphi 0, %s278
      %s295 = sphi 0, %s279
      %s301 = sphi 0, %s303
      %s304 = sphi 0, %s301
      %s305 = sphi 0, %s304
      %s321 = sphi 0, %s305
      %s327 = sphi 0, %s329
      %s330 = sphi 0, %s327
      %s331 = sphi 0, %s330
      %s347 = sphi 0, %s331
      %s353 = sphi 0, %s355
      %s356 = sphi 0, %s353
      %s357 = sphi 0, %s356
      %s373 = sphi 0, %s357
      %s379 = sphi 0, %s381
      %s382 = sphi 0, %s379
      %s383 = sphi 0, %s382
      %s399 = sphi 0, %s383
      %s405 = sphi 0, %s407
      %s408 = sphi 0, %s405
      %s409 = sphi 0, %s408
      %s425 = sphi 0, %s409
      %s431 = sphi 0, %s433
      %s434 = sphi 0, %s431
      %s435 = sphi 0, %s434
      %s451 = sphi 0, %s435
      %s457 = sphi 0, %s459
      %s460 = sphi 0, %s457
      %s461 = sphi 0, %s460
      %s477 = sphi 0, %s461
      %s483 = sphi 0, %s485
      %s486 = sphi 0, %s483
      %s487 = sphi 0, %s486
      %s503 = sphi 0, %s487
      %s509 = sphi 0, %s511
      %s512 = sphi 0, %s509
      %s513 = sphi 0, %s512
      %s529 = sphi 0, %s513
      %s535 = sphi 0, %s537
      %s538 = sphi 0, %s535
      %s539 = sphi 0, %s538
      %s555 = sphi 0, %s539
      %s561 = sphi 0, %s563
      %s564 = sphi 0, %s561
      %s565 = sphi 0, %s564
      %s581 = sphi 0, %s565
      %s585 = sphi 0, %s585
      %s587 = sphi 0, %s585
      %s588 = sphi 0, %s587
      %s602 = sphi 0, %s588
      %s606 = sphi 0, %s606
      %s608 = sphi 0, %s606
      %s609 = sphi 0, %s608
      %s623 = sphi 0, %s609
      %s627 = sphi 0, %s627
      %s629 = sphi 0, %s627
      %s630 = sphi 0, %s629
      %s644 = sphi 0, %s630
      %s648 = sphi 0, %s648
      %s650 = sphi 0, %s648
      %s651 = sphi 0, %s650
      %s665 = sphi 0, %s651
      %s671 = sphi 0, %s673
      %s674 = sphi 0, %s671
      %s675 = sphi 0, %s674
      %s691 = sphi 0, %s675
    $region4: #{tpu_custom_call.1} parent=1 // loop_header_branch
      %52 = sbr.rel (%p50) target = $region8
    $region5: #{tpu_custom_call.1} parent=1 // loop_body
      %s54 = ssub.s32 %s49, 1
      %s55 = ssub.s32 %s49, 2
      %s62 = sadd.s32 1, %s57
      %p63 = scmp.ge.s32.totalorder %s62, 2
      %s64 = scalar_select %p63, 0, %s62
      %s65 = sadd.s32 1, %s56
      %s66 = scalar_select %p63, %s65, %s56
      %p67 = scmp.ge.s32.totalorder %s66, 2
      %s68 = scalar_select %p67, 0, %s66
      %s69 = ssub.s32 %s56, %s68
      %p70 = scmp.eq.s32.totalorder %s69, 0
      %s72 = sadd.s32 %s71, 1
      %s73 = scalar_select %p70, %s71, %s72
      %p76 = pneg %p70
      %p77 = scmp.eq.s32.totalorder %s49, 3
      %p78 = por %p76, %p77
      %p79 = scmp.ne.s32.totalorder %s71, %s74
      %p80 = scmp.eq.s32.totalorder %s49, 0
      %p81 = por %p79, %p80
      %p82 = scmp.ne.s32.totalorder %s71, %s74
      %p83 = scmp.eq.s32.totalorder %s54, 3
      %p84 = por %p82, %p83
      %p85 = scmp.ne.s32.totalorder %s74, %s75
      %p86 = scmp.eq.s32.totalorder %s54, 0
      %p87 = por %p85, %p86
      %p88 = scmp.ne.s32.totalorder %s74, %s75
      %p89 = scmp.eq.s32.totalorder %s55, 3
      %p90 = por %p88, %p89
      %p92 = scmp.ne.s32.totalorder %s75, %s91
      %p93 = scmp.eq.s32.totalorder %s55, 0
      %p94 = por %p92, %p93
      %s95 = ssub.s32 %s56, %s68
      %p96 = scmp.eq.s32.totalorder %s95, 0
      %s98 = sadd.s32 %s97, 1
      %s99 = scalar_select %p96, %s97, %s98
      %p102 = pneg %p96
      %p103 = scmp.eq.s32.totalorder %s49, 3
      %p104 = por %p102, %p103
      %p105 = scmp.ne.s32.totalorder %s97, %s100
      %p106 = scmp.eq.s32.totalorder %s49, 0
      %p107 = por %p105, %p106
      %p108 = scmp.ne.s32.totalorder %s97, %s100
      %p109 = scmp.eq.s32.totalorder %s54, 3
      %p110 = por %p108, %p109
      %p111 = scmp.ne.s32.totalorder %s100, %s101
      %p112 = scmp.eq.s32.totalorder %s54, 0
      %p113 = por %p111, %p112
      %p114 = scmp.ne.s32.totalorder %s100, %s101
      %p115 = scmp.eq.s32.totalorder %s55, 3
      %p116 = por %p114, %p115
      %p118 = scmp.ne.s32.totalorder %s101, %s117
      %p119 = scmp.eq.s32.totalorder %s55, 0
      %p120 = por %p118, %p119
      %s122 = sadd.s32 %s121, 1
      %p125 = scmp.eq.s32.totalorder %s49, 3
      %p126 = scmp.ne.s32.totalorder %s121, %s123
      %p127 = scmp.eq.s32.totalorder %s49, 0
      %p128 = por %p126, %p127
      %p129 = scmp.ne.s32.totalorder %s121, %s123
      %p130 = scmp.eq.s32.totalorder %s54, 3
      %p131 = por %p129, %p130
      %p132 = scmp.ne.s32.totalorder %s123, %s124
      %p133 = scmp.eq.s32.totalorder %s54, 0
      %p134 = por %p132, %p133
      %p135 = scmp.ne.s32.totalorder %s123, %s124
      %p136 = scmp.eq.s32.totalorder %s55, 3
      %p137 = por %p135, %p136
      %p139 = scmp.ne.s32.totalorder %s124, %s138
      %p140 = scmp.eq.s32.totalorder %s55, 0
      %p141 = por %p139, %p140
      %s143 = sadd.s32 %s142, 1
      %p146 = scmp.eq.s32.totalorder %s49, 3
      %p147 = scmp.ne.s32.totalorder %s142, %s144
      %p148 = scmp.eq.s32.totalorder %s49, 0
      %p149 = por %p147, %p148
      %p150 = scmp.ne.s32.totalorder %s142, %s144
      %p151 = scmp.eq.s32.totalorder %s54, 3
      %p152 = por %p150, %p151
      %p153 = scmp.ne.s32.totalorder %s144, %s145
      %p154 = scmp.eq.s32.totalorder %s54, 0
      %p155 = por %p153, %p154
      %p156 = scmp.ne.s32.totalorder %s144, %s145
      %p157 = scmp.eq.s32.totalorder %s55, 3
      %p158 = por %p156, %p157
      %p160 = scmp.ne.s32.totalorder %s145, %s159
      %p161 = scmp.eq.s32.totalorder %s55, 0
      %p162 = por %p160, %p161
      %s164 = sadd.s32 %s163, 1
      %p167 = scmp.eq.s32.totalorder %s49, 3
      %p168 = scmp.ne.s32.totalorder %s163, %s165
      %p169 = scmp.eq.s32.totalorder %s49, 0
      %p170 = por %p168, %p169
      %p171 = scmp.ne.s32.totalorder %s163, %s165
      %p172 = scmp.eq.s32.totalorder %s54, 3
      %p173 = por %p171, %p172
      %p174 = scmp.ne.s32.totalorder %s165, %s166
      %p175 = scmp.eq.s32.totalorder %s54, 0
      %p176 = por %p174, %p175
      %p177 = scmp.ne.s32.totalorder %s165, %s166
      %p178 = scmp.eq.s32.totalorder %s55, 3
      %p179 = por %p177, %p178
      %p181 = scmp.ne.s32.totalorder %s166, %s180
      %p182 = scmp.eq.s32.totalorder %s55, 0
      %p183 = por %p181, %p182
      %s185 = sadd.s32 %s184, 1
      %p188 = scmp.eq.s32.totalorder %s49, 3
      %p189 = scmp.ne.s32.totalorder %s184, %s186
      %p190 = scmp.eq.s32.totalorder %s49, 0
      %p191 = por %p189, %p190
      %p192 = scmp.ne.s32.totalorder %s184, %s186
      %p193 = scmp.eq.s32.totalorder %s54, 3
      %p194 = por %p192, %p193
      %p195 = scmp.ne.s32.totalorder %s186, %s187
      %p196 = scmp.eq.s32.totalorder %s54, 0
      %p197 = por %p195, %p196
      %p198 = scmp.ne.s32.totalorder %s186, %s187
      %p199 = scmp.eq.s32.totalorder %s55, 3
      %p200 = por %p198, %p199
      %p202 = scmp.ne.s32.totalorder %s187, %s201
      %p203 = scmp.eq.s32.totalorder %s55, 0
      %p204 = por %p202, %p203
      %s206 = sadd.s32 %s205, 1
      %p209 = scmp.eq.s32.totalorder %s49, 3
      %p210 = scmp.ne.s32.totalorder %s205, %s207
      %p211 = scmp.eq.s32.totalorder %s49, 0
      %p212 = por %p210, %p211
      %p213 = scmp.ne.s32.totalorder %s205, %s207
      %p214 = scmp.eq.s32.totalorder %s54, 3
      %p215 = por %p213, %p214
      %p216 = scmp.ne.s32.totalorder %s207, %s208
      %p217 = scmp.eq.s32.totalorder %s54, 0
      %p218 = por %p216, %p217
      %p219 = scmp.ne.s32.totalorder %s207, %s208
      %p220 = scmp.eq.s32.totalorder %s55, 3
      %p221 = por %p219, %p220
      %p223 = scmp.ne.s32.totalorder %s208, %s222
      %p224 = scmp.eq.s32.totalorder %s55, 0
      %p225 = por %p223, %p224
      %s227 = sadd.s32 %s226, 1
      %p230 = scmp.eq.s32.totalorder %s49, 3
      %p231 = scmp.ne.s32.totalorder %s226, %s228
      %p232 = scmp.eq.s32.totalorder %s49, 0
      %p233 = por %p231, %p232
      %p234 = scmp.ne.s32.totalorder %s226, %s228
      %p235 = scmp.eq.s32.totalorder %s54, 3
      %p236 = por %p234, %p235
      %p237 = scmp.ne.s32.totalorder %s228, %s229
      %p238 = scmp.eq.s32.totalorder %s54, 0
      %p239 = por %p237, %p238
      %p240 = scmp.ne.s32.totalorder %s228, %s229
      %p241 = scmp.eq.s32.totalorder %s55, 3
      %p242 = por %p240, %p241
      %p244 = scmp.ne.s32.totalorder %s229, %s243
      %p245 = scmp.eq.s32.totalorder %s55, 0
      %p246 = por %p244, %p245
      %s247 = ssub.s32 %s57, %s64
      %p248 = scmp.eq.s32.totalorder %s247, 0
      %s250 = sadd.s32 %s249, 1
      %s251 = scalar_select %p248, %s249, %s250
      %p254 = pneg %p248
      %p255 = scmp.eq.s32.totalorder %s49, 3
      %p256 = por %p254, %p255
      %p257 = scmp.ne.s32.totalorder %s249, %s252
      %p258 = scmp.eq.s32.totalorder %s49, 0
      %p259 = por %p257, %p258
      %p260 = scmp.ne.s32.totalorder %s249, %s252
      %p261 = scmp.eq.s32.totalorder %s54, 3
      %p262 = por %p260, %p261
      %p263 = scmp.ne.s32.totalorder %s252, %s253
      %p264 = scmp.eq.s32.totalorder %s54, 0
      %p265 = por %p263, %p264
      %p266 = scmp.ne.s32.totalorder %s252, %s253
      %p267 = scmp.eq.s32.totalorder %s55, 3
      %p268 = por %p266, %p267
      %p270 = scmp.ne.s32.totalorder %s253, %s269
      %p271 = scmp.eq.s32.totalorder %s55, 0
      %p272 = por %p270, %p271
      %s273 = ssub.s32 %s57, %s64
      %p274 = scmp.eq.s32.totalorder %s273, 0
      %s276 = sadd.s32 %s275, 1
      %s277 = scalar_select %p274, %s275, %s276
      %p280 = pneg %p274
      %p281 = scmp.eq.s32.totalorder %s49, 3
      %p282 = por %p280, %p281
      %p283 = scmp.ne.s32.totalorder %s275, %s278
      %p284 = scmp.eq.s32.totalorder %s49, 0
      %p285 = por %p283, %p284
      %p286 = scmp.ne.s32.totalorder %s275, %s278
      %p287 = scmp.eq.s32.totalorder %s54, 3
      %p288 = por %p286, %p287
      %p289 = scmp.ne.s32.totalorder %s278, %s279
      %p290 = scmp.eq.s32.totalorder %s54, 0
      %p291 = por %p289, %p290
      %p292 = scmp.ne.s32.totalorder %s278, %s279
      %p293 = scmp.eq.s32.totalorder %s55, 3
      %p294 = por %p292, %p293
      %p296 = scmp.ne.s32.totalorder %s279, %s295
      %p297 = scmp.eq.s32.totalorder %s55, 0
      %p298 = por %p296, %p297
      %s299 = ssub.s32 %s57, %s64
      %p300 = scmp.eq.s32.totalorder %s299, 0
      %s302 = sadd.s32 %s301, 1
      %s303 = scalar_select %p300, %s301, %s302
      %p306 = pneg %p300
      %p307 = scmp.eq.s32.totalorder %s49, 3
      %p308 = por %p306, %p307
      %p309 = scmp.ne.s32.totalorder %s301, %s304
      %p310 = scmp.eq.s32.totalorder %s49, 0
      %p311 = por %p309, %p310
      %p312 = scmp.ne.s32.totalorder %s301, %s304
      %p313 = scmp.eq.s32.totalorder %s54, 3
      %p314 = por %p312, %p313
      %p315 = scmp.ne.s32.totalorder %s304, %s305
      %p316 = scmp.eq.s32.totalorder %s54, 0
      %p317 = por %p315, %p316
      %p318 = scmp.ne.s32.totalorder %s304, %s305
      %p319 = scmp.eq.s32.totalorder %s55, 3
      %p320 = por %p318, %p319
      %p322 = scmp.ne.s32.totalorder %s305, %s321
      %p323 = scmp.eq.s32.totalorder %s55, 0
      %p324 = por %p322, %p323
      %s325 = ssub.s32 %s57, %s64
      %p326 = scmp.eq.s32.totalorder %s325, 0
      %s328 = sadd.s32 %s327, 1
      %s329 = scalar_select %p326, %s327, %s328
      %p332 = pneg %p326
      %p333 = scmp.eq.s32.totalorder %s49, 3
      %p334 = por %p332, %p333
      %p335 = scmp.ne.s32.totalorder %s327, %s330
      %p336 = scmp.eq.s32.totalorder %s49, 0
      %p337 = por %p335, %p336
      %p338 = scmp.ne.s32.totalorder %s327, %s330
      %p339 = scmp.eq.s32.totalorder %s54, 3
      %p340 = por %p338, %p339
      %p341 = scmp.ne.s32.totalorder %s330, %s331
      %p342 = scmp.eq.s32.totalorder %s54, 0
      %p343 = por %p341, %p342
      %p344 = scmp.ne.s32.totalorder %s330, %s331
      %p345 = scmp.eq.s32.totalorder %s55, 3
      %p346 = por %p344, %p345
      %p348 = scmp.ne.s32.totalorder %s331, %s347
      %p349 = scmp.eq.s32.totalorder %s55, 0
      %p350 = por %p348, %p349
      %s351 = ssub.s32 %s57, %s64
      %p352 = scmp.eq.s32.totalorder %s351, 0
      %s354 = sadd.s32 %s353, 1
      %s355 = scalar_select %p352, %s353, %s354
      %p358 = pneg %p352
      %p359 = scmp.eq.s32.totalorder %s49, 3
      %p360 = por %p358, %p359
      %p361 = scmp.ne.s32.totalorder %s353, %s356
      %p362 = scmp.eq.s32.totalorder %s49, 0
      %p363 = por %p361, %p362
      %p364 = scmp.ne.s32.totalorder %s353, %s356
      %p365 = scmp.eq.s32.totalorder %s54, 3
      %p366 = por %p364, %p365
      %p367 = scmp.ne.s32.totalorder %s356, %s357
      %p368 = scmp.eq.s32.totalorder %s54, 0
      %p369 = por %p367, %p368
      %p370 = scmp.ne.s32.totalorder %s356, %s357
      %p371 = scmp.eq.s32.totalorder %s55, 3
      %p372 = por %p370, %p371
      %p374 = scmp.ne.s32.totalorder %s357, %s373
      %p375 = scmp.eq.s32.totalorder %s55, 0
      %p376 = por %p374, %p375
      %s377 = ssub.s32 %s57, %s64
      %p378 = scmp.eq.s32.totalorder %s377, 0
      %s380 = sadd.s32 %s379, 1
      %s381 = scalar_select %p378, %s379, %s380
      %p384 = pneg %p378
      %p385 = scmp.eq.s32.totalorder %s49, 3
      %p386 = por %p384, %p385
      %p387 = scmp.ne.s32.totalorder %s379, %s382
      %p388 = scmp.eq.s32.totalorder %s49, 0
      %p389 = por %p387, %p388
      %p390 = scmp.ne.s32.totalorder %s379, %s382
      %p391 = scmp.eq.s32.totalorder %s54, 3
      %p392 = por %p390, %p391
      %p393 = scmp.ne.s32.totalorder %s382, %s383
      %p394 = scmp.eq.s32.totalorder %s54, 0
      %p395 = por %p393, %p394
      %p396 = scmp.ne.s32.totalorder %s382, %s383
      %p397 = scmp.eq.s32.totalorder %s55, 3
      %p398 = por %p396, %p397
      %p400 = scmp.ne.s32.totalorder %s383, %s399
      %p401 = scmp.eq.s32.totalorder %s55, 0
      %p402 = por %p400, %p401
      %s403 = ssub.s32 %s57, %s64
      %p404 = scmp.eq.s32.totalorder %s403, 0
      %s406 = sadd.s32 %s405, 1
      %s407 = scalar_select %p404, %s405, %s406
      %p410 = pneg %p404
      %p411 = scmp.eq.s32.totalorder %s49, 3
      %p412 = por %p410, %p411
      %p413 = scmp.ne.s32.totalorder %s405, %s408
      %p414 = scmp.eq.s32.totalorder %s49, 0
      %p415 = por %p413, %p414
      %p416 = scmp.ne.s32.totalorder %s405, %s408
      %p417 = scmp.eq.s32.totalorder %s54, 3
      %p418 = por %p416, %p417
      %p419 = scmp.ne.s32.totalorder %s408, %s409
      %p420 = scmp.eq.s32.totalorder %s54, 0
      %p421 = por %p419, %p420
      %p422 = scmp.ne.s32.totalorder %s408, %s409
      %p423 = scmp.eq.s32.totalorder %s55, 3
      %p424 = por %p422, %p423
      %p426 = scmp.ne.s32.totalorder %s409, %s425
      %p427 = scmp.eq.s32.totalorder %s55, 0
      %p428 = por %p426, %p427
      %s429 = ssub.s32 %s57, %s64
      %p430 = scmp.eq.s32.totalorder %s429, 0
      %s432 = sadd.s32 %s431, 1
      %s433 = scalar_select %p430, %s431, %s432
      %p436 = pneg %p430
      %p437 = scmp.eq.s32.totalorder %s49, 3
      %p438 = por %p436, %p437
      %p439 = scmp.ne.s32.totalorder %s431, %s434
      %p440 = scmp.eq.s32.totalorder %s49, 0
      %p441 = por %p439, %p440
      %p442 = scmp.ne.s32.totalorder %s431, %s434
      %p443 = scmp.eq.s32.totalorder %s54, 3
      %p444 = por %p442, %p443
      %p445 = scmp.ne.s32.totalorder %s434, %s435
      %p446 = scmp.eq.s32.totalorder %s54, 0
      %p447 = por %p445, %p446
      %p448 = scmp.ne.s32.totalorder %s434, %s435
      %p449 = scmp.eq.s32.totalorder %s55, 3
      %p450 = por %p448, %p449
      %p452 = scmp.ne.s32.totalorder %s435, %s451
      %p453 = scmp.eq.s32.totalorder %s55, 0
      %p454 = por %p452, %p453
      %s455 = ssub.s32 %s57, %s64
      %p456 = scmp.eq.s32.totalorder %s455, 0
      %s458 = sadd.s32 %s457, 1
      %s459 = scalar_select %p456, %s457, %s458
      %p462 = pneg %p456
      %p463 = scmp.eq.s32.totalorder %s49, 3
      %p464 = por %p462, %p463
      %p465 = scmp.ne.s32.totalorder %s457, %s460
      %p466 = scmp.eq.s32.totalorder %s49, 0
      %p467 = por %p465, %p466
      %p468 = scmp.ne.s32.totalorder %s457, %s460
      %p469 = scmp.eq.s32.totalorder %s54, 3
      %p470 = por %p468, %p469
      %p471 = scmp.ne.s32.totalorder %s460, %s461
      %p472 = scmp.eq.s32.totalorder %s54, 0
      %p473 = por %p471, %p472
      %p474 = scmp.ne.s32.totalorder %s460, %s461
      %p475 = scmp.eq.s32.totalorder %s55, 3
      %p476 = por %p474, %p475
      %p478 = scmp.ne.s32.totalorder %s461, %s477
      %p479 = scmp.eq.s32.totalorder %s55, 0
      %p480 = por %p478, %p479
      %s481 = ssub.s32 %s57, %s64
      %p482 = scmp.eq.s32.totalorder %s481, 0
      %s484 = sadd.s32 %s483, 1
      %s485 = scalar_select %p482, %s483, %s484
      %p488 = pneg %p482
      %p489 = scmp.eq.s32.totalorder %s49, 3
      %p490 = por %p488, %p489
      %p491 = scmp.ne.s32.totalorder %s483, %s486
      %p492 = scmp.eq.s32.totalorder %s49, 0
      %p493 = por %p491, %p492
      %p494 = scmp.ne.s32.totalorder %s483, %s486
      %p495 = scmp.eq.s32.totalorder %s54, 3
      %p496 = por %p494, %p495
      %p497 = scmp.ne.s32.totalorder %s486, %s487
      %p498 = scmp.eq.s32.totalorder %s54, 0
      %p499 = por %p497, %p498
      %p500 = scmp.ne.s32.totalorder %s486, %s487
      %p501 = scmp.eq.s32.totalorder %s55, 3
      %p502 = por %p500, %p501
      %p504 = scmp.ne.s32.totalorder %s487, %s503
      %p505 = scmp.eq.s32.totalorder %s55, 0
      %p506 = por %p504, %p505
      %s507 = ssub.s32 %s57, %s64
      %p508 = scmp.eq.s32.totalorder %s507, 0
      %s510 = sadd.s32 %s509, 1
      %s511 = scalar_select %p508, %s509, %s510
      %p514 = pneg %p508
      %p515 = scmp.eq.s32.totalorder %s49, 3
      %p516 = por %p514, %p515
      %p517 = scmp.ne.s32.totalorder %s509, %s512
      %p518 = scmp.eq.s32.totalorder %s49, 0
      %p519 = por %p517, %p518
      %p520 = scmp.ne.s32.totalorder %s509, %s512
      %p521 = scmp.eq.s32.totalorder %s54, 3
      %p522 = por %p520, %p521
      %p523 = scmp.ne.s32.totalorder %s512, %s513
      %p524 = scmp.eq.s32.totalorder %s54, 0
      %p525 = por %p523, %p524
      %p526 = scmp.ne.s32.totalorder %s512, %s513
      %p527 = scmp.eq.s32.totalorder %s55, 3
      %p528 = por %p526, %p527
      %p530 = scmp.ne.s32.totalorder %s513, %s529
      %p531 = scmp.eq.s32.totalorder %s55, 0
      %p532 = por %p530, %p531
      %s533 = ssub.s32 %s57, %s64
      %p534 = scmp.eq.s32.totalorder %s533, 0
      %s536 = sadd.s32 %s535, 1
      %s537 = scalar_select %p534, %s535, %s536
      %p540 = pneg %p534
      %p541 = scmp.eq.s32.totalorder %s49, 3
      %p542 = por %p540, %p541
      %p543 = scmp.ne.s32.totalorder %s535, %s538
      %p544 = scmp.eq.s32.totalorder %s49, 0
      %p545 = por %p543, %p544
      %p546 = scmp.ne.s32.totalorder %s535, %s538
      %p547 = scmp.eq.s32.totalorder %s54, 3
      %p548 = por %p546, %p547
      %p549 = scmp.ne.s32.totalorder %s538, %s539
      %p550 = scmp.eq.s32.totalorder %s54, 0
      %p551 = por %p549, %p550
      %p552 = scmp.ne.s32.totalorder %s538, %s539
      %p553 = scmp.eq.s32.totalorder %s55, 3
      %p554 = por %p552, %p553
      %p556 = scmp.ne.s32.totalorder %s539, %s555
      %p557 = scmp.eq.s32.totalorder %s55, 0
      %p558 = por %p556, %p557
      %s559 = ssub.s32 %s57, %s64
      %p560 = scmp.eq.s32.totalorder %s559, 0
      %s562 = sadd.s32 %s561, 1
      %s563 = scalar_select %p560, %s561, %s562
      %p566 = pneg %p560
      %p567 = scmp.eq.s32.totalorder %s49, 3
      %p568 = por %p566, %p567
      %p569 = scmp.ne.s32.totalorder %s561, %s564
      %p570 = scmp.eq.s32.totalorder %s49, 0
      %p571 = por %p569, %p570
      %p572 = scmp.ne.s32.totalorder %s561, %s564
      %p573 = scmp.eq.s32.totalorder %s54, 3
      %p574 = por %p572, %p573
      %p575 = scmp.ne.s32.totalorder %s564, %s565
      %p576 = scmp.eq.s32.totalorder %s54, 0
      %p577 = por %p575, %p576
      %p578 = scmp.ne.s32.totalorder %s564, %s565
      %p579 = scmp.eq.s32.totalorder %s55, 3
      %p580 = por %p578, %p579
      %p582 = scmp.ne.s32.totalorder %s565, %s581
      %p583 = scmp.eq.s32.totalorder %s55, 0
      %p584 = por %p582, %p583
      %s586 = sadd.s32 %s585, 1
      %p589 = scmp.eq.s32.totalorder %s49, 3
      %p590 = scmp.ne.s32.totalorder %s585, %s587
      %p591 = scmp.eq.s32.totalorder %s49, 0
      %p592 = por %p590, %p591
      %p593 = scmp.ne.s32.totalorder %s585, %s587
      %p594 = scmp.eq.s32.totalorder %s54, 3
      %p595 = por %p593, %p594
      %p596 = scmp.ne.s32.totalorder %s587, %s588
      %p597 = scmp.eq.s32.totalorder %s54, 0
      %p598 = por %p596, %p597
      %p599 = scmp.ne.s32.totalorder %s587, %s588
      %p600 = scmp.eq.s32.totalorder %s55, 3
      %p601 = por %p599, %p600
      %p603 = scmp.ne.s32.totalorder %s588, %s602
      %p604 = scmp.eq.s32.totalorder %s55, 0
      %p605 = por %p603, %p604
      %s607 = sadd.s32 %s606, 1
      %p610 = scmp.eq.s32.totalorder %s49, 3
      %p611 = scmp.ne.s32.totalorder %s606, %s608
      %p612 = scmp.eq.s32.totalorder %s49, 0
      %p613 = por %p611, %p612
      %p614 = scmp.ne.s32.totalorder %s606, %s608
      %p615 = scmp.eq.s32.totalorder %s54, 3
      %p616 = por %p614, %p615
      %p617 = scmp.ne.s32.totalorder %s608, %s609
      %p618 = scmp.eq.s32.totalorder %s54, 0
      %p619 = por %p617, %p618
      %p620 = scmp.ne.s32.totalorder %s608, %s609
      %p621 = scmp.eq.s32.totalorder %s55, 3
      %p622 = por %p620, %p621
      %p624 = scmp.ne.s32.totalorder %s609, %s623
      %p625 = scmp.eq.s32.totalorder %s55, 0
      %p626 = por %p624, %p625
      %s628 = sadd.s32 %s627, 1
      %p631 = scmp.eq.s32.totalorder %s49, 3
      %p632 = scmp.ne.s32.totalorder %s627, %s629
      %p633 = scmp.eq.s32.totalorder %s49, 0
      %p634 = por %p632, %p633
      %p635 = scmp.ne.s32.totalorder %s627, %s629
      %p636 = scmp.eq.s32.totalorder %s54, 3
      %p637 = por %p635, %p636
      %p638 = scmp.ne.s32.totalorder %s629, %s630
      %p639 = scmp.eq.s32.totalorder %s54, 0
      %p640 = por %p638, %p639
      %p641 = scmp.ne.s32.totalorder %s629, %s630
      %p642 = scmp.eq.s32.totalorder %s55, 3
      %p643 = por %p641, %p642
      %p645 = scmp.ne.s32.totalorder %s630, %s644
      %p646 = scmp.eq.s32.totalorder %s55, 0
      %p647 = por %p645, %p646
      %s649 = sadd.s32 %s648, 1
      %p652 = scmp.eq.s32.totalorder %s49, 3
      %p653 = scmp.ne.s32.totalorder %s648, %s650
      %p654 = scmp.eq.s32.totalorder %s49, 0
      %p655 = por %p653, %p654
      %p656 = scmp.ne.s32.totalorder %s648, %s650
      %p657 = scmp.eq.s32.totalorder %s54, 3
      %p658 = por %p656, %p657
      %p659 = scmp.ne.s32.totalorder %s650, %s651
      %p660 = scmp.eq.s32.totalorder %s54, 0
      %p661 = por %p659, %p660
      %p662 = scmp.ne.s32.totalorder %s650, %s651
      %p663 = scmp.eq.s32.totalorder %s55, 3
      %p664 = por %p662, %p663
      %p666 = scmp.ne.s32.totalorder %s651, %s665
      %p667 = scmp.eq.s32.totalorder %s55, 0
      %p668 = por %p666, %p667
      %s669 = ssub.s32 %s56, %s68
      %p670 = scmp.eq.s32.totalorder %s669, 0
      %s672 = sadd.s32 %s671, 1
      %s673 = scalar_select %p670, %s671, %s672
      %p676 = pneg %p670
      %p677 = scmp.eq.s32.totalorder %s49, 3
      %p678 = por %p676, %p677
      %p679 = scmp.ne.s32.totalorder %s671, %s674
      %p680 = scmp.eq.s32.totalorder %s49, 0
      %p681 = por %p679, %p680
      %p682 = scmp.ne.s32.totalorder %s671, %s674
      %p683 = scmp.eq.s32.totalorder %s54, 3
      %p684 = por %p682, %p683
      %p685 = scmp.ne.s32.totalorder %s674, %s675
      %p686 = scmp.eq.s32.totalorder %s54, 0
      %p687 = por %p685, %p686
      %p688 = scmp.ne.s32.totalorder %s674, %s675
      %p689 = scmp.eq.s32.totalorder %s55, 3
      %p690 = por %p688, %p689
      %p692 = scmp.ne.s32.totalorder %s675, %s691
      %p693 = scmp.eq.s32.totalorder %s55, 0
      %p694 = por %p692, %p693
      %p695 = scmp.le.s32.totalorder 1, %s49
      %p696 = scmp.lt.s32.totalorder %s49, 5
      %p697 = pnand %p695, %p696
      %p698 = pneg %p697
      // Predicated region
      $region9: #{tpu_custom_call.1} parent=5 // pred_check
        _
      $region10: #{tpu_custom_call.1} parent=5 // pred_check_branch
        %700 = sbr.rel (%p697) target = $region12
      $region11: #{tpu_custom_call.1} parent=5 // pred_region
        %s701 = ssub.s32 %s49, 1
        // Predicated region
        $region13: #{tpu_custom_call.1} parent=11 // pred_check
          %p702 = pneg %p134
        $region14: #{tpu_custom_call.1} parent=11 // pred_check_branch
          %704 = sbr.rel (%p702) target = $region16
        $region15: #{tpu_custom_call.1} parent=11 // pred_region
          %s706 = ssub.s32 32, 32
          %707 = vsyncadd [#allocation4], %s706
          %s709 = sshll.u32 [#allocation3], 4
          %s710 = int_to_ptr.vmem [resolvable:$true] %s709
          %712 = dma.hbm_to_vmem [thread:$0]  %s2, 32, %s710, [#allocation4]
        $region16: #{tpu_custom_call.1} parent=11 // pred_fallthru
          _
        // Predicated region
        $region17: #{tpu_custom_call.1} parent=11 // pred_check
          %p713 = pneg %p155
        $region18: #{tpu_custom_call.1} parent=11 // pred_check_branch
          %715 = sbr.rel (%p713) target = $region20
        $region19: #{tpu_custom_call.1} parent=11 // pred_region
          %s717 = ssub.s32 16, 16
          %718 = vsyncadd [#allocation7], %s717
          %s720 = sshll.u32 [#allocation6], 4
          %s721 = int_to_ptr.vmem [resolvable:$true] %s720
          %723 = dma.hbm_to_vmem [thread:$0]  %s3, 16, %s721, [#allocation7]
        $region20: #{tpu_custom_call.1} parent=11 // pred_fallthru
          _
        // Predicated region
        $region21: #{tpu_custom_call.1} parent=11 // pred_check
          %p724 = pneg %p176
        $region22: #{tpu_custom_call.1} parent=11 // pred_check_branch
          %726 = sbr.rel (%p724) target = $region24
        $region23: #{tpu_custom_call.1} parent=11 // pred_region
          %s728 = ssub.s32 256, 256
          %729 = vsyncadd [#allocation7], %s728
          %s730 = sshll.u32 [#allocation8], 4
          %s731 = int_to_ptr.vmem [resolvable:$true] %s730
          %736 = dma.hbm_to_vmem [thread:$0]  %s4, 256, %s731, [#allocation7], 128, 128, 8
        $region24: #{tpu_custom_call.1} parent=11 // pred_fallthru
          _
        // Predicated region
        $region25: #{tpu_custom_call.1} parent=11 // pred_check
          %p737 = pneg %p197
        $region26: #{tpu_custom_call.1} parent=11 // pred_check_branch
          %739 = sbr.rel (%p737) target = $region28
        $region27: #{tpu_custom_call.1} parent=11 // pred_region
          %s741 = ssub.s32 16, 16
          %742 = vsyncadd [#allocation10], %s741
          %s744 = sshll.u32 [#allocation9], 4
          %s745 = int_to_ptr.vmem [resolvable:$true] %s744
          %747 = dma.hbm_to_vmem [thread:$0]  %s5, 16, %s745, [#allocation10]
        $region28: #{tpu_custom_call.1} parent=11 // pred_fallthru
          _
        // Predicated region
        $region29: #{tpu_custom_call.1} parent=11 // pred_check
          %p748 = pneg %p218
        $region30: #{tpu_custom_call.1} parent=11 // pred_check_branch
          %750 = sbr.rel (%p748) target = $region32
        $region31: #{tpu_custom_call.1} parent=11 // pred_region
          _
        $region32: #{tpu_custom_call.1} parent=11 // pred_fallthru
          _
        // Predicated region
        $region33: #{tpu_custom_call.1} parent=11 // pred_check
          %p751 = pneg %p239
        $region34: #{tpu_custom_call.1} parent=11 // pred_check_branch
          %753 = sbr.rel (%p751) target = $region36
        $region35: #{tpu_custom_call.1} parent=11 // pred_region
          %s755 = ssub.s32 16, 16
          %756 = vsyncadd [#allocation10], %s755
          %s758 = sshll.u32 [#allocation11], 4
          %s759 = int_to_ptr.vmem [resolvable:$true] %s758
          %761 = dma.hbm_to_vmem [thread:$0]  %s7, 16, %s759, [#allocation10]
        $region36: #{tpu_custom_call.1} parent=11 // pred_fallthru
          _
        // Predicated region
        $region37: #{tpu_custom_call.1} parent=11 // pred_check
          %p762 = pneg %p598
        $region38: #{tpu_custom_call.1} parent=11 // pred_check_branch
          %764 = sbr.rel (%p762) target = $region40
        $region39: #{tpu_custom_call.1} parent=11 // pred_region
          _
        $region40: #{tpu_custom_call.1} parent=11 // pred_fallthru
          _
        // Predicated region
        $region41: #{tpu_custom_call.1} parent=11 // pred_check
          %p765 = pneg %p619
        $region42: #{tpu_custom_call.1} parent=11 // pred_check_branch
          %767 = sbr.rel (%p765) target = $region44
        $region43: #{tpu_custom_call.1} parent=11 // pred_region
          _
        $region44: #{tpu_custom_call.1} parent=11 // pred_fallthru
          _
        // Predicated region
        $region45: #{tpu_custom_call.1} parent=11 // pred_check
          %p768 = pneg %p640
        $region46: #{tpu_custom_call.1} parent=11 // pred_check_branch
          %770 = sbr.rel (%p768) target = $region48
        $region47: #{tpu_custom_call.1} parent=11 // pred_region
          _
        $region48: #{tpu_custom_call.1} parent=11 // pred_fallthru
          _
        // Predicated region
        $region49: #{tpu_custom_call.1} parent=11 // pred_check
          %p771 = pneg %p661
        $region50: #{tpu_custom_call.1} parent=11 // pred_check_branch
          %773 = sbr.rel (%p771) target = $region52
        $region51: #{tpu_custom_call.1} parent=11 // pred_region
          _
        $region52: #{tpu_custom_call.1} parent=11 // pred_fallthru
          _
      $region12: #{tpu_custom_call.1} parent=5 // pred_fallthru
        _
      %p774 = scmp.lt.s32.totalorder %s49, 4
      // Predicated region
      $region53: #{tpu_custom_call.1} parent=5 // pred_check
        %p775 = pneg %p774
      $region54: #{tpu_custom_call.1} parent=5 // pred_check_branch
        %777 = sbr.rel (%p775) target = $region56
      $region55: #{tpu_custom_call.1} parent=5 // pred_region
        // Predicated region
        $region57: #{tpu_custom_call.1} parent=55 // pred_check
          %p778 = pneg %p81
        $region58: #{tpu_custom_call.1} parent=55 // pred_check_branch
          %780 = sbr.rel (%p778) target = $region60
        $region59: #{tpu_custom_call.1} parent=55 // pred_region
          %p781 = scmp.lt.s32.totalorder %s56, 1
          %s782 = scalar_select %p781, %s56, 1
          %s783 = smul.addr %s782, 2
          %s784 = smul.addr %s783, 8
          %s785 = scalar_lea.vmem %s0, %s784
        $region60: #{tpu_custom_call.1} parent=55 // pred_fallthru
          _
        // Predicated region
        $region61: #{tpu_custom_call.1} parent=55 // pred_check
          %p786 = pneg %p107
        $region62: #{tpu_custom_call.1} parent=55 // pred_check_branch
          %788 = sbr.rel (%p786) target = $region64
        $region63: #{tpu_custom_call.1} parent=55 // pred_region
          %p789 = scmp.lt.s32.totalorder %s56, 1
          %s790 = scalar_select %p789, %s56, 1
          %s791 = smul.addr %s790, 2
          %s792 = smul.addr %s791, 8
          %s793 = scalar_lea.vmem %s1, %s792
        $region64: #{tpu_custom_call.1} parent=55 // pred_fallthru
          _
        // Predicated region
        $region65: #{tpu_custom_call.1} parent=55 // pred_check
          %p794 = pneg %p259
        $region66: #{tpu_custom_call.1} parent=55 // pred_check_branch
          %796 = sbr.rel (%p794) target = $region68
        $region67: #{tpu_custom_call.1} parent=55 // pred_region
          %p797 = scmp.lt.s32.totalorder %s57, 1
          %s798 = scalar_select %p797, %s57, 1
          %s799 = smul.addr %s798, 4
          %s800 = smul.addr %s799, 4
          %s801 = scalar_lea.vmem %s8, %s800
        $region68: #{tpu_custom_call.1} parent=55 // pred_fallthru
          _
        // Predicated region
        $region69: #{tpu_custom_call.1} parent=55 // pred_check
          %p802 = pneg %p285
        $region70: #{tpu_custom_call.1} parent=55 // pred_check_branch
          %804 = sbr.rel (%p802) target = $region72
        $region71: #{tpu_custom_call.1} parent=55 // pred_region
          %s805 = sand.u32 %s49, 1
          %s806 = scalar_lea.sflag [#allocation13], %s805
          %s807 = sand.u32 %s275, 1
          %s808 = scalar_lea.vmem [#allocation12], %s807
          %s810 = ssub.s32 16, 16
          %811 = vsyncadd %s806, %s810
          %s812 = smul.addr %s57, 16
          %s813 = scalar_lea.hbm %s9, %s812
          %s815 = sshll.u32 %s808, 4
          %s816 = int_to_ptr.vmem [resolvable:$true] %s815
          %818 = dma.hbm_to_vmem [thread:$0]  %s813, 16, %s816, %s806
        $region72: #{tpu_custom_call.1} parent=55 // pred_fallthru
          _
        // Predicated region
        $region73: #{tpu_custom_call.1} parent=55 // pred_check
          %p819 = pneg %p311
        $region74: #{tpu_custom_call.1} parent=55 // pred_check_branch
          %821 = sbr.rel (%p819) target = $region76
        $region75: #{tpu_custom_call.1} parent=55 // pred_region
          %p822 = scmp.lt.s32.totalorder %s57, 1
          %s823 = scalar_select %p822, %s57, 1
          %s824 = smul.addr %s823, 4
          %s825 = smul.addr %s824, 4
          %s826 = scalar_lea.vmem %s10, %s825
        $region76: #{tpu_custom_call.1} parent=55 // pred_fallthru
          _
        // Predicated region
        $region77: #{tpu_custom_call.1} parent=55 // pred_check
          %p827 = pneg %p337
        $region78: #{tpu_custom_call.1} parent=55 // pred_check_branch
          %829 = sbr.rel (%p827) target = $region80
        $region79: #{tpu_custom_call.1} parent=55 // pred_region
          %s830 = sand.u32 %s49, 1
          %s831 = scalar_lea.sflag [#allocation13], %s830
          %s832 = sand.u32 %s327, 1
          %s833 = scalar_lea.vmem [#allocation14], %s832
          %s835 = ssub.s32 16, 16
          %836 = vsyncadd %s831, %s835
          %s837 = smul.addr %s57, 16
          %s838 = scalar_lea.hbm %s11, %s837
          %s840 = sshll.u32 %s833, 4
          %s841 = int_to_ptr.vmem [resolvable:$true] %s840
          %843 = dma.hbm_to_vmem [thread:$0]  %s838, 16, %s841, %s831
        $region80: #{tpu_custom_call.1} parent=55 // pred_fallthru
          _
        // Predicated region
        $region81: #{tpu_custom_call.1} parent=55 // pred_check
          %p844 = pneg %p363
        $region82: #{tpu_custom_call.1} parent=55 // pred_check_branch
          %846 = sbr.rel (%p844) target = $region84
        $region83: #{tpu_custom_call.1} parent=55 // pred_region
          %p847 = scmp.lt.s32.totalorder %s57, 1
          %s848 = scalar_select %p847, %s57, 1
          %s849 = smul.addr %s848, 4
          %s850 = smul.addr %s849, 4
          %s851 = scalar_lea.vmem %s12, %s850
        $region84: #{tpu_custom_call.1} parent=55 // pred_fallthru
          _
        // Predicated region
        $region85: #{tpu_custom_call.1} parent=55 // pred_check
          %p852 = pneg %p389
        $region86: #{tpu_custom_call.1} parent=55 // pred_check_branch
          %854 = sbr.rel (%p852) target = $region88
        $region87: #{tpu_custom_call.1} parent=55 // pred_region
          %s855 = sand.u32 %s49, 1
          %s856 = scalar_lea.sflag [#allocation16], %s855
          %s857 = sand.u32 %s379, 1
          %s858 = scalar_lea.vmem [#allocation15], %s857
          %s860 = ssub.s32 16, 16
          %861 = vsyncadd %s856, %s860
          %s862 = smul.addr %s57, 16
          %s863 = scalar_lea.hbm %s13, %s862
          %s865 = sshll.u32 %s858, 4
          %s866 = int_to_ptr.vmem [resolvable:$true] %s865
          %868 = dma.hbm_to_vmem [thread:$0]  %s863, 16, %s866, %s856
        $region88: #{tpu_custom_call.1} parent=55 // pred_fallthru
          _
        // Predicated region
        $region89: #{tpu_custom_call.1} parent=55 // pred_check
          %p869 = pneg %p415
        $region90: #{tpu_custom_call.1} parent=55 // pred_check_branch
          %871 = sbr.rel (%p869) target = $region92
        $region91: #{tpu_custom_call.1} parent=55 // pred_region
          %p872 = scmp.lt.s32.totalorder %s57, 1
          %s873 = scalar_select %p872, %s57, 1
          %s874 = smul.addr %s873, 4
          %s875 = smul.addr %s874, 4
          %s876 = scalar_lea.vmem %s14, %s875
        $region92: #{tpu_custom_call.1} parent=55 // pred_fallthru
          _
        // Predicated region
        $region93: #{tpu_custom_call.1} parent=55 // pred_check
          %p877 = pneg %p441
        $region94: #{tpu_custom_call.1} parent=55 // pred_check_branch
          %879 = sbr.rel (%p877) target = $region96
        $region95: #{tpu_custom_call.1} parent=55 // pred_region
          %s880 = sand.u32 %s49, 1
          %s881 = scalar_lea.sflag [#allocation16], %s880
          %s882 = sand.u32 %s431, 1
          %s883 = scalar_lea.vmem [#allocation17], %s882
          %s885 = ssub.s32 16, 16
          %886 = vsyncadd %s881, %s885
          %s887 = smul.addr %s57, 16
          %s888 = scalar_lea.hbm %s15, %s887
          %s890 = sshll.u32 %s883, 4
          %s891 = int_to_ptr.vmem [resolvable:$true] %s890
          %893 = dma.hbm_to_vmem [thread:$0]  %s888, 16, %s891, %s881
        $region96: #{tpu_custom_call.1} parent=55 // pred_fallthru
          _
        // Predicated region
        $region97: #{tpu_custom_call.1} parent=55 // pred_check
          %p894 = pneg %p467
        $region98: #{tpu_custom_call.1} parent=55 // pred_check_branch
          %896 = sbr.rel (%p894) target = $region100
        $region99: #{tpu_custom_call.1} parent=55 // pred_region
          %s897 = sand.u32 %s49, 1
          %s898 = scalar_lea.sflag [#allocation19], %s897
          %s899 = sand.u32 %s457, 1
          %s900 = smul.addr %s899, 16
          %s901 = scalar_lea.vmem [#allocation18], %s900
          %s903 = ssub.s32 256, 256
          %904 = vsyncadd %s898, %s903
          %s905 = smul.addr %s57, 4
          %s906 = smul.addr %s905, 64
          %s907 = scalar_lea.hbm %s16, %s906
          %s908 = sshll.u32 %s901, 4
          %s909 = int_to_ptr.vmem [resolvable:$true] %s908
          %914 = dma.hbm_to_vmem [thread:$0]  %s907, 256, %s909, %s898, 64, 64, 4
        $region100: #{tpu_custom_call.1} parent=55 // pred_fallthru
          _
        // Predicated region
        $region101: #{tpu_custom_call.1} parent=55 // pred_check
          %p915 = pneg %p493
        $region102: #{tpu_custom_call.1} parent=55 // pred_check_branch
          %917 = sbr.rel (%p915) target = $region104
        $region103: #{tpu_custom_call.1} parent=55 // pred_region
          %s918 = sand.u32 %s49, 1
          %s919 = scalar_lea.sflag [#allocation19], %s918
          %s920 = sand.u32 %s483, 1
          %s921 = smul.addr %s920, 16
          %s922 = scalar_lea.vmem [#allocation20], %s921
          %s924 = ssub.s32 256, 256
          %925 = vsyncadd %s919, %s924
          %s926 = smul.addr %s57, 4
          %s927 = smul.addr %s926, 64
          %s928 = scalar_lea.hbm %s17, %s927
          %s929 = sshll.u32 %s922, 4
          %s930 = int_to_ptr.vmem [resolvable:$true] %s929
          %935 = dma.hbm_to_vmem [thread:$0]  %s928, 256, %s930, %s919, 64, 64, 4
        $region104: #{tpu_custom_call.1} parent=55 // pred_fallthru
          _
        // Predicated region
        $region105: #{tpu_custom_call.1} parent=55 // pred_check
          %p936 = pneg %p519
        $region106: #{tpu_custom_call.1} parent=55 // pred_check_branch
          %938 = sbr.rel (%p936) target = $region108
        $region107: #{tpu_custom_call.1} parent=55 // pred_region
          %s939 = sand.u32 %s509, 1
          %s940 = scalar_lea.sflag [#allocation22], %s939
          %s941 = sand.u32 %s509, 1
          %s942 = scalar_lea.vmem [#allocation21], %s941
          %s944 = ssub.s32 16, 16
          %945 = vsyncadd %s940, %s944
          %s946 = smul.addr %s57, 16
          %s947 = scalar_lea.hbm %s18, %s946
          %s949 = sshll.u32 %s942, 4
          %s950 = int_to_ptr.vmem [resolvable:$true] %s949
          %952 = dma.hbm_to_vmem [thread:$0]  %s947, 16, %s950, %s940
        $region108: #{tpu_custom_call.1} parent=55 // pred_fallthru
          _
        // Predicated region
        $region109: #{tpu_custom_call.1} parent=55 // pred_check
          %p953 = pneg %p545
        $region110: #{tpu_custom_call.1} parent=55 // pred_check_branch
          %955 = sbr.rel (%p953) target = $region112
        $region111: #{tpu_custom_call.1} parent=55 // pred_region
          %p956 = scmp.lt.s32.totalorder %s57, 1
          %s957 = scalar_select %p956, %s57, 1
          %s958 = smul.addr %s957, 8
          %s959 = smul.addr %s958, 4
          %s960 = scalar_lea.vmem %s19, %s959
        $region112: #{tpu_custom_call.1} parent=55 // pred_fallthru
          _
        // Predicated region
        $region113: #{tpu_custom_call.1} parent=55 // pred_check
          %p961 = pneg %p571
        $region114: #{tpu_custom_call.1} parent=55 // pred_check_branch
          %963 = sbr.rel (%p961) target = $region116
        $region115: #{tpu_custom_call.1} parent=55 // pred_region
          %p964 = scmp.lt.s32.totalorder %s57, 1
          %s965 = scalar_select %p964, %s57, 1
          %s966 = scalar_lea.vmem %s20, %s965
        $region116: #{tpu_custom_call.1} parent=55 // pred_fallthru
          _
      $region56: #{tpu_custom_call.1} parent=5 // pred_fallthru
        _
      %p967 = scmp.le.s32.totalorder 1, %s49
      %p968 = scmp.lt.s32.totalorder %s49, 5
      %p969 = pnand %p967, %p968
      %p970 = pneg %p969
      // Predicated region
      $region117: #{tpu_custom_call.1} parent=5 // pred_check
        _
      $region118: #{tpu_custom_call.1} parent=5 // pred_check_branch
        %972 = sbr.rel (%p969) target = $region120
      $region119: #{tpu_custom_call.1} parent=5 // pred_region
        %s973 = ssub.s32 %s49, 1
        // Predicated region
        $region121: #{tpu_custom_call.1} parent=119 // pred_check
          %p974 = pneg %p134
        $region122: #{tpu_custom_call.1} parent=119 // pred_check_branch
          %976 = sbr.rel (%p974) target = $region124
        $region123: #{tpu_custom_call.1} parent=119 // pred_region
          %977 = dma.done [#allocation4], 32
        $region124: #{tpu_custom_call.1} parent=119 // pred_fallthru
          _
        // Predicated region
        $region125: #{tpu_custom_call.1} parent=119 // pred_check
          %p978 = pneg %p155
        $region126: #{tpu_custom_call.1} parent=119 // pred_check_branch
          %980 = sbr.rel (%p978) target = $region128
        $region127: #{tpu_custom_call.1} parent=119 // pred_region
          %981 = dma.done [#allocation7], 16
        $region128: #{tpu_custom_call.1} parent=119 // pred_fallthru
          _
        // Predicated region
        $region129: #{tpu_custom_call.1} parent=119 // pred_check
          %p982 = pneg %p176
        $region130: #{tpu_custom_call.1} parent=119 // pred_check_branch
          %984 = sbr.rel (%p982) target = $region132
        $region131: #{tpu_custom_call.1} parent=119 // pred_region
          %985 = dma.done [#allocation7], 256
        $region132: #{tpu_custom_call.1} parent=119 // pred_fallthru
          _
        // Predicated region
        $region133: #{tpu_custom_call.1} parent=119 // pred_check
          %p986 = pneg %p197
        $region134: #{tpu_custom_call.1} parent=119 // pred_check_branch
          %988 = sbr.rel (%p986) target = $region136
        $region135: #{tpu_custom_call.1} parent=119 // pred_region
          %989 = dma.done [#allocation10], 16
        $region136: #{tpu_custom_call.1} parent=119 // pred_fallthru
          _
        // Predicated region
        $region137: #{tpu_custom_call.1} parent=119 // pred_check
          %p990 = pneg %p239
        $region138: #{tpu_custom_call.1} parent=119 // pred_check_branch
          %992 = sbr.rel (%p990) target = $region140
        $region139: #{tpu_custom_call.1} parent=119 // pred_region
          %993 = dma.done [#allocation10], 16
        $region140: #{tpu_custom_call.1} parent=119 // pred_fallthru
          _
        %s994 = sand.u32 %s54, 1
        %s995 = scalar_lea.sflag [#allocation13], %s994
        %s996 = sand.u32 %s278, 1
        %s997 = scalar_lea.vmem [#allocation12], %s996
        // Predicated region
        $region141: #{tpu_custom_call.1} parent=119 // pred_check
          %p998 = pneg %p291
        $region142: #{tpu_custom_call.1} parent=119 // pred_check_branch
          %1000 = sbr.rel (%p998) target = $region144
        $region143: #{tpu_custom_call.1} parent=119 // pred_region
          %1001 = dma.done %s995, 16
        $region144: #{tpu_custom_call.1} parent=119 // pred_fallthru
          _
        %s1002 = sand.u32 %s54, 1
        %s1003 = scalar_lea.sflag [#allocation13], %s1002
        %s1004 = sand.u32 %s330, 1
        %s1005 = scalar_lea.vmem [#allocation14], %s1004
        // Predicated region
        $region145: #{tpu_custom_call.1} parent=119 // pred_check
          %p1006 = pneg %p343
        $region146: #{tpu_custom_call.1} parent=119 // pred_check_branch
          %1008 = sbr.rel (%p1006) target = $region148
        $region147: #{tpu_custom_call.1} parent=119 // pred_region
          %1009 = dma.done %s1003, 16
        $region148: #{tpu_custom_call.1} parent=119 // pred_fallthru
          _
        %s1010 = sand.u32 %s54, 1
        %s1011 = scalar_lea.sflag [#allocation16], %s1010
        %s1012 = sand.u32 %s382, 1
        %s1013 = scalar_lea.vmem [#allocation15], %s1012
        // Predicated region
        $region149: #{tpu_custom_call.1} parent=119 // pred_check
          %p1014 = pneg %p395
        $region150: #{tpu_custom_call.1} parent=119 // pred_check_branch
          %1016 = sbr.rel (%p1014) target = $region152
        $region151: #{tpu_custom_call.1} parent=119 // pred_region
          %1017 = dma.done %s1011, 16
        $region152: #{tpu_custom_call.1} parent=119 // pred_fallthru
          _
        %s1018 = sand.u32 %s54, 1
        %s1019 = scalar_lea.sflag [#allocation16], %s1018
        %s1020 = sand.u32 %s434, 1
        %s1021 = scalar_lea.vmem [#allocation17], %s1020
        // Predicated region
        $region153: #{tpu_custom_call.1} parent=119 // pred_check
          %p1022 = pneg %p447
        $region154: #{tpu_custom_call.1} parent=119 // pred_check_branch
          %1024 = sbr.rel (%p1022) target = $region156
        $region155: #{tpu_custom_call.1} parent=119 // pred_region
          %1025 = dma.done %s1019, 16
        $region156: #{tpu_custom_call.1} parent=119 // pred_fallthru
          _
        %s1026 = sand.u32 %s54, 1
        %s1027 = scalar_lea.sflag [#allocation19], %s1026
        %s1028 = sand.u32 %s460, 1
        %s1029 = smul.addr %s1028, 16
        %s1030 = scalar_lea.vmem [#allocation18], %s1029
        // Predicated region
        $region157: #{tpu_custom_call.1} parent=119 // pred_check
          %p1031 = pneg %p473
        $region158: #{tpu_custom_call.1} parent=119 // pred_check_branch
          %1033 = sbr.rel (%p1031) target = $region160
        $region159: #{tpu_custom_call.1} parent=119 // pred_region
          %1034 = dma.done %s1027, 256
        $region160: #{tpu_custom_call.1} parent=119 // pred_fallthru
          _
        %s1035 = sand.u32 %s54, 1
        %s1036 = scalar_lea.sflag [#allocation19], %s1035
        %s1037 = sand.u32 %s486, 1
        %s1038 = smul.addr %s1037, 16
        %s1039 = scalar_lea.vmem [#allocation20], %s1038
        // Predicated region
        $region161: #{tpu_custom_call.1} parent=119 // pred_check
          %p1040 = pneg %p499
        $region162: #{tpu_custom_call.1} parent=119 // pred_check_branch
          %1042 = sbr.rel (%p1040) target = $region164
        $region163: #{tpu_custom_call.1} parent=119 // pred_region
          %1043 = dma.done %s1036, 256
        $region164: #{tpu_custom_call.1} parent=119 // pred_fallthru
          _
        %s1044 = sand.u32 %s512, 1
        %s1045 = scalar_lea.sflag [#allocation22], %s1044
        %s1046 = sand.u32 %s512, 1
        %s1047 = scalar_lea.vmem [#allocation21], %s1046
        // Predicated region
        $region165: #{tpu_custom_call.1} parent=119 // pred_check
          %p1048 = pneg %p525
        $region166: #{tpu_custom_call.1} parent=119 // pred_check_branch
          %1050 = sbr.rel (%p1048) target = $region168
        $region167: #{tpu_custom_call.1} parent=119 // pred_region
          %1051 = dma.done %s1045, 16
        $region168: #{tpu_custom_call.1} parent=119 // pred_fallthru
          _
        %p1052 = scmp.lt.s32.totalorder %s58, 1
        %s1053 = scalar_select %p1052, %s58, 1
        %s1054 = smul.addr %s1053, 2
        %s1055 = smul.addr %s1054, 8
        %s1056 = scalar_lea.vmem %s0, %s1055
        %p1057 = pneg %p87
        %p1058 = pneg %p84
        %p1059 = scmp.lt.s32.totalorder %s58, 1
        %s1060 = scalar_select %p1059, %s58, 1
        %s1061 = smul.addr %s1060, 2
        %s1062 = smul.addr %s1061, 8
        %s1063 = scalar_lea.vmem %s1, %s1062
        %p1064 = pneg %p113
        %p1065 = pneg %p110
        %p1066 = pneg %p134
        %p1067 = pneg %p131
        %p1068 = pneg %p155
        %p1069 = pneg %p152
        %p1070 = pneg %p176
        %p1071 = pneg %p173
        %p1072 = pneg %p197
        %p1073 = pneg %p194
        %p1074 = pneg %p218
        %p1075 = pneg %p215
        %p1076 = pneg %p239
        %p1077 = pneg %p236
        %p1078 = scmp.lt.s32.totalorder %s59, 1
        %s1079 = scalar_select %p1078, %s59, 1
        %s1080 = smul.addr %s1079, 4
        %s1081 = smul.addr %s1080, 4
        %s1082 = scalar_lea.vmem %s8, %s1081
        %p1083 = pneg %p265
        %p1084 = pneg %p262
        %s1085 = sand.u32 %s54, 1
        %s1086 = scalar_lea.sflag [#allocation13], %s1085
        %s1087 = sand.u32 %s278, 1
        %s1088 = scalar_lea.vmem [#allocation12], %s1087
        %p1089 = pneg %p291
        %p1090 = pneg %p288
        %p1091 = scmp.lt.s32.totalorder %s59, 1
        %s1092 = scalar_select %p1091, %s59, 1
        %s1093 = smul.addr %s1092, 4
        %s1094 = smul.addr %s1093, 4
        %s1095 = scalar_lea.vmem %s10, %s1094
        %p1096 = pneg %p317
        %p1097 = pneg %p314
        %s1098 = sand.u32 %s54, 1
        %s1099 = scalar_lea.sflag [#allocation13], %s1098
        %s1100 = sand.u32 %s330, 1
        %s1101 = scalar_lea.vmem [#allocation14], %s1100
        %p1102 = pneg %p343
        %p1103 = pneg %p340
        %p1104 = scmp.lt.s32.totalorder %s59, 1
        %s1105 = scalar_select %p1104, %s59, 1
        %s1106 = smul.addr %s1105, 4
        %s1107 = smul.addr %s1106, 4
        %s1108 = scalar_lea.vmem %s12, %s1107
        %p1109 = pneg %p369
        %p1110 = pneg %p366
        %s1111 = sand.u32 %s54, 1
        %s1112 = scalar_lea.sflag [#allocation16], %s1111
        %s1113 = sand.u32 %s382, 1
        %s1114 = scalar_lea.vmem [#allocation15], %s1113
        %p1115 = pneg %p395
        %p1116 = pneg %p392
        %p1117 = scmp.lt.s32.totalorder %s59, 1
        %s1118 = scalar_select %p1117, %s59, 1
        %s1119 = smul.addr %s1118, 4
        %s1120 = smul.addr %s1119, 4
        %s1121 = scalar_lea.vmem %s14, %s1120
        %p1122 = pneg %p421
        %p1123 = pneg %p418
        %s1124 = sand.u32 %s54, 1
        %s1125 = scalar_lea.sflag [#allocation16], %s1124
        %s1126 = sand.u32 %s434, 1
        %s1127 = scalar_lea.vmem [#allocation17], %s1126
        %p1128 = pneg %p447
        %p1129 = pneg %p444
        %s1130 = sand.u32 %s54, 1
        %s1131 = scalar_lea.sflag [#allocation19], %s1130
        %s1132 = sand.u32 %s460, 1
        %s1133 = smul.addr %s1132, 16
        %s1134 = scalar_lea.vmem [#allocation18], %s1133
        %p1135 = pneg %p473
        %p1136 = pneg %p470
        %s1137 = sand.u32 %s54, 1
        %s1138 = scalar_lea.sflag [#allocation19], %s1137
        %s1139 = sand.u32 %s486, 1
        %s1140 = smul.addr %s1139, 16
        %s1141 = scalar_lea.vmem [#allocation20], %s1140
        %p1142 = pneg %p499
        %p1143 = pneg %p496
        %s1144 = sand.u32 %s512, 1
        %s1145 = scalar_lea.sflag [#allocation22], %s1144
        %s1146 = sand.u32 %s512, 1
        %s1147 = scalar_lea.vmem [#allocation21], %s1146
        %p1148 = pneg %p525
        %p1149 = pneg %p522
        %p1150 = scmp.lt.s32.totalorder %s59, 1
        %s1151 = scalar_select %p1150, %s59, 1
        %s1152 = smul.addr %s1151, 8
        %s1153 = smul.addr %s1152, 4
        %s1154 = scalar_lea.vmem %s19, %s1153
        %p1155 = pneg %p551
        %p1156 = pneg %p548
        %p1157 = scmp.lt.s32.totalorder %s59, 1
        %s1158 = scalar_select %p1157, %s59, 1
        %s1159 = scalar_lea.vmem %s20, %s1158
        %p1160 = pneg %p577
        %p1161 = pneg %p574
        %p1162 = pneg %p598
        %p1163 = pneg %p595
        %p1164 = pneg %p619
        %p1165 = pneg %p616
        %p1166 = pneg %p640
        %p1167 = pneg %p637
        %p1168 = pneg %p661
        %p1169 = pneg %p658
        %p1170 = pneg %p687
        %p1171 = pneg %p684
        %s1172 = sand.u32 %s674, 1
        %s1173 = scalar_lea.sflag [#allocation5], %s1172
        %s1174 = sand.u32 %s674, 1
        %s1175 = smul.addr %s1174, 16
        %s1176 = scalar_lea.vmem [#allocation23], %s1175
        %p1177 = scmp.lt.s32.totalorder %s58, 1
        %s1178 = scalar_select %p1177, %s58, 1
        %s1179 = smul.addr %s1178, 2
        %s1180 = smul.addr %s1179, 8
        %s1181 = scalar_lea.vmem %s0, %s1180
        %p1182 = scmp.lt.s32.totalorder %s58, 1
        %s1183 = scalar_select %p1182, %s58, 1
        %s1184 = smul.addr %s1183, 2
        %s1185 = smul.addr %s1184, 8
        %s1186 = scalar_lea.vmem %s1, %s1185
        %p1187 = scmp.lt.s32.totalorder %s59, 1
        %s1188 = scalar_select %p1187, %s59, 1
        %s1189 = smul.addr %s1188, 4
        %s1190 = smul.addr %s1189, 4
        %s1191 = scalar_lea.vmem %s8, %s1190
        %p1192 = scmp.lt.s32.totalorder %s59, 1
        %s1193 = scalar_select %p1192, %s59, 1
        %s1194 = smul.addr %s1193, 4
        %s1195 = smul.addr %s1194, 4
        %s1196 = scalar_lea.vmem %s10, %s1195
        %p1197 = scmp.lt.s32.totalorder %s59, 1
        %s1198 = scalar_select %p1197, %s59, 1
        %s1199 = smul.addr %s1198, 4
        %s1200 = smul.addr %s1199, 4
        %s1201 = scalar_lea.vmem %s12, %s1200
        %p1202 = scmp.lt.s32.totalorder %s59, 1
        %s1203 = scalar_select %p1202, %s59, 1
        %s1204 = smul.addr %s1203, 4
        %s1205 = smul.addr %s1204, 4
        %s1206 = scalar_lea.vmem %s14, %s1205
        %p1207 = scmp.lt.s32.totalorder %s59, 1
        %s1208 = scalar_select %p1207, %s59, 1
        %s1209 = smul.addr %s1208, 8
        %s1210 = smul.addr %s1209, 4
        %s1211 = scalar_lea.vmem %s19, %s1210
        %p1212 = scmp.lt.s32.totalorder %s59, 1
        %s1213 = scalar_select %p1212, %s59, 1
        %s1214 = scalar_lea.vmem %s20, %s1213
        %p1216 = scmp.eq.s32.totalorder %s59, 0
        // Predicated region
        $region169: #{tpu_custom_call.1} parent=119 // pred_check
          %p1217 = pneg %p1216
        $region170: #{tpu_custom_call.1} parent=119 // pred_check_branch
          %1219 = sbr.rel (%p1217) target = $region172
        $region171: #{tpu_custom_call.1} parent=119 // pred_region
          %v1220 = vld [vmem:[%s1181] sm:$0xff]
          %v1221 = vld [vmem:[%s1181 + $0x8] sm:$0xff]
          %v1222 = vld [vmem:[#allocation3] sm:$0x3]
          %v1223 = vld [vmem:[#allocation6] sm:$0x1]
          %v1225 = vlaneseq
          %v1226 = vshrl.u32 %v1225, 7
          %v1227 = vsub.s32 0, %v1226
          %v1228 = vrot.slane %v1223, %v1227
          %vm1230 = vcmask 15360
          %v1232 = vsel %vm1230, %v1220, 0
          %v1235 = vsel %vm1230, %v1221, 0
          %vm1237 = vcmask 1041408
          %v1239 = vsel %vm1237, %v1222, 0
          %1241 = vmatprep.subr.mxu0 0.0
          %1242 = vmatpush1.msra.mxu0 %v1239
          %1243 = vmatprep.subr.mxu0 0.0
          %1244 = vmatpush1.msra.mxu0 0.0
          %1245 = vmatprep.subr.mxu0 0.0
          %1246 = vmatpush1.msra.mxu0 0.0
          %1247 = vmatprep.subr.mxu0 0.0
          %1248 = vmatpush1.msra.mxu0 0.0
          %1249 = vmatprep.subr.mxu0 0.0
          %1250 = vmatpush1.msra.mxu0 0.0
          %1251 = vmatprep.subr.mxu0 0.0
          %1252 = vmatpush1.msra.mxu0 0.0
          %1253 = vmatprep.subr.mxu0 0.0
          %1254 = vmatpush1.msra.mxu0 0.0
          %1255 = vmatprep.subr.mxu0 0.0
          %1256 = vmatpush1.msra.mxu0 0.0
          %1257 = vmatprep.subr.mxu0 0.0
          %1258 = vmatpush1.msra.mxu0 0.0
          %1259 = vmatprep.subr.mxu0 0.0
          %1260 = vmatpush1.msra.mxu0 0.0
          %1261 = vmatprep.subr.mxu0 0.0
          %1262 = vmatpush1.msra.mxu0 0.0
          %1263 = vmatprep.subr.mxu0 0.0
          %1264 = vmatpush1.msra.mxu0 0.0
          %1265 = vmatprep.subr.mxu0 0.0
          %1266 = vmatpush1.msra.mxu0 0.0
          %1267 = vmatprep.subr.mxu0 0.0
          %1268 = vmatpush1.msra.mxu0 0.0
          %1269 = vmatprep.subr.mxu0 0.0
          %1270 = vmatpush1.msra.mxu0 0.0
          %1271 = vmatprep.subr.mxu0 0.0
          %1272 = vmatpush1.msra.mxu0 0.0
          %1273 = vmatprep.subr.mxu0 0.0
          %1274 = vmatpush1.msra.mxu0 0.0
          %1275 = vmatprep.subr.mxu0 0.0
          %1276 = vmatpush1.msra.mxu0 0.0
          %1277 = vmatprep.subr.mxu0 0.0
          %1278 = vmatpush1.msra.mxu0 0.0
          %1279 = vmatprep.subr.mxu0 0.0
          %1280 = vmatpush1.msra.mxu0 0.0
          %1281 = vmatprep.subr.mxu0 0.0
          %1282 = vmatpush1.msra.mxu0 0.0
          %1283 = vmatprep.subr.mxu0 0.0
          %1284 = vmatpush1.msra.mxu0 0.0
          %1285 = vmatprep.subr.mxu0 0.0
          %1286 = vmatpush1.msra.mxu0 0.0
          %1287 = vmatprep.subr.mxu0 0.0
          %1288 = vmatpush1.msra.mxu0 0.0
          %1289 = vmatprep.subr.mxu0 0.0
          %1290 = vmatpush1.msra.mxu0 0.0
          %1291 = vmatprep.subr.mxu0 0.0
          %1292 = vmatpush1.msra.mxu0 0.0
          %1293 = vmatprep.subr.mxu0 0.0
          %1294 = vmatpush1.msra.mxu0 0.0
          %1295 = vmatprep.subr.mxu0 0.0
          %1296 = vmatpush1.msra.mxu0 0.0
          %1297 = vmatprep.subr.mxu0 0.0
          %1298 = vmatpush1.msra.mxu0 0.0
          %1299 = vmatprep.subr.mxu0 0.0
          %1300 = vmatpush1.msra.mxu0 0.0
          %1301 = vmatprep.subr.mxu0 0.0
          %1302 = vmatpush1.msra.mxu0 0.0
          %1303 = vmatprep.subr.mxu0 0.0
          %1304 = vmatpush1.msra.mxu0 0.0
          %1305 = vmatprep.mubr.f32.mxu0 0.0
          %1306 = vmatmul.mubr.f32.gmra.mrb[0].mxu0 %v1232
          %v1307 = vpop.f32.mrb[0].mxu0
          %v1308 = vadd.f32 %v1228, %v1307
          %v1309 = vpop.f32.mrb[0].mxu0
          %1310 = vmatprep.mubr.f32.mxu0 0.0
          %1311 = vmatmul.mubr.f32.gmra.mrb[0].mxu0 %v1235
          %v1312 = vpop.f32.mrb[0].mxu0
          %v1313 = vadd.f32 %v1228, %v1312
          %v1314 = vpop.f32.mrb[0].mxu0
          %1315 = vdwg.mxu0
          %vm1316 = vcmask 130048
          %v1317 = vsel %vm1316, %v1308, 0.0
          %v1318 = vsel %vm1316, %v1313, 0.0
          %v1319 = vadd.f32 %v1317, %v1318
          %v1320 = vrot.slane %v1319, 4
          %v1321 = vadd.f32 %v1319, %v1320
          %v1322 = vrot.slane %v1321, 2
          %v1323 = vadd.f32 %v1321, %v1322
          %v1324 = vrot.slane %v1323, 1
          %v1325 = vadd.f32 %v1323, %v1324
          %v1326 = vrcp.pop 16.0
          %v1327 = vmul.f32 %v1325, %v1326
          %v1328 = vsub.f32 %v1308, %v1327
          %v1329 = vsub.f32 %v1313, %v1327
          %v1330 = vmul.f32 %v1328, %v1328
          %v1331 = vmul.f32 %v1329, %v1329
          %v1332 = vsel %vm1316, %v1330, 0.0
          %v1333 = vsel %vm1316, %v1331, 0.0
          %v1334 = vadd.f32 %v1332, %v1333
          %v1335 = vrot.slane %v1334, 4
          %v1336 = vadd.f32 %v1334, %v1335
          %v1337 = vrot.slane %v1336, 2
          %v1338 = vadd.f32 %v1336, %v1337
          %v1339 = vrot.slane %v1338, 1
          %v1340 = vadd.f32 %v1338, %v1339
          %v1341 = vmul.f32 %v1340, %v1326
          %v1342 = vadd.f32 %v1341, 1e-05
          %v1343 = vrsqrt.pop %v1342
          %v1344 = vmul.f32 %v1328, %v1343
          %v1345 = vmul.f32 %v1329, %v1343
          %v1346 = vmax.f32 %v1344, 0.0
          %v1347 = vmax.f32 %v1345, 0.0
          %v1348 = vld [vmem:[#allocation8] sm:$0xff]
          %v1349 = vld [vmem:[#allocation8 + $0x8] sm:$0xff]
          %v1350 = vld [vmem:[#allocation9] sm:$0x1]
          %v1352 = vlaneseq
          %v1353 = vshrl.u32 %v1352, 7
          %v1354 = vsub.s32 0, %v1353
          %v1355 = vrot.slane %v1350, %v1354
          %v1358 = vsel %vm1316, %v1346, 0
          %v1361 = vsel %vm1316, %v1347, 0
          %1363 = vmatprep.subr.mxu0 0.0
          %1364 = vmatpush1.msra.mxu0 %v1348
          %1365 = vmatprep.subr.mxu0 0.0
          %1366 = vmatpush1.msra.mxu0 %v1349
          %1367 = vmatprep.subr.mxu0 0.0
          %1368 = vmatpush1.msra.mxu0 0.0
          %1369 = vmatprep.subr.mxu0 0.0
          %1370 = vmatpush1.msra.mxu0 0.0
          %1371 = vmatprep.subr.mxu0 0.0
          %1372 = vmatpush1.msra.mxu0 0.0
          %1373 = vmatprep.subr.mxu0 0.0
          %1374 = vmatpush1.msra.mxu0 0.0
          %1375 = vmatprep.subr.mxu0 0.0
          %1376 = vmatpush1.msra.mxu0 0.0
          %1377 = vmatprep.subr.mxu0 0.0
          %1378 = vmatpush1.msra.mxu0 0.0
          %1379 = vmatprep.subr.mxu0 0.0
          %1380 = vmatpush1.msra.mxu0 0.0
          %1381 = vmatprep.subr.mxu0 0.0
          %1382 = vmatpush1.msra.mxu0 0.0
          %1383 = vmatprep.subr.mxu0 0.0
          %1384 = vmatpush1.msra.mxu0 0.0
          %1385 = vmatprep.subr.mxu0 0.0
          %1386 = vmatpush1.msra.mxu0 0.0
          %1387 = vmatprep.subr.mxu0 0.0
          %1388 = vmatpush1.msra.mxu0 0.0
          %1389 = vmatprep.subr.mxu0 0.0
          %1390 = vmatpush1.msra.mxu0 0.0
          %1391 = vmatprep.subr.mxu0 0.0
          %1392 = vmatpush1.msra.mxu0 0.0
          %1393 = vmatprep.subr.mxu0 0.0
          %1394 = vmatpush1.msra.mxu0 0.0
          %1395 = vmatprep.subr.mxu0 0.0
          %1396 = vmatpush1.msra.mxu0 0.0
          %1397 = vmatprep.subr.mxu0 0.0
          %1398 = vmatpush1.msra.mxu0 0.0
          %1399 = vmatprep.subr.mxu0 0.0
          %1400 = vmatpush1.msra.mxu0 0.0
          %1401 = vmatprep.subr.mxu0 0.0
          %1402 = vmatpush1.msra.mxu0 0.0
          %1403 = vmatprep.subr.mxu0 0.0
          %1404 = vmatpush1.msra.mxu0 0.0
          %1405 = vmatprep.subr.mxu0 0.0
          %1406 = vmatpush1.msra.mxu0 0.0
          %1407 = vmatprep.subr.mxu0 0.0
          %1408 = vmatpush1.msra.mxu0 0.0
          %1409 = vmatprep.subr.mxu0 0.0
          %1410 = vmatpush1.msra.mxu0 0.0
          %1411 = vmatprep.subr.mxu0 0.0
          %1412 = vmatpush1.msra.mxu0 0.0
          %1413 = vmatprep.subr.mxu0 0.0
          %1414 = vmatpush1.msra.mxu0 0.0
          %1415 = vmatprep.subr.mxu0 0.0
          %1416 = vmatpush1.msra.mxu0 0.0
          %1417 = vmatprep.subr.mxu0 0.0
          %1418 = vmatpush1.msra.mxu0 0.0
          %1419 = vmatprep.subr.mxu0 0.0
          %1420 = vmatpush1.msra.mxu0 0.0
          %1421 = vmatprep.subr.mxu0 0.0
          %1422 = vmatpush1.msra.mxu0 0.0
          %1423 = vmatprep.subr.mxu0 0.0
          %1424 = vmatpush1.msra.mxu0 0.0
          %1425 = vmatprep.subr.mxu0 0.0
          %1426 = vmatpush1.msra.mxu0 0.0
          %1427 = vmatprep.mubr.f32.mxu0 0.0
          %1428 = vmatmul.mubr.f32.gmra.mrb[0].mxu0 %v1358
          %v1429 = vpop.f32.mrb[0].mxu0
          %v1430 = vadd.f32 %v1355, %v1429
          %v1431 = vpop.f32.mrb[0].mxu0
          %1432 = vmatprep.mubr.f32.mxu0 0.0
          %1433 = vmatmul.mubr.f32.gmra.mrb[0].mxu0 %v1361
          %v1434 = vpop.f32.mrb[0].mxu0
          %v1435 = vadd.f32 %v1355, %v1434
          %v1436 = vpop.f32.mrb[0].mxu0
          %1437 = vdwg.mxu0
          %vm1438 = vcmask 261120
          %v1439 = vsel %vm1438, %v1430, 0.0
          %v1440 = vsel %vm1438, %v1435, 0.0
          %v1441 = vadd.f32 %v1439, %v1440
          %v1442 = vrot.slane %v1441, 4
          %v1443 = vadd.f32 %v1441, %v1442
          %v1444 = vrot.slane %v1443, 2
          %v1445 = vadd.f32 %v1443, %v1444
          %v1446 = vrot.slane %v1445, 1
          %v1447 = vadd.f32 %v1445, %v1446
          %v1448 = vmul.f32 %v1447, %v1326
          %v1449 = vsub.f32 %v1430, %v1448
          %v1450 = vsub.f32 %v1435, %v1448
          %v1451 = vmul.f32 %v1449, %v1449
          %v1452 = vmul.f32 %v1450, %v1450
          %v1453 = vsel %vm1438, %v1451, 0.0
          %v1454 = vsel %vm1438, %v1452, 0.0
          %v1455 = vadd.f32 %v1453, %v1454
          %v1456 = vrot.slane %v1455, 4
          %v1457 = vadd.f32 %v1455, %v1456
          %v1458 = vrot.slane %v1457, 2
          %v1459 = vadd.f32 %v1457, %v1458
          %v1460 = vrot.slane %v1459, 1
          %v1461 = vadd.f32 %v1459, %v1460
          %v1462 = vmul.f32 %v1461, %v1326
          %v1463 = vadd.f32 %v1462, 1e-05
          %v1464 = vrsqrt.pop %v1463
          %v1465 = vmul.f32 %v1449, %v1464
          %v1466 = vmul.f32 %v1450, %v1464
          %v1467 = vmax.f32 %v1465, 0.0
          %v1468 = vmax.f32 %v1466, 0.0
          %v1469 = vld [vmem:[%s6] sm:$0xff]
          %v1470 = vld [vmem:[%s6 + $0x8] sm:$0xff]
          %v1471 = vld [vmem:[%s6 + $0x10] sm:$0xff]
          %v1472 = vld [vmem:[%s6 + $0x18] sm:$0xff]
          %v1473 = vld [vmem:[#allocation11] sm:$0x1]
          %v1475 = vlaneseq
          %v1476 = vshrl.u32 %v1475, 7
          %v1477 = vsub.s32 0, %v1476
          %v1478 = vrot.slane %v1473, %v1477
          %v1481 = vsel %vm1438, %v1467, 0
          %v1484 = vsel %vm1438, %v1468, 0
          %1486 = vmatprep.subr.mxu0 0.0
          %1487 = vmatpush1.msra.mxu0 %v1469
          %1488 = vmatprep.subr.mxu0 0.0
          %1489 = vmatpush1.msra.mxu0 %v1470
          %1490 = vmatprep.subr.mxu0 0.0
          %1491 = vmatpush1.msra.mxu0 %v1471
          %1492 = vmatprep.subr.mxu0 0.0
          %1493 = vmatpush1.msra.mxu0 %v1472
          %1494 = vmatprep.subr.mxu0 0.0
          %1495 = vmatpush1.msra.mxu0 0.0
          %1496 = vmatprep.subr.mxu0 0.0
          %1497 = vmatpush1.msra.mxu0 0.0
          %1498 = vmatprep.subr.mxu0 0.0
          %1499 = vmatpush1.msra.mxu0 0.0
          %1500 = vmatprep.subr.mxu0 0.0
          %1501 = vmatpush1.msra.mxu0 0.0
          %1502 = vmatprep.subr.mxu0 0.0
          %1503 = vmatpush1.msra.mxu0 0.0
          %1504 = vmatprep.subr.mxu0 0.0
          %1505 = vmatpush1.msra.mxu0 0.0
          %1506 = vmatprep.subr.mxu0 0.0
          %1507 = vmatpush1.msra.mxu0 0.0
          %1508 = vmatprep.subr.mxu0 0.0
          %1509 = vmatpush1.msra.mxu0 0.0
          %1510 = vmatprep.subr.mxu0 0.0
          %1511 = vmatpush1.msra.mxu0 0.0
          %1512 = vmatprep.subr.mxu0 0.0
          %1513 = vmatpush1.msra.mxu0 0.0
          %1514 = vmatprep.subr.mxu0 0.0
          %1515 = vmatpush1.msra.mxu0 0.0
          %1516 = vmatprep.subr.mxu0 0.0
          %1517 = vmatpush1.msra.mxu0 0.0
          %1518 = vmatprep.subr.mxu0 0.0
          %1519 = vmatpush1.msra.mxu0 0.0
          %1520 = vmatprep.subr.mxu0 0.0
          %1521 = vmatpush1.msra.mxu0 0.0
          %1522 = vmatprep.subr.mxu0 0.0
          %1523 = vmatpush1.msra.mxu0 0.0
          %1524 = vmatprep.subr.mxu0 0.0
          %1525 = vmatpush1.msra.mxu0 0.0
          %1526 = vmatprep.subr.mxu0 0.0
          %1527 = vmatpush1.msra.mxu0 0.0
          %1528 = vmatprep.subr.mxu0 0.0
          %1529 = vmatpush1.msra.mxu0 0.0
          %1530 = vmatprep.subr.mxu0 0.0
          %1531 = vmatpush1.msra.mxu0 0.0
          %1532 = vmatprep.subr.mxu0 0.0
          %1533 = vmatpush1.msra.mxu0 0.0
          %1534 = vmatprep.subr.mxu0 0.0
          %1535 = vmatpush1.msra.mxu0 0.0
          %1536 = vmatprep.subr.mxu0 0.0
          %1537 = vmatpush1.msra.mxu0 0.0
          %1538 = vmatprep.subr.mxu0 0.0
          %1539 = vmatpush1.msra.mxu0 0.0
          %1540 = vmatprep.subr.mxu0 0.0
          %1541 = vmatpush1.msra.mxu0 0.0
          %1542 = vmatprep.subr.mxu0 0.0
          %1543 = vmatpush1.msra.mxu0 0.0
          %1544 = vmatprep.subr.mxu0 0.0
          %1545 = vmatpush1.msra.mxu0 0.0
          %1546 = vmatprep.subr.mxu0 0.0
          %1547 = vmatpush1.msra.mxu0 0.0
          %1548 = vmatprep.subr.mxu0 0.0
          %1549 = vmatpush1.msra.mxu0 0.0
          %1550 = vmatprep.mubr.f32.mxu0 0.0
          %1551 = vmatmul.mubr.f32.gmra.mrb[0].mxu0 %v1481
          %v1552 = vpop.f32.mrb[0].mxu0
          %v1553 = vadd.f32 %v1478, %v1552
          %v1554 = vpop.f32.mrb[0].mxu0
          %1555 = vmatprep.mubr.f32.mxu0 0.0
          %1556 = vmatmul.mubr.f32.gmra.mrb[0].mxu0 %v1484
          %v1557 = vpop.f32.mrb[0].mxu0
          %v1558 = vadd.f32 %v1478, %v1557
          %v1559 = vpop.f32.mrb[0].mxu0
          %1560 = vdwg.mxu0
          %v1561 = vld [vmem:[%s1186] sm:$0xff]
          %v1562 = vld [vmem:[%s1186 + $0x8] sm:$0xff]
          %v1563 = vadd.f32 %v1561, %v1553
          %v1564 = vadd.f32 %v1562, %v1558
          %1565 = vst.msk [vmem:[#allocation2] sm:$0xff] %vm1438, %v1563
          %1566 = vst.msk [vmem:[#allocation2 + $0x8] sm:$0xff] %vm1438, %v1564
        $region172: #{tpu_custom_call.1} parent=119 // pred_fallthru
          _
        %v1567 = vld [vmem:[#allocation2] sm:$0xff]
        %v1568 = vld [vmem:[#allocation2 + $0x8] sm:$0xff]
        %v1569 = vpack.c.bf16 %v1568, %v1567
        %v1570 = vld [vmem:[%s1191] sm:$0xf]
        %v1571 = vld [vmem:[%s1191 + $0x4] sm:$0xf]
        %v1572 = vld [vmem:[%s1191 + $0x8] sm:$0xf]
        %v1573 = vld [vmem:[%s1191 + $0xc] sm:$0xf]
        %v1574 = vld [vmem:[%s997] sm:$0x1]
        %v1576 = vlaneseq
        %v1577 = vshrl.u32 %v1576, 7
        %v1578 = vsub.s32 0, %v1577
        %v1579 = vrot.slane %v1574, %v1578
        %v1585 = vunpack.c.l.b16 %v1570
        %v1586 = vunpack.c.l.b16 %v1571
        %v1587 = vunpack.c.l.b16 %v1572
        %v1588 = vunpack.c.l.b16 %v1573
        %v1589 = vpack.c.b16 %v1586, %v1585
        %v1590 = vpack.c.b16 %v1588, %v1587
        %vm1593 = vcmask 261120
        %v1595 = vsel %vm1593, %v1569, 0
        %1597 = vmatprep.subr.bf16.mxu0 0
        %1598 = vmatpush1.bf16.msra.mxu0 %v1589
        %1599 = vmatprep.subr.bf16.mxu0 0
        %1600 = vmatpush1.bf16.msra.mxu0 %v1590
        %1601 = vmatprep.subr.bf16.mxu0 0
        %1602 = vmatpush1.bf16.msra.mxu0 0
        %1603 = vmatprep.subr.bf16.mxu0 0
        %1604 = vmatpush1.bf16.msra.mxu0 0
        %1605 = vmatprep.subr.bf16.mxu0 0
        %1606 = vmatpush1.bf16.msra.mxu0 0
        %1607 = vmatprep.subr.bf16.mxu0 0
        %1608 = vmatpush1.bf16.msra.mxu0 0
        %1609 = vmatprep.subr.bf16.mxu0 0
        %1610 = vmatpush1.bf16.msra.mxu0 0
        %1611 = vmatprep.subr.bf16.mxu0 0
        %1612 = vmatpush1.bf16.msra.mxu0 0
        %1613 = vmatprep.subr.bf16.mxu0 0
        %1614 = vmatpush1.bf16.msra.mxu0 0
        %1615 = vmatprep.subr.bf16.mxu0 0
        %1616 = vmatpush1.bf16.msra.mxu0 0
        %1617 = vmatprep.subr.bf16.mxu0 0
        %1618 = vmatpush1.bf16.msra.mxu0 0
        %1619 = vmatprep.subr.bf16.mxu0 0
        %1620 = vmatpush1.bf16.msra.mxu0 0
        %1621 = vmatprep.subr.bf16.mxu0 0
        %1622 = vmatpush1.bf16.msra.mxu0 0
        %1623 = vmatprep.subr.bf16.mxu0 0
        %1624 = vmatpush1.bf16.msra.mxu0 0
        %1625 = vmatprep.subr.bf16.mxu0 0
        %1626 = vmatpush1.bf16.msra.mxu0 0
        %1627 = vmatprep.subr.bf16.mxu0 0
        %1628 = vmatpush1.bf16.msra.mxu0 0
        %1629 = vmatprep.mubr.bf16.mxu0 0
        %1630 = vmatmul.mubr.bf16.gmra.mrb[0].mxu0 %v1595
        %v1631 = vpop.f32.mrb[0].mxu0
        %v1632 = vadd.f32 %v1579, %v1631
        %v1633 = vpop.f32.mrb[0].mxu0
        %v1634 = vpop.f32.mrb[0].mxu0
        %v1635 = vadd.f32 %v1579, %v1634
        %v1636 = vpop.f32.mrb[0].mxu0
        %1637 = vdwg.mxu0
        %v1638 = vld [vmem:[%s1196] sm:$0xf]
        %v1639 = vld [vmem:[%s1196 + $0x4] sm:$0xf]
        %v1640 = vld [vmem:[%s1196 + $0x8] sm:$0xf]
        %v1641 = vld [vmem:[%s1196 + $0xc] sm:$0xf]
        %v1642 = vld [vmem:[%s1005] sm:$0x1]
        %v1644 = vlaneseq
        %v1645 = vshrl.u32 %v1644, 7
        %v1646 = vsub.s32 0, %v1645
        %v1647 = vrot.slane %v1642, %v1646
        %v1653 = vunpack.c.l.b16 %v1638
        %v1654 = vunpack.c.l.b16 %v1639
        %v1655 = vunpack.c.l.b16 %v1640
        %v1656 = vunpack.c.l.b16 %v1641
        %v1657 = vpack.c.b16 %v1654, %v1653
        %v1658 = vpack.c.b16 %v1656, %v1655
        %1661 = vmatprep.subr.bf16.mxu0 0
        %1662 = vmatpush1.bf16.msra.mxu0 %v1657
        %1663 = vmatprep.subr.bf16.mxu0 0
        %1664 = vmatpush1.bf16.msra.mxu0 %v1658
        %1665 = vmatprep.subr.bf16.mxu0 0
        %1666 = vmatpush1.bf16.msra.mxu0 0
        %1667 = vmatprep.subr.bf16.mxu0 0
        %1668 = vmatpush1.bf16.msra.mxu0 0
        %1669 = vmatprep.subr.bf16.mxu0 0
        %1670 = vmatpush1.bf16.msra.mxu0 0
        %1671 = vmatprep.subr.bf16.mxu0 0
        %1672 = vmatpush1.bf16.msra.mxu0 0
        %1673 = vmatprep.subr.bf16.mxu0 0
        %1674 = vmatpush1.bf16.msra.mxu0 0
        %1675 = vmatprep.subr.bf16.mxu0 0
        %1676 = vmatpush1.bf16.msra.mxu0 0
        %1677 = vmatprep.subr.bf16.mxu0 0
        %1678 = vmatpush1.bf16.msra.mxu0 0
        %1679 = vmatprep.subr.bf16.mxu0 0
        %1680 = vmatpush1.bf16.msra.mxu0 0
        %1681 = vmatprep.subr.bf16.mxu0 0
        %1682 = vmatpush1.bf16.msra.mxu0 0
        %1683 = vmatprep.subr.bf16.mxu0 0
        %1684 = vmatpush1.bf16.msra.mxu0 0
        %1685 = vmatprep.subr.bf16.mxu0 0
        %1686 = vmatpush1.bf16.msra.mxu0 0
        %1687 = vmatprep.subr.bf16.mxu0 0
        %1688 = vmatpush1.bf16.msra.mxu0 0
        %1689 = vmatprep.subr.bf16.mxu0 0
        %1690 = vmatpush1.bf16.msra.mxu0 0
        %1691 = vmatprep.subr.bf16.mxu0 0
        %1692 = vmatpush1.bf16.msra.mxu0 0
        %1693 = vmatprep.mubr.bf16.mxu0 0
        %1694 = vmatmul.mubr.bf16.gmra.mrb[0].mxu0 %v1595
        %v1695 = vpop.f32.mrb[0].mxu0
        %v1696 = vadd.f32 %v1647, %v1695
        %v1697 = vpop.f32.mrb[0].mxu0
        %v1698 = vpop.f32.mrb[0].mxu0
        %v1699 = vadd.f32 %v1647, %v1698
        %v1700 = vpop.f32.mrb[0].mxu0
        %1701 = vdwg.mxu0
        %v1702 = vld [vmem:[%s1201] sm:$0xf]
        %v1703 = vld [vmem:[%s1201 + $0x4] sm:$0xf]
        %v1704 = vld [vmem:[%s1201 + $0x8] sm:$0xf]
        %v1705 = vld [vmem:[%s1201 + $0xc] sm:$0xf]
        %v1706 = vld [vmem:[%s1013] sm:$0x1]
        %v1708 = vlaneseq
        %v1709 = vshrl.u32 %v1708, 7
        %v1710 = vsub.s32 0, %v1709
        %v1711 = vrot.slane %v1706, %v1710
        %v1717 = vunpack.c.l.b16 %v1702
        %v1718 = vunpack.c.l.b16 %v1703
        %v1719 = vunpack.c.l.b16 %v1704
        %v1720 = vunpack.c.l.b16 %v1705
        %v1721 = vpack.c.b16 %v1718, %v1717
        %v1722 = vpack.c.b16 %v1720, %v1719
        %1725 = vmatprep.subr.bf16.mxu0 0
        %1726 = vmatpush1.bf16.msra.mxu0 %v1721
        %1727 = vmatprep.subr.bf16.mxu0 0
        %1728 = vmatpush1.bf16.msra.mxu0 %v1722
        %1729 = vmatprep.subr.bf16.mxu0 0
        %1730 = vmatpush1.bf16.msra.mxu0 0
        %1731 = vmatprep.subr.bf16.mxu0 0
        %1732 = vmatpush1.bf16.msra.mxu0 0
        %1733 = vmatprep.subr.bf16.mxu0 0
        %1734 = vmatpush1.bf16.msra.mxu0 0
        %1735 = vmatprep.subr.bf16.mxu0 0
        %1736 = vmatpush1.bf16.msra.mxu0 0
        %1737 = vmatprep.subr.bf16.mxu0 0
        %1738 = vmatpush1.bf16.msra.mxu0 0
        %1739 = vmatprep.subr.bf16.mxu0 0
        %1740 = vmatpush1.bf16.msra.mxu0 0
        %1741 = vmatprep.subr.bf16.mxu0 0
        %1742 = vmatpush1.bf16.msra.mxu0 0
        %1743 = vmatprep.subr.bf16.mxu0 0
        %1744 = vmatpush1.bf16.msra.mxu0 0
        %1745 = vmatprep.subr.bf16.mxu0 0
        %1746 = vmatpush1.bf16.msra.mxu0 0
        %1747 = vmatprep.subr.bf16.mxu0 0
        %1748 = vmatpush1.bf16.msra.mxu0 0
        %1749 = vmatprep.subr.bf16.mxu0 0
        %1750 = vmatpush1.bf16.msra.mxu0 0
        %1751 = vmatprep.subr.bf16.mxu0 0
        %1752 = vmatpush1.bf16.msra.mxu0 0
        %1753 = vmatprep.subr.bf16.mxu0 0
        %1754 = vmatpush1.bf16.msra.mxu0 0
        %1755 = vmatprep.subr.bf16.mxu0 0
        %1756 = vmatpush1.bf16.msra.mxu0 0
        %1757 = vmatprep.mubr.bf16.mxu0 0
        %1758 = vmatmul.mubr.bf16.gmra.mrb[0].mxu0 %v1595
        %v1759 = vpop.f32.mrb[0].mxu0
        %v1760 = vadd.f32 %v1711, %v1759
        %v1761 = vpop.f32.mrb[0].mxu0
        %v1762 = vpop.f32.mrb[0].mxu0
        %v1763 = vadd.f32 %v1711, %v1762
        %v1764 = vpop.f32.mrb[0].mxu0
        %1765 = vdwg.mxu0
        %v1766 = vmul.f32 %v1632, 0.35355338
        %v1767 = vmul.f32 %v1635, 0.35355338
        %v1768 = vpack.c.bf16 %v1767, %v1766
        %v1769 = vpack.c.bf16 %v1699, %v1696
        %v1770 = vpack.c.bf16 %v1763, %v1760
        %vm1771 = vcmask 64512
        %v1773 = vsel %vm1771, %v1768, 0
        %v1776 = vsel %vm1771, %v1769, 0
        %1778 = vmatprep.subr.bf16.mxu0 0
        %1779 = vmatpush1.bf16.xpose.msra.mxu0 %v1776
        %1780 = vmatprep.subr.bf16.mxu0 0
        %1781 = vmatpush1.bf16.xpose.msra.mxu0 0
        %1782 = vmatprep.subr.bf16.mxu0 0
        %1783 = vmatpush1.bf16.xpose.msra.mxu0 0
        %1784 = vmatprep.subr.bf16.mxu0 0
        %1785 = vmatpush1.bf16.xpose.msra.mxu0 0
        %1786 = vmatprep.subr.bf16.mxu0 0
        %1787 = vmatpush1.bf16.xpose.msra.mxu0 0
        %1788 = vmatprep.subr.bf16.mxu0 0
        %1789 = vmatpush1.bf16.xpose.msra.mxu0 0
        %1790 = vmatprep.subr.bf16.mxu0 0
        %1791 = vmatpush1.bf16.xpose.msra.mxu0 0
        %1792 = vmatprep.subr.bf16.mxu0 0
        %1793 = vmatpush1.bf16.xpose.msra.mxu0 0
        %1794 = vmatprep.subr.bf16.mxu0 0
        %1795 = vmatpush1.bf16.xpose.msra.mxu0 0
        %1796 = vmatprep.subr.bf16.mxu0 0
        %1797 = vmatpush1.bf16.xpose.msra.mxu0 0
        %1798 = vmatprep.subr.bf16.mxu0 0
        %1799 = vmatpush1.bf16.xpose.msra.mxu0 0
        %1800 = vmatprep.subr.bf16.mxu0 0
        %1801 = vmatpush1.bf16.xpose.msra.mxu0 0
        %1802 = vmatprep.subr.bf16.mxu0 0
        %1803 = vmatpush1.bf16.xpose.msra.mxu0 0
        %1804 = vmatprep.subr.bf16.mxu0 0
        %1805 = vmatpush1.bf16.xpose.msra.mxu0 0
        %1806 = vmatprep.subr.bf16.mxu0 0
        %1807 = vmatpush1.bf16.xpose.msra.mxu0 0
        %1808 = vmatprep.subr.bf16.mxu0 0
        %1809 = vmatpush1.bf16.xpose.msra.mxu0 0
        %1810 = vmatprep.mubr.bf16.mxu0 0
        %1811 = vmatmul.mubr.bf16.gmra.mrb[0].mxu0 %v1773
        %v1812 = vpop.f32.mrb[0].mxu0
        %v1813 = vadd.f32 0.0, %v1812
        %v1814 = vpop.f32.mrb[0].mxu0
        %v1815 = vpop.f32.mrb[0].mxu0
        %v1816 = vadd.f32 0.0, %v1815
        %v1817 = vpop.f32.mrb[0].mxu0
        %1818 = vdwg.mxu0
        %vm1819 = vcmask 130048
        %v1820 = vsel %vm1819, %v1813, -inf
        %1821 = vmax.xlane.f32.xlu0 %v1820
        %v1822 = vpop.xlane.xlu0 %1821
        %v1823 = vsel %vm1819, %v1816, -inf
        %1824 = vmax.xlane.f32.xlu0 %v1823
        %v1825 = vpop.xlane.xlu0 %1824
        %v1826 = vsub.f32 %v1813, %v1822
        %v1827 = vsub.f32 %v1816, %v1825
        %v1828 = vmul.f32 %v1826, 1.442695
        %v1829 = vpow.pop %v1828
        %v1830 = vmul.f32 %v1827, 1.442695
        %v1831 = vpow.pop %v1830
        %v1832 = vsel %vm1819, %v1829, 0.0
        %1833 = vadd.xlane.f32.xlu0 %v1832
        %v1834 = vpop.xlane.xlu0 %1833
        %v1835 = vsel %vm1819, %v1831, 0.0
        %1836 = vadd.xlane.f32.xlu0 %v1835
        %v1837 = vpop.xlane.xlu0 %1836
        %v1838 = vrcp.pop %v1834
        %v1839 = vrcp.pop %v1837
        %v1840 = vmul.f32 %v1829, %v1838
        %v1841 = vmul.f32 %v1831, %v1839
        %v1842 = vpack.c.bf16 %v1841, %v1840
        %v1844 = vsel %vm1819, %v1842, 0
        %1846 = vmatprep.subr.bf16.mxu0 0
        %1847 = vmatpush1.bf16.msra.mxu0 %v1770
        %1848 = vmatprep.subr.bf16.mxu0 0
        %1849 = vmatpush1.bf16.msra.mxu0 0
        %1850 = vmatprep.subr.bf16.mxu0 0
        %1851 = vmatpush1.bf16.msra.mxu0 0
        %1852 = vmatprep.subr.bf16.mxu0 0
        %1853 = vmatpush1.bf16.msra.mxu0 0
        %1854 = vmatprep.subr.bf16.mxu0 0
        %1855 = vmatpush1.bf16.msra.mxu0 0
        %1856 = vmatprep.subr.bf16.mxu0 0
        %1857 = vmatpush1.bf16.msra.mxu0 0
        %1858 = vmatprep.subr.bf16.mxu0 0
        %1859 = vmatpush1.bf16.msra.mxu0 0
        %1860 = vmatprep.subr.bf16.mxu0 0
        %1861 = vmatpush1.bf16.msra.mxu0 0
        %1862 = vmatprep.subr.bf16.mxu0 0
        %1863 = vmatpush1.bf16.msra.mxu0 0
        %1864 = vmatprep.subr.bf16.mxu0 0
        %1865 = vmatpush1.bf16.msra.mxu0 0
        %1866 = vmatprep.subr.bf16.mxu0 0
        %1867 = vmatpush1.bf16.msra.mxu0 0
        %1868 = vmatprep.subr.bf16.mxu0 0
        %1869 = vmatpush1.bf16.msra.mxu0 0
        %1870 = vmatprep.subr.bf16.mxu0 0
        %1871 = vmatpush1.bf16.msra.mxu0 0
        %1872 = vmatprep.subr.bf16.mxu0 0
        %1873 = vmatpush1.bf16.msra.mxu0 0
        %1874 = vmatprep.subr.bf16.mxu0 0
        %1875 = vmatpush1.bf16.msra.mxu0 0
        %1876 = vmatprep.subr.bf16.mxu0 0
        %1877 = vmatpush1.bf16.msra.mxu0 0
        %1878 = vmatprep.mubr.bf16.mxu0 0
        %1879 = vmatmul.mubr.bf16.gmra.mrb[0].mxu0 %v1844
        %v1880 = vpop.f32.mrb[0].mxu0
        %v1881 = vadd.f32 0.0, %v1880
        %v1882 = vpop.f32.mrb[0].mxu0
        %v1883 = vpop.f32.mrb[0].mxu0
        %v1884 = vadd.f32 0.0, %v1883
        %v1885 = vpop.f32.mrb[0].mxu0
        %1886 = vdwg.mxu0
        %v1887 = vpack.c.bf16 %v1884, %v1881
        %v1888 = vld [vmem:[%s1206] sm:$0xf]
        %1890 = vrot.lane.b32.xlu0 %v1768, 120
        %v1891 = vpop.permute.xlu0 %1890
        %1893 = vrot.lane.b32.xlu0 %v1769, 120
        %v1894 = vpop.permute.xlu0 %1893
        %v1896 = vsel %vm1771, %v1891, 0
        %v1899 = vsel %vm1771, %v1894, 0
        %1901 = vmatprep.subr.bf16.mxu0 0
        %1902 = vmatpush1.bf16.xpose.msra.mxu0 %v1899
        %1903 = vmatprep.subr.bf16.mxu0 0
        %1904 = vmatpush1.bf16.xpose.msra.mxu0 0
        %1905 = vmatprep.subr.bf16.mxu0 0
        %1906 = vmatpush1.bf16.xpose.msra.mxu0 0
        %1907 = vmatprep.subr.bf16.mxu0 0
        %1908 = vmatpush1.bf16.xpose.msra.mxu0 0
        %1909 = vmatprep.subr.bf16.mxu0 0
        %1910 = vmatpush1.bf16.xpose.msra.mxu0 0
        %1911 = vmatprep.subr.bf16.mxu0 0
        %1912 = vmatpush1.bf16.xpose.msra.mxu0 0
        %1913 = vmatprep.subr.bf16.mxu0 0
        %1914 = vmatpush1.bf16.xpose.msra.mxu0 0
        %1915 = vmatprep.subr.bf16.mxu0 0
        %1916 = vmatpush1.bf16.xpose.msra.mxu0 0
        %1917 = vmatprep.subr.bf16.mxu0 0
        %1918 = vmatpush1.bf16.xpose.msra.mxu0 0
        %1919 = vmatprep.subr.bf16.mxu0 0
        %1920 = vmatpush1.bf16.xpose.msra.mxu0 0
        %1921 = vmatprep.subr.bf16.mxu0 0
        %1922 = vmatpush1.bf16.xpose.msra.mxu0 0
        %1923 = vmatprep.subr.bf16.mxu0 0
        %1924 = vmatpush1.bf16.xpose.msra.mxu0 0
        %1925 = vmatprep.subr.bf16.mxu0 0
        %1926 = vmatpush1.bf16.xpose.msra.mxu0 0
        %1927 = vmatprep.subr.bf16.mxu0 0
        %1928 = vmatpush1.bf16.xpose.msra.mxu0 0
        %1929 = vmatprep.subr.bf16.mxu0 0
        %1930 = vmatpush1.bf16.xpose.msra.mxu0 0
        %1931 = vmatprep.subr.bf16.mxu0 0
        %1932 = vmatpush1.bf16.xpose.msra.mxu0 0
        %1933 = vmatprep.mubr.bf16.mxu0 0
        %1934 = vmatmul.mubr.bf16.gmra.mrb[0].mxu0 %v1896
        %v1935 = vpop.f32.mrb[0].mxu0
        %v1936 = vadd.f32 0.0, %v1935
        %v1937 = vpop.f32.mrb[0].mxu0
        %v1938 = vpop.f32.mrb[0].mxu0
        %v1939 = vadd.f32 0.0, %v1938
        %v1940 = vpop.f32.mrb[0].mxu0
        %1941 = vdwg.mxu0
        %v1942 = vsel %vm1819, %v1936, -inf
        %1943 = vmax.xlane.f32.xlu0 %v1942
        %v1944 = vpop.xlane.xlu0 %1943
        %v1945 = vsel %vm1819, %v1939, -inf
        %1946 = vmax.xlane.f32.xlu0 %v1945
        %v1947 = vpop.xlane.xlu0 %1946
        %v1948 = vsub.f32 %v1936, %v1944
        %v1949 = vsub.f32 %v1939, %v1947
        %v1950 = vmul.f32 %v1948, 1.442695
        %v1951 = vpow.pop %v1950
        %v1952 = vmul.f32 %v1949, 1.442695
        %v1953 = vpow.pop %v1952
        %v1954 = vsel %vm1819, %v1951, 0.0
        %1955 = vadd.xlane.f32.xlu0 %v1954
        %v1956 = vpop.xlane.xlu0 %1955
        %v1957 = vsel %vm1819, %v1953, 0.0
        %1958 = vadd.xlane.f32.xlu0 %v1957
        %v1959 = vpop.xlane.xlu0 %1958
        %v1960 = vrcp.pop %v1956
        %v1961 = vrcp.pop %v1959
        %v1962 = vmul.f32 %v1951, %v1960
        %v1963 = vmul.f32 %v1953, %v1961
        %v1964 = vpack.c.bf16 %v1963, %v1962
        %1966 = vrot.lane.b32.xlu0 %v1770, 120
        %v1967 = vpop.permute.xlu0 %1966
        %v1970 = vsel %vm1819, %v1964, 0
        %1972 = vmatprep.subr.bf16.mxu0 0
        %1973 = vmatpush1.bf16.msra.mxu0 %v1967
        %1974 = vmatprep.subr.bf16.mxu0 0
        %1975 = vmatpush1.bf16.msra.mxu0 0
        %1976 = vmatprep.subr.bf16.mxu0 0
        %1977 = vmatpush1.bf16.msra.mxu0 0
        %1978 = vmatprep.subr.bf16.mxu0 0
        %1979 = vmatpush1.bf16.msra.mxu0 0
        %1980 = vmatprep.subr.bf16.mxu0 0
        %1981 = vmatpush1.bf16.msra.mxu0 0
        %1982 = vmatprep.subr.bf16.mxu0 0
        %1983 = vmatpush1.bf16.msra.mxu0 0
        %1984 = vmatprep.subr.bf16.mxu0 0
        %1985 = vmatpush1.bf16.msra.mxu0 0
        %1986 = vmatprep.subr.bf16.mxu0 0
        %1987 = vmatpush1.bf16.msra.mxu0 0
        %1988 = vmatprep.subr.bf16.mxu0 0
        %1989 = vmatpush1.bf16.msra.mxu0 0
        %1990 = vmatprep.subr.bf16.mxu0 0
        %1991 = vmatpush1.bf16.msra.mxu0 0
        %1992 = vmatprep.subr.bf16.mxu0 0
        %1993 = vmatpush1.bf16.msra.mxu0 0
        %1994 = vmatprep.subr.bf16.mxu0 0
        %1995 = vmatpush1.bf16.msra.mxu0 0
        %1996 = vmatprep.subr.bf16.mxu0 0
        %1997 = vmatpush1.bf16.msra.mxu0 0
        %1998 = vmatprep.subr.bf16.mxu0 0
        %1999 = vmatpush1.bf16.msra.mxu0 0
        %2000 = vmatprep.subr.bf16.mxu0 0
        %2001 = vmatpush1.bf16.msra.mxu0 0
        %2002 = vmatprep.subr.bf16.mxu0 0
        %2003 = vmatpush1.bf16.msra.mxu0 0
        %2004 = vmatprep.mubr.bf16.mxu0 0
        %2005 = vmatmul.mubr.bf16.gmra.mrb[0].mxu0 %v1970
        %v2006 = vpop.f32.mrb[0].mxu0
        %v2007 = vadd.f32 0.0, %v2006
        %v2008 = vpop.f32.mrb[0].mxu0
        %v2009 = vpop.f32.mrb[0].mxu0
        %v2010 = vadd.f32 0.0, %v2009
        %v2011 = vpop.f32.mrb[0].mxu0
        %2012 = vdwg.mxu0
        %v2013 = vpack.c.bf16 %v2010, %v2007
        %s2014 = scalar_lea.vmem %s1206, 4
        %v2015 = vld [vmem:[%s2014] sm:$0xf]
        %v2017 = vsel %vm1771, %v2013, 0
        %vm2019 = vcmask 1043456
        %v2021 = vsel %vm2019, %v2015, 0
        %2023 = vmatprep.subr.bf16.mxu0 0
        %2024 = vmatpush1.bf16.msra.mxu0 %v2021
        %2025 = vmatprep.subr.bf16.mxu0 0
        %2026 = vmatpush1.bf16.msra.mxu0 0
        %2027 = vmatprep.subr.bf16.mxu0 0
        %2028 = vmatpush1.bf16.msra.mxu0 0
        %2029 = vmatprep.subr.bf16.mxu0 0
        %2030 = vmatpush1.bf16.msra.mxu0 0
        %2031 = vmatprep.subr.bf16.mxu0 0
        %2032 = vmatpush1.bf16.msra.mxu0 0
        %2033 = vmatprep.subr.bf16.mxu0 0
        %2034 = vmatpush1.bf16.msra.mxu0 0
        %2035 = vmatprep.subr.bf16.mxu0 0
        %2036 = vmatpush1.bf16.msra.mxu0 0
        %2037 = vmatprep.subr.bf16.mxu0 0
        %2038 = vmatpush1.bf16.msra.mxu0 0
        %2039 = vmatprep.subr.bf16.mxu0 0
        %2040 = vmatpush1.bf16.msra.mxu0 0
        %2041 = vmatprep.subr.bf16.mxu0 0
        %2042 = vmatpush1.bf16.msra.mxu0 0
        %2043 = vmatprep.subr.bf16.mxu0 0
        %2044 = vmatpush1.bf16.msra.mxu0 0
        %2045 = vmatprep.subr.bf16.mxu0 0
        %2046 = vmatpush1.bf16.msra.mxu0 0
        %2047 = vmatprep.subr.bf16.mxu0 0
        %2048 = vmatpush1.bf16.msra.mxu0 0
        %2049 = vmatprep.subr.bf16.mxu0 0
        %2050 = vmatpush1.bf16.msra.mxu0 0
        %2051 = vmatprep.subr.bf16.mxu0 0
        %2052 = vmatpush1.bf16.msra.mxu0 0
        %2053 = vmatprep.subr.bf16.mxu0 0
        %2054 = vmatpush1.bf16.msra.mxu0 0
        %2055 = vmatprep.mubr.bf16.mxu0 0
        %2056 = vmatmul.mubr.bf16.gmra.mrb[0].mxu0 %v2017
        %v2057 = vpop.f32.mrb[0].mxu0
        %v2058 = vadd.f32 0.0, %v2057
        %v2059 = vpop.f32.mrb[0].mxu0
        %v2060 = vpop.f32.mrb[0].mxu0
        %v2061 = vadd.f32 0.0, %v2060
        %v2062 = vpop.f32.mrb[0].mxu0
        %2063 = vdwg.mxu0
        %v2065 = vsel %vm1771, %v1887, 0
        %v2068 = vsel %vm2019, %v1888, 0
        %2070 = vmatprep.subr.bf16.mxu0 0
        %2071 = vmatpush1.bf16.msra.mxu0 %v2068
        %2072 = vmatprep.subr.bf16.mxu0 0
        %2073 = vmatpush1.bf16.msra.mxu0 0
        %2074 = vmatprep.subr.bf16.mxu0 0
        %2075 = vmatpush1.bf16.msra.mxu0 0
        %2076 = vmatprep.subr.bf16.mxu0 0
        %2077 = vmatpush1.bf16.msra.mxu0 0
        %2078 = vmatprep.subr.bf16.mxu0 0
        %2079 = vmatpush1.bf16.msra.mxu0 0
        %2080 = vmatprep.subr.bf16.mxu0 0
        %2081 = vmatpush1.bf16.msra.mxu0 0
        %2082 = vmatprep.subr.bf16.mxu0 0
        %2083 = vmatpush1.bf16.msra.mxu0 0
        %2084 = vmatprep.subr.bf16.mxu0 0
        %2085 = vmatpush1.bf16.msra.mxu0 0
        %2086 = vmatprep.subr.bf16.mxu0 0
        %2087 = vmatpush1.bf16.msra.mxu0 0
        %2088 = vmatprep.subr.bf16.mxu0 0
        %2089 = vmatpush1.bf16.msra.mxu0 0
        %2090 = vmatprep.subr.bf16.mxu0 0
        %2091 = vmatpush1.bf16.msra.mxu0 0
        %2092 = vmatprep.subr.bf16.mxu0 0
        %2093 = vmatpush1.bf16.msra.mxu0 0
        %2094 = vmatprep.subr.bf16.mxu0 0
        %2095 = vmatpush1.bf16.msra.mxu0 0
        %2096 = vmatprep.subr.bf16.mxu0 0
        %2097 = vmatpush1.bf16.msra.mxu0 0
        %2098 = vmatprep.subr.bf16.mxu0 0
        %2099 = vmatpush1.bf16.msra.mxu0 0
        %2100 = vmatprep.subr.bf16.mxu0 0
        %2101 = vmatpush1.bf16.msra.mxu0 0
        %2102 = vmatprep.mubr.bf16.mxu0 0
        %2103 = vmatmul.mubr.bf16.gmra.mrb[0].mxu0 %v2065
        %v2104 = vpop.f32.mrb[0].mxu0
        %v2105 = vadd.f32 %v2058, %v2104
        %v2106 = vpop.f32.mrb[0].mxu0
        %v2107 = vpop.f32.mrb[0].mxu0
        %v2108 = vadd.f32 %v2061, %v2107
        %v2109 = vpop.f32.mrb[0].mxu0
        %2110 = vdwg.mxu0
        %2111 = vrot.lane.b32.xlu0 %v1768, 112
        %v2112 = vpop.permute.xlu0 %2111
        %2113 = vrot.lane.b32.xlu0 %v1769, 112
        %v2114 = vpop.permute.xlu0 %2113
        %v2116 = vsel %vm1771, %v2112, 0
        %v2119 = vsel %vm1771, %v2114, 0
        %2121 = vmatprep.subr.bf16.mxu0 0
        %2122 = vmatpush1.bf16.xpose.msra.mxu0 %v2119
        %2123 = vmatprep.subr.bf16.mxu0 0
        %2124 = vmatpush1.bf16.xpose.msra.mxu0 0
        %2125 = vmatprep.subr.bf16.mxu0 0
        %2126 = vmatpush1.bf16.xpose.msra.mxu0 0
        %2127 = vmatprep.subr.bf16.mxu0 0
        %2128 = vmatpush1.bf16.xpose.msra.mxu0 0
        %2129 = vmatprep.subr.bf16.mxu0 0
        %2130 = vmatpush1.bf16.xpose.msra.mxu0 0
        %2131 = vmatprep.subr.bf16.mxu0 0
        %2132 = vmatpush1.bf16.xpose.msra.mxu0 0
        %2133 = vmatprep.subr.bf16.mxu0 0
        %2134 = vmatpush1.bf16.xpose.msra.mxu0 0
        %2135 = vmatprep.subr.bf16.mxu0 0
        %2136 = vmatpush1.bf16.xpose.msra.mxu0 0
        %2137 = vmatprep.subr.bf16.mxu0 0
        %2138 = vmatpush1.bf16.xpose.msra.mxu0 0
        %2139 = vmatprep.subr.bf16.mxu0 0
        %2140 = vmatpush1.bf16.xpose.msra.mxu0 0
        %2141 = vmatprep.subr.bf16.mxu0 0
        %2142 = vmatpush1.bf16.xpose.msra.mxu0 0
        %2143 = vmatprep.subr.bf16.mxu0 0
        %2144 = vmatpush1.bf16.xpose.msra.mxu0 0
        %2145 = vmatprep.subr.bf16.mxu0 0
        %2146 = vmatpush1.bf16.xpose.msra.mxu0 0
        %2147 = vmatprep.subr.bf16.mxu0 0
        %2148 = vmatpush1.bf16.xpose.msra.mxu0 0
        %2149 = vmatprep.subr.bf16.mxu0 0
        %2150 = vmatpush1.bf16.xpose.msra.mxu0 0
        %2151 = vmatprep.subr.bf16.mxu0 0
        %2152 = vmatpush1.bf16.xpose.msra.mxu0 0
        %2153 = vmatprep.mubr.bf16.mxu0 0
        %2154 = vmatmul.mubr.bf16.gmra.mrb[0].mxu0 %v2116
        %v2155 = vpop.f32.mrb[0].mxu0
        %v2156 = vadd.f32 0.0, %v2155
        %v2157 = vpop.f32.mrb[0].mxu0
        %v2158 = vpop.f32.mrb[0].mxu0
        %v2159 = vadd.f32 0.0, %v2158
        %v2160 = vpop.f32.mrb[0].mxu0
        %2161 = vdwg.mxu0
        %v2162 = vsel %vm1819, %v2156, -inf
        %2163 = vmax.xlane.f32.xlu0 %v2162
        %v2164 = vpop.xlane.xlu0 %2163
        %v2165 = vsel %vm1819, %v2159, -inf
        %2166 = vmax.xlane.f32.xlu0 %v2165
        %v2167 = vpop.xlane.xlu0 %2166
        %v2168 = vsub.f32 %v2156, %v2164
        %v2169 = vsub.f32 %v2159, %v2167
        %v2170 = vmul.f32 %v2168, 1.442695
        %v2171 = vpow.pop %v2170
        %v2172 = vmul.f32 %v2169, 1.442695
        %v2173 = vpow.pop %v2172
        %v2174 = vsel %vm1819, %v2171, 0.0
        %2175 = vadd.xlane.f32.xlu0 %v2174
        %v2176 = vpop.xlane.xlu0 %2175
        %v2177 = vsel %vm1819, %v2173, 0.0
        %2178 = vadd.xlane.f32.xlu0 %v2177
        %v2179 = vpop.xlane.xlu0 %2178
        %v2180 = vrcp.pop %v2176
        %v2181 = vrcp.pop %v2179
        %v2182 = vmul.f32 %v2171, %v2180
        %v2183 = vmul.f32 %v2173, %v2181
        %v2184 = vpack.c.bf16 %v2183, %v2182
        %2185 = vrot.lane.b32.xlu0 %v1770, 112
        %v2186 = vpop.permute.xlu0 %2185
        %v2189 = vsel %vm1819, %v2184, 0
        %2191 = vmatprep.subr.bf16.mxu0 0
        %2192 = vmatpush1.bf16.msra.mxu0 %v2186
        %2193 = vmatprep.subr.bf16.mxu0 0
        %2194 = vmatpush1.bf16.msra.mxu0 0
        %2195 = vmatprep.subr.bf16.mxu0 0
        %2196 = vmatpush1.bf16.msra.mxu0 0
        %2197 = vmatprep.subr.bf16.mxu0 0
        %2198 = vmatpush1.bf16.msra.mxu0 0
        %2199 = vmatprep.subr.bf16.mxu0 0
        %2200 = vmatpush1.bf16.msra.mxu0 0
        %2201 = vmatprep.subr.bf16.mxu0 0
        %2202 = vmatpush1.bf16.msra.mxu0 0
        %2203 = vmatprep.subr.bf16.mxu0 0
        %2204 = vmatpush1.bf16.msra.mxu0 0
        %2205 = vmatprep.subr.bf16.mxu0 0
        %2206 = vmatpush1.bf16.msra.mxu0 0
        %2207 = vmatprep.subr.bf16.mxu0 0
        %2208 = vmatpush1.bf16.msra.mxu0 0
        %2209 = vmatprep.subr.bf16.mxu0 0
        %2210 = vmatpush1.bf16.msra.mxu0 0
        %2211 = vmatprep.subr.bf16.mxu0 0
        %2212 = vmatpush1.bf16.msra.mxu0 0
        %2213 = vmatprep.subr.bf16.mxu0 0
        %2214 = vmatpush1.bf16.msra.mxu0 0
        %2215 = vmatprep.subr.bf16.mxu0 0
        %2216 = vmatpush1.bf16.msra.mxu0 0
        %2217 = vmatprep.subr.bf16.mxu0 0
        %2218 = vmatpush1.bf16.msra.mxu0 0
        %2219 = vmatprep.subr.bf16.mxu0 0
        %2220 = vmatpush1.bf16.msra.mxu0 0
        %2221 = vmatprep.subr.bf16.mxu0 0
        %2222 = vmatpush1.bf16.msra.mxu0 0
        %2223 = vmatprep.mubr.bf16.mxu0 0
        %2224 = vmatmul.mubr.bf16.gmra.mrb[0].mxu0 %v2189
        %v2225 = vpop.f32.mrb[0].mxu0
        %v2226 = vadd.f32 0.0, %v2225
        %v2227 = vpop.f32.mrb[0].mxu0
        %v2228 = vpop.f32.mrb[0].mxu0
        %v2229 = vadd.f32 0.0, %v2228
        %v2230 = vpop.f32.mrb[0].mxu0
        %2231 = vdwg.mxu0
        %v2232 = vpack.c.bf16 %v2229, %v2226
        %s2233 = scalar_lea.vmem %s1206, 8
        %v2234 = vld [vmem:[%s2233] sm:$0xf]
        %v2236 = vsel %vm1771, %v2232, 0
        %v2239 = vsel %vm2019, %v2234, 0
        %2241 = vmatprep.subr.bf16.mxu0 0
        %2242 = vmatpush1.bf16.msra.mxu0 %v2239
        %2243 = vmatprep.subr.bf16.mxu0 0
        %2244 = vmatpush1.bf16.msra.mxu0 0
        %2245 = vmatprep.subr.bf16.mxu0 0
        %2246 = vmatpush1.bf16.msra.mxu0 0
        %2247 = vmatprep.subr.bf16.mxu0 0
        %2248 = vmatpush1.bf16.msra.mxu0 0
        %2249 = vmatprep.subr.bf16.mxu0 0
        %2250 = vmatpush1.bf16.msra.mxu0 0
        %2251 = vmatprep.subr.bf16.mxu0 0
        %2252 = vmatpush1.bf16.msra.mxu0 0
        %2253 = vmatprep.subr.bf16.mxu0 0
        %2254 = vmatpush1.bf16.msra.mxu0 0
        %2255 = vmatprep.subr.bf16.mxu0 0
        %2256 = vmatpush1.bf16.msra.mxu0 0
        %2257 = vmatprep.subr.bf16.mxu0 0
        %2258 = vmatpush1.bf16.msra.mxu0 0
        %2259 = vmatprep.subr.bf16.mxu0 0
        %2260 = vmatpush1.bf16.msra.mxu0 0
        %2261 = vmatprep.subr.bf16.mxu0 0
        %2262 = vmatpush1.bf16.msra.mxu0 0
        %2263 = vmatprep.subr.bf16.mxu0 0
        %2264 = vmatpush1.bf16.msra.mxu0 0
        %2265 = vmatprep.subr.bf16.mxu0 0
        %2266 = vmatpush1.bf16.msra.mxu0 0
        %2267 = vmatprep.subr.bf16.mxu0 0
        %2268 = vmatpush1.bf16.msra.mxu0 0
        %2269 = vmatprep.subr.bf16.mxu0 0
        %2270 = vmatpush1.bf16.msra.mxu0 0
        %2271 = vmatprep.subr.bf16.mxu0 0
        %2272 = vmatpush1.bf16.msra.mxu0 0
        %2273 = vmatprep.mubr.bf16.mxu0 0
        %2274 = vmatmul.mubr.bf16.gmra.mrb[0].mxu0 %v2236
        %v2275 = vpop.f32.mrb[0].mxu0
        %v2276 = vadd.f32 0.0, %v2275
        %v2277 = vpop.f32.mrb[0].mxu0
        %v2278 = vpop.f32.mrb[0].mxu0
        %v2279 = vadd.f32 0.0, %v2278
        %v2280 = vpop.f32.mrb[0].mxu0
        %2281 = vdwg.mxu0
        %v2282 = vadd.f32 %v2105, %v2276
        %v2283 = vadd.f32 %v2108, %v2279
        %2284 = vrot.lane.b32.xlu0 %v1768, 104
        %v2285 = vpop.permute.xlu0 %2284
        %2286 = vrot.lane.b32.xlu0 %v1769, 104
        %v2287 = vpop.permute.xlu0 %2286
        %v2289 = vsel %vm1771, %v2285, 0
        %v2292 = vsel %vm1771, %v2287, 0
        %2294 = vmatprep.subr.bf16.mxu0 0
        %2295 = vmatpush1.bf16.xpose.msra.mxu0 %v2292
        %2296 = vmatprep.subr.bf16.mxu0 0
        %2297 = vmatpush1.bf16.xpose.msra.mxu0 0
        %2298 = vmatprep.subr.bf16.mxu0 0
        %2299 = vmatpush1.bf16.xpose.msra.mxu0 0
        %2300 = vmatprep.subr.bf16.mxu0 0
        %2301 = vmatpush1.bf16.xpose.msra.mxu0 0
        %2302 = vmatprep.subr.bf16.mxu0 0
        %2303 = vmatpush1.bf16.xpose.msra.mxu0 0
        %2304 = vmatprep.subr.bf16.mxu0 0
        %2305 = vmatpush1.bf16.xpose.msra.mxu0 0
        %2306 = vmatprep.subr.bf16.mxu0 0
        %2307 = vmatpush1.bf16.xpose.msra.mxu0 0
        %2308 = vmatprep.subr.bf16.mxu0 0
        %2309 = vmatpush1.bf16.xpose.msra.mxu0 0
        %2310 = vmatprep.subr.bf16.mxu0 0
        %2311 = vmatpush1.bf16.xpose.msra.mxu0 0
        %2312 = vmatprep.subr.bf16.mxu0 0
        %2313 = vmatpush1.bf16.xpose.msra.mxu0 0
        %2314 = vmatprep.subr.bf16.mxu0 0
        %2315 = vmatpush1.bf16.xpose.msra.mxu0 0
        %2316 = vmatprep.subr.bf16.mxu0 0
        %2317 = vmatpush1.bf16.xpose.msra.mxu0 0
        %2318 = vmatprep.subr.bf16.mxu0 0
        %2319 = vmatpush1.bf16.xpose.msra.mxu0 0
        %2320 = vmatprep.subr.bf16.mxu0 0
        %2321 = vmatpush1.bf16.xpose.msra.mxu0 0
        %2322 = vmatprep.subr.bf16.mxu0 0
        %2323 = vmatpush1.bf16.xpose.msra.mxu0 0
        %2324 = vmatprep.subr.bf16.mxu0 0
        %2325 = vmatpush1.bf16.xpose.msra.mxu0 0
        %2326 = vmatprep.mubr.bf16.mxu0 0
        %2327 = vmatmul.mubr.bf16.gmra.mrb[0].mxu0 %v2289
        %v2328 = vpop.f32.mrb[0].mxu0
        %v2329 = vadd.f32 0.0, %v2328
        %v2330 = vpop.f32.mrb[0].mxu0
        %v2331 = vpop.f32.mrb[0].mxu0
        %v2332 = vadd.f32 0.0, %v2331
        %v2333 = vpop.f32.mrb[0].mxu0
        %2334 = vdwg.mxu0
        %v2335 = vsel %vm1819, %v2329, -inf
        %2336 = vmax.xlane.f32.xlu0 %v2335
        %v2337 = vpop.xlane.xlu0 %2336
        %v2338 = vsel %vm1819, %v2332, -inf
        %2339 = vmax.xlane.f32.xlu0 %v2338
        %v2340 = vpop.xlane.xlu0 %2339
        %v2341 = vsub.f32 %v2329, %v2337
        %v2342 = vsub.f32 %v2332, %v2340
        %v2343 = vmul.f32 %v2341, 1.442695
        %v2344 = vpow.pop %v2343
        %v2345 = vmul.f32 %v2342, 1.442695
        %v2346 = vpow.pop %v2345
        %v2347 = vsel %vm1819, %v2344, 0.0
        %2348 = vadd.xlane.f32.xlu0 %v2347
        %v2349 = vpop.xlane.xlu0 %2348
        %v2350 = vsel %vm1819, %v2346, 0.0
        %2351 = vadd.xlane.f32.xlu0 %v2350
        %v2352 = vpop.xlane.xlu0 %2351
        %v2353 = vrcp.pop %v2349
        %v2354 = vrcp.pop %v2352
        %v2355 = vmul.f32 %v2344, %v2353
        %v2356 = vmul.f32 %v2346, %v2354
        %v2357 = vpack.c.bf16 %v2356, %v2355
        %2358 = vrot.lane.b32.xlu0 %v1770, 104
        %v2359 = vpop.permute.xlu0 %2358
        %v2362 = vsel %vm1819, %v2357, 0
        %2364 = vmatprep.subr.bf16.mxu0 0
        %2365 = vmatpush1.bf16.msra.mxu0 %v2359
        %2366 = vmatprep.subr.bf16.mxu0 0
        %2367 = vmatpush1.bf16.msra.mxu0 0
        %2368 = vmatprep.subr.bf16.mxu0 0
        %2369 = vmatpush1.bf16.msra.mxu0 0
        %2370 = vmatprep.subr.bf16.mxu0 0
        %2371 = vmatpush1.bf16.msra.mxu0 0
        %2372 = vmatprep.subr.bf16.mxu0 0
        %2373 = vmatpush1.bf16.msra.mxu0 0
        %2374 = vmatprep.subr.bf16.mxu0 0
        %2375 = vmatpush1.bf16.msra.mxu0 0
        %2376 = vmatprep.subr.bf16.mxu0 0
        %2377 = vmatpush1.bf16.msra.mxu0 0
        %2378 = vmatprep.subr.bf16.mxu0 0
        %2379 = vmatpush1.bf16.msra.mxu0 0
        %2380 = vmatprep.subr.bf16.mxu0 0
        %2381 = vmatpush1.bf16.msra.mxu0 0
        %2382 = vmatprep.subr.bf16.mxu0 0
        %2383 = vmatpush1.bf16.msra.mxu0 0
        %2384 = vmatprep.subr.bf16.mxu0 0
        %2385 = vmatpush1.bf16.msra.mxu0 0
        %2386 = vmatprep.subr.bf16.mxu0 0
        %2387 = vmatpush1.bf16.msra.mxu0 0
        %2388 = vmatprep.subr.bf16.mxu0 0
        %2389 = vmatpush1.bf16.msra.mxu0 0
        %2390 = vmatprep.subr.bf16.mxu0 0
        %2391 = vmatpush1.bf16.msra.mxu0 0
        %2392 = vmatprep.subr.bf16.mxu0 0
        %2393 = vmatpush1.bf16.msra.mxu0 0
        %2394 = vmatprep.subr.bf16.mxu0 0
        %2395 = vmatpush1.bf16.msra.mxu0 0
        %2396 = vmatprep.mubr.bf16.mxu0 0
        %2397 = vmatmul.mubr.bf16.gmra.mrb[0].mxu0 %v2362
        %v2398 = vpop.f32.mrb[0].mxu0
        %v2399 = vadd.f32 0.0, %v2398
        %v2400 = vpop.f32.mrb[0].mxu0
        %v2401 = vpop.f32.mrb[0].mxu0
        %v2402 = vadd.f32 0.0, %v2401
        %v2403 = vpop.f32.mrb[0].mxu0
        %2404 = vdwg.mxu0
        %v2405 = vpack.c.bf16 %v2402, %v2399
        %s2406 = scalar_lea.vmem %s1206, 12
        %v2407 = vld [vmem:[%s2406] sm:$0xf]
        %v2409 = vsel %vm1771, %v2405, 0
        %v2412 = vsel %vm2019, %v2407, 0
        %2414 = vmatprep.subr.bf16.mxu0 0
        %2415 = vmatpush1.bf16.msra.mxu0 %v2412
        %2416 = vmatprep.subr.bf16.mxu0 0
        %2417 = vmatpush1.bf16.msra.mxu0 0
        %2418 = vmatprep.subr.bf16.mxu0 0
        %2419 = vmatpush1.bf16.msra.mxu0 0
        %2420 = vmatprep.subr.bf16.mxu0 0
        %2421 = vmatpush1.bf16.msra.mxu0 0
        %2422 = vmatprep.subr.bf16.mxu0 0
        %2423 = vmatpush1.bf16.msra.mxu0 0
        %2424 = vmatprep.subr.bf16.mxu0 0
        %2425 = vmatpush1.bf16.msra.mxu0 0
        %2426 = vmatprep.subr.bf16.mxu0 0
        %2427 = vmatpush1.bf16.msra.mxu0 0
        %2428 = vmatprep.subr.bf16.mxu0 0
        %2429 = vmatpush1.bf16.msra.mxu0 0
        %2430 = vmatprep.subr.bf16.mxu0 0
        %2431 = vmatpush1.bf16.msra.mxu0 0
        %2432 = vmatprep.subr.bf16.mxu0 0
        %2433 = vmatpush1.bf16.msra.mxu0 0
        %2434 = vmatprep.subr.bf16.mxu0 0
        %2435 = vmatpush1.bf16.msra.mxu0 0
        %2436 = vmatprep.subr.bf16.mxu0 0
        %2437 = vmatpush1.bf16.msra.mxu0 0
        %2438 = vmatprep.subr.bf16.mxu0 0
        %2439 = vmatpush1.bf16.msra.mxu0 0
        %2440 = vmatprep.subr.bf16.mxu0 0
        %2441 = vmatpush1.bf16.msra.mxu0 0
        %2442 = vmatprep.subr.bf16.mxu0 0
        %2443 = vmatpush1.bf16.msra.mxu0 0
        %2444 = vmatprep.subr.bf16.mxu0 0
        %2445 = vmatpush1.bf16.msra.mxu0 0
        %2446 = vmatprep.mubr.bf16.mxu0 0
        %2447 = vmatmul.mubr.bf16.gmra.mrb[0].mxu0 %v2409
        %v2448 = vpop.f32.mrb[0].mxu0
        %v2449 = vadd.f32 0.0, %v2448
        %v2450 = vpop.f32.mrb[0].mxu0
        %v2451 = vpop.f32.mrb[0].mxu0
        %v2452 = vadd.f32 0.0, %v2451
        %v2453 = vpop.f32.mrb[0].mxu0
        %2454 = vdwg.mxu0
        %v2455 = vadd.f32 %v2282, %v2449
        %v2456 = vadd.f32 %v2283, %v2452
        %v2457 = vld [vmem:[%s1021] sm:$0x1]
        %v2459 = vlaneseq
        %v2460 = vshrl.u32 %v2459, 7
        %v2461 = vsub.s32 0, %v2460
        %v2462 = vrot.slane %v2457, %v2461
        %v2464 = vadd.f32 %v2455, %v2462
        %v2465 = vadd.f32 %v2456, %v2462
        %v2466 = vld [vmem:[%s1030] sm:$0xf]
        %v2467 = vld [vmem:[%s1030 + $0x4] sm:$0xf]
        %v2468 = vld [vmem:[%s1030 + $0x8] sm:$0xf]
        %v2469 = vld [vmem:[%s1030 + $0xc] sm:$0xf]
        %v2470 = vpack.c.bf16 %v2465, %v2464
        %v2471 = vld [vmem:[%s1039] sm:$0xf]
        %v2472 = vld [vmem:[%s1039 + $0x4] sm:$0xf]
        %v2473 = vld [vmem:[%s1039 + $0x8] sm:$0xf]
        %v2474 = vld [vmem:[%s1039 + $0xc] sm:$0xf]
        %v2479 = vunpack.c.l.b16 %v2471
        %v2480 = vunpack.c.l.b16 %v2472
        %v2481 = vunpack.c.l.b16 %v2473
        %v2482 = vunpack.c.l.b16 %v2474
        %v2483 = vpack.c.b16 %v2480, %v2479
        %v2484 = vpack.c.b16 %v2482, %v2481
        %v2488 = vsel %vm1593, %v2470, 0
        %2490 = vmatprep.subr.bf16.mxu0 0
        %2491 = vmatpush1.bf16.msra.mxu0 %v2483
        %2492 = vmatprep.subr.bf16.mxu0 0
        %2493 = vmatpush1.bf16.msra.mxu0 %v2484
        %2494 = vmatprep.subr.bf16.mxu0 0
        %2495 = vmatpush1.bf16.msra.mxu0 0
        %2496 = vmatprep.subr.bf16.mxu0 0
        %2497 = vmatpush1.bf16.msra.mxu0 0
        %2498 = vmatprep.subr.bf16.mxu0 0
        %2499 = vmatpush1.bf16.msra.mxu0 0
        %2500 = vmatprep.subr.bf16.mxu0 0
        %2501 = vmatpush1.bf16.msra.mxu0 0
        %2502 = vmatprep.subr.bf16.mxu0 0
        %2503 = vmatpush1.bf16.msra.mxu0 0
        %2504 = vmatprep.subr.bf16.mxu0 0
        %2505 = vmatpush1.bf16.msra.mxu0 0
        %2506 = vmatprep.subr.bf16.mxu0 0
        %2507 = vmatpush1.bf16.msra.mxu0 0
        %2508 = vmatprep.subr.bf16.mxu0 0
        %2509 = vmatpush1.bf16.msra.mxu0 0
        %2510 = vmatprep.subr.bf16.mxu0 0
        %2511 = vmatpush1.bf16.msra.mxu0 0
        %2512 = vmatprep.subr.bf16.mxu0 0
        %2513 = vmatpush1.bf16.msra.mxu0 0
        %2514 = vmatprep.subr.bf16.mxu0 0
        %2515 = vmatpush1.bf16.msra.mxu0 0
        %2516 = vmatprep.subr.bf16.mxu0 0
        %2517 = vmatpush1.bf16.msra.mxu0 0
        %2518 = vmatprep.subr.bf16.mxu0 0
        %2519 = vmatpush1.bf16.msra.mxu0 0
        %2520 = vmatprep.subr.bf16.mxu0 0
        %2521 = vmatpush1.bf16.msra.mxu0 0
        %2522 = vmatprep.mubr.bf16.mxu0 0
        %2523 = vmatmul.mubr.bf16.gmra.mrb[0].mxu0 %v2488
        %v2524 = vpop.f32.mrb[0].mxu0
        %v2525 = vadd.f32 0.0, %v2524
        %v2526 = vpop.f32.mrb[0].mxu0
        %v2527 = vpop.f32.mrb[0].mxu0
        %v2528 = vadd.f32 0.0, %v2527
        %v2529 = vpop.f32.mrb[0].mxu0
        %2530 = vdwg.mxu0
        %v2535 = vunpack.c.l.b16 %v2466
        %v2536 = vunpack.c.l.b16 %v2467
        %v2537 = vunpack.c.l.b16 %v2468
        %v2538 = vunpack.c.l.b16 %v2469
        %v2539 = vpack.c.b16 %v2536, %v2535
        %v2540 = vpack.c.b16 %v2538, %v2537
        %2543 = vmatprep.subr.bf16.mxu0 0
        %2544 = vmatpush1.bf16.msra.mxu0 %v2539
        %2545 = vmatprep.subr.bf16.mxu0 0
        %2546 = vmatpush1.bf16.msra.mxu0 %v2540
        %2547 = vmatprep.subr.bf16.mxu0 0
        %2548 = vmatpush1.bf16.msra.mxu0 0
        %2549 = vmatprep.subr.bf16.mxu0 0
        %2550 = vmatpush1.bf16.msra.mxu0 0
        %2551 = vmatprep.subr.bf16.mxu0 0
        %2552 = vmatpush1.bf16.msra.mxu0 0
        %2553 = vmatprep.subr.bf16.mxu0 0
        %2554 = vmatpush1.bf16.msra.mxu0 0
        %2555 = vmatprep.subr.bf16.mxu0 0
        %2556 = vmatpush1.bf16.msra.mxu0 0
        %2557 = vmatprep.subr.bf16.mxu0 0
        %2558 = vmatpush1.bf16.msra.mxu0 0
        %2559 = vmatprep.subr.bf16.mxu0 0
        %2560 = vmatpush1.bf16.msra.mxu0 0
        %2561 = vmatprep.subr.bf16.mxu0 0
        %2562 = vmatpush1.bf16.msra.mxu0 0
        %2563 = vmatprep.subr.bf16.mxu0 0
        %2564 = vmatpush1.bf16.msra.mxu0 0
        %2565 = vmatprep.subr.bf16.mxu0 0
        %2566 = vmatpush1.bf16.msra.mxu0 0
        %2567 = vmatprep.subr.bf16.mxu0 0
        %2568 = vmatpush1.bf16.msra.mxu0 0
        %2569 = vmatprep.subr.bf16.mxu0 0
        %2570 = vmatpush1.bf16.msra.mxu0 0
        %2571 = vmatprep.subr.bf16.mxu0 0
        %2572 = vmatpush1.bf16.msra.mxu0 0
        %2573 = vmatprep.subr.bf16.mxu0 0
        %2574 = vmatpush1.bf16.msra.mxu0 0
        %2575 = vmatprep.mubr.bf16.mxu0 0
        %2576 = vmatmul.mubr.bf16.gmra.mrb[0].mxu0 %v1595
        %v2577 = vpop.f32.mrb[0].mxu0
        %v2578 = vadd.f32 %v2525, %v2577
        %v2579 = vpop.f32.mrb[0].mxu0
        %v2580 = vpop.f32.mrb[0].mxu0
        %v2581 = vadd.f32 %v2528, %v2580
        %v2582 = vpop.f32.mrb[0].mxu0
        %2583 = vdwg.mxu0
        %v2584 = vld [vmem:[%s1047] sm:$0x1]
        %v2586 = vlaneseq
        %v2587 = vshrl.u32 %v2586, 7
        %v2588 = vsub.s32 0, %v2587
        %v2589 = vrot.slane %v2584, %v2588
        %v2591 = vadd.f32 %v2578, %v2589
        %v2592 = vadd.f32 %v2581, %v2589
        %vm2593 = vcmask 523264
        %v2594 = vsel %vm2593, %v2591, 0.0
        %v2595 = vsel %vm2593, %v2592, 0.0
        %v2596 = vadd.f32 %v2594, %v2595
        %v2597 = vrot.slane %v2596, 4
        %v2598 = vadd.f32 %v2596, %v2597
        %v2599 = vrot.slane %v2598, 2
        %v2600 = vadd.f32 %v2598, %v2599
        %v2601 = vrot.slane %v2600, 1
        %v2602 = vadd.f32 %v2600, %v2601
        %v2603 = vrcp.pop 16.0
        %v2604 = vmul.f32 %v2602, %v2603
        %v2605 = vsub.f32 %v2591, %v2604
        %v2606 = vsub.f32 %v2592, %v2604
        %v2607 = vmul.f32 %v2605, %v2605
        %v2608 = vmul.f32 %v2606, %v2606
        %v2609 = vsel %vm2593, %v2607, 0.0
        %v2610 = vsel %vm2593, %v2608, 0.0
        %v2611 = vadd.f32 %v2609, %v2610
        %v2612 = vrot.slane %v2611, 4
        %v2613 = vadd.f32 %v2611, %v2612
        %v2614 = vrot.slane %v2613, 2
        %v2615 = vadd.f32 %v2613, %v2614
        %v2616 = vrot.slane %v2615, 1
        %v2617 = vadd.f32 %v2615, %v2616
        %v2618 = vmul.f32 %v2617, %v2603
        %v2619 = vadd.f32 %v2618, 1e-05
        %v2620 = vrsqrt.pop %v2619
        %v2621 = vmul.f32 %v2605, %v2620
        %v2622 = vmul.f32 %v2606, %v2620
        %v2623 = vmax.f32 %v2621, 0.0
        %v2624 = vmax.f32 %v2622, 0.0
        %v2625 = vpack.c.bf16 %v2624, %v2623
        %v2626 = vld [vmem:[%s1211] sm:$0xf]
        %v2627 = vld [vmem:[%s1211 + $0x4] sm:$0xf]
        %v2628 = vld [vmem:[%s1211 + $0x8] sm:$0xf]
        %v2629 = vld [vmem:[%s1211 + $0xc] sm:$0xf]
        %v2630 = vld [vmem:[%s1211 + $0x10] sm:$0xf]
        %v2631 = vld [vmem:[%s1211 + $0x14] sm:$0xf]
        %v2632 = vld [vmem:[%s1211 + $0x18] sm:$0xf]
        %v2633 = vld [vmem:[%s1211 + $0x1c] sm:$0xf]
        %v2634 = vld [vmem:[%s1214] sm:$0x1]
        %v2636 = vlaneseq
        %v2637 = vshrl.u32 %v2636, 7
        %v2638 = vsub.s32 0, %v2637
        %v2639 = vrot.slane %v2634, %v2638
        %v2649 = vunpack.c.l.b16 %v2626
        %v2650 = vunpack.c.l.b16 %v2627
        %v2651 = vunpack.c.l.b16 %v2628
        %v2652 = vunpack.c.l.b16 %v2629
        %v2653 = vunpack.c.l.b16 %v2630
        %v2654 = vunpack.c.l.b16 %v2631
        %v2655 = vunpack.c.l.b16 %v2632
        %v2656 = vunpack.c.l.b16 %v2633
        %v2657 = vpack.c.b16 %v2650, %v2649
        %v2658 = vpack.c.b16 %v2652, %v2651
        %v2659 = vpack.c.b16 %v2654, %v2653
        %v2660 = vpack.c.b16 %v2656, %v2655
        %v2666 = vsel %vm2593, %v2625, 0
        %2668 = vmatprep.subr.bf16.mxu0 0
        %2669 = vmatpush1.bf16.msra.mxu0 %v2657
        %2670 = vmatprep.subr.bf16.mxu0 0
        %2671 = vmatpush1.bf16.msra.mxu0 %v2658
        %2672 = vmatprep.subr.bf16.mxu0 0
        %2673 = vmatpush1.bf16.msra.mxu0 %v2659
        %2674 = vmatprep.subr.bf16.mxu0 0
        %2675 = vmatpush1.bf16.msra.mxu0 %v2660
        %2676 = vmatprep.subr.bf16.mxu0 0
        %2677 = vmatpush1.bf16.msra.mxu0 0
        %2678 = vmatprep.subr.bf16.mxu0 0
        %2679 = vmatpush1.bf16.msra.mxu0 0
        %2680 = vmatprep.subr.bf16.mxu0 0
        %2681 = vmatpush1.bf16.msra.mxu0 0
        %2682 = vmatprep.subr.bf16.mxu0 0
        %2683 = vmatpush1.bf16.msra.mxu0 0
        %2684 = vmatprep.subr.bf16.mxu0 0
        %2685 = vmatpush1.bf16.msra.mxu0 0
        %2686 = vmatprep.subr.bf16.mxu0 0
        %2687 = vmatpush1.bf16.msra.mxu0 0
        %2688 = vmatprep.subr.bf16.mxu0 0
        %2689 = vmatpush1.bf16.msra.mxu0 0
        %2690 = vmatprep.subr.bf16.mxu0 0
        %2691 = vmatpush1.bf16.msra.mxu0 0
        %2692 = vmatprep.subr.bf16.mxu0 0
        %2693 = vmatpush1.bf16.msra.mxu0 0
        %2694 = vmatprep.subr.bf16.mxu0 0
        %2695 = vmatpush1.bf16.msra.mxu0 0
        %2696 = vmatprep.subr.bf16.mxu0 0
        %2697 = vmatpush1.bf16.msra.mxu0 0
        %2698 = vmatprep.subr.bf16.mxu0 0
        %2699 = vmatpush1.bf16.msra.mxu0 0
        %2700 = vmatprep.mubr.bf16.mxu0 0
        %2701 = vmatmul.mubr.bf16.gmra.mrb[0].mxu0 %v2666
        %v2702 = vpop.f32.mrb[0].mxu0
        %v2703 = vadd.f32 %v2639, %v2702
        %v2704 = vpop.f32.mrb[0].mxu0
        %v2705 = vpop.f32.mrb[0].mxu0
        %v2706 = vadd.f32 %v2639, %v2705
        %v2707 = vpop.f32.mrb[0].mxu0
        %2708 = vdwg.mxu0
        %v2709 = vadd.f32 %v1567, %v2703
        %v2710 = vadd.f32 %v1568, %v2706
        %2711 = vst.msk [vmem:[#allocation2] sm:$0xff] %vm1593, %v2709
        %2712 = vst.msk [vmem:[#allocation2 + $0x8] sm:$0xff] %vm1593, %v2710
        %p2713 = scmp.eq.s32.totalorder %s59, 1
        // Predicated region
        $region173: #{tpu_custom_call.1} parent=119 // pred_check
          %p2714 = pneg %p2713
        $region174: #{tpu_custom_call.1} parent=119 // pred_check_branch
          %2716 = sbr.rel (%p2714) target = $region176
        $region175: #{tpu_custom_call.1} parent=119 // pred_region
          %v2717 = vpack.c.bf16 %v2710, %v2709
          %v2718 = vld [vmem:[%s21] sm:$0xf]
          %v2719 = vld [vmem:[%s21 + $0x4] sm:$0xf]
          %v2720 = vld [vmem:[%s21 + $0x8] sm:$0xf]
          %v2721 = vld [vmem:[%s21 + $0xc] sm:$0xf]
          %v2722 = vld [vmem:[%s22] sm:$0x1]
          %v2724 = vlaneseq
          %v2725 = vshrl.u32 %v2724, 7
          %v2726 = vsub.s32 0, %v2725
          %v2727 = vrot.slane %v2722, %v2726
          %v2733 = vunpack.c.l.b16 %v2718
          %v2734 = vunpack.c.l.b16 %v2719
          %v2735 = vunpack.c.l.b16 %v2720
          %v2736 = vunpack.c.l.b16 %v2721
          %v2737 = vpack.c.b16 %v2734, %v2733
          %v2738 = vpack.c.b16 %v2736, %v2735
          %v2742 = vsel %vm1593, %v2717, 0
          %2744 = vmatprep.subr.bf16.mxu0 0
          %2745 = vmatpush1.bf16.msra.mxu0 %v2737
          %2746 = vmatprep.subr.bf16.mxu0 0
          %2747 = vmatpush1.bf16.msra.mxu0 %v2738
          %2748 = vmatprep.subr.bf16.mxu0 0
          %2749 = vmatpush1.bf16.msra.mxu0 0
          %2750 = vmatprep.subr.bf16.mxu0 0
          %2751 = vmatpush1.bf16.msra.mxu0 0
          %2752 = vmatprep.subr.bf16.mxu0 0
          %2753 = vmatpush1.bf16.msra.mxu0 0
          %2754 = vmatprep.subr.bf16.mxu0 0
          %2755 = vmatpush1.bf16.msra.mxu0 0
          %2756 = vmatprep.subr.bf16.mxu0 0
          %2757 = vmatpush1.bf16.msra.mxu0 0
          %2758 = vmatprep.subr.bf16.mxu0 0
          %2759 = vmatpush1.bf16.msra.mxu0 0
          %2760 = vmatprep.subr.bf16.mxu0 0
          %2761 = vmatpush1.bf16.msra.mxu0 0
          %2762 = vmatprep.subr.bf16.mxu0 0
          %2763 = vmatpush1.bf16.msra.mxu0 0
          %2764 = vmatprep.subr.bf16.mxu0 0
          %2765 = vmatpush1.bf16.msra.mxu0 0
          %2766 = vmatprep.subr.bf16.mxu0 0
          %2767 = vmatpush1.bf16.msra.mxu0 0
          %2768 = vmatprep.subr.bf16.mxu0 0
          %2769 = vmatpush1.bf16.msra.mxu0 0
          %2770 = vmatprep.subr.bf16.mxu0 0
          %2771 = vmatpush1.bf16.msra.mxu0 0
          %2772 = vmatprep.subr.bf16.mxu0 0
          %2773 = vmatpush1.bf16.msra.mxu0 0
          %2774 = vmatprep.subr.bf16.mxu0 0
          %2775 = vmatpush1.bf16.msra.mxu0 0
          %2776 = vmatprep.mubr.bf16.mxu0 0
          %2777 = vmatmul.mubr.bf16.gmra.mrb[0].mxu0 %v2742
          %v2778 = vpop.f32.mrb[0].mxu0
          %v2779 = vadd.f32 %v2727, %v2778
          %v2780 = vpop.f32.mrb[0].mxu0
          %v2781 = vpop.f32.mrb[0].mxu0
          %v2782 = vadd.f32 %v2727, %v2781
          %v2783 = vpop.f32.mrb[0].mxu0
          %2784 = vdwg.mxu0
          %v2785 = vsel %vm2593, %v2779, 0.0
          %v2786 = vsel %vm2593, %v2782, 0.0
          %v2787 = vadd.f32 %v2785, %v2786
          %v2788 = vrot.slane %v2787, 4
          %v2789 = vadd.f32 %v2787, %v2788
          %v2790 = vrot.slane %v2789, 2
          %v2791 = vadd.f32 %v2789, %v2790
          %v2792 = vrot.slane %v2791, 1
          %v2793 = vadd.f32 %v2791, %v2792
          %v2794 = vmul.f32 %v2793, %v2603
          %v2795 = vsub.f32 %v2779, %v2794
          %v2796 = vsub.f32 %v2782, %v2794
          %v2797 = vmul.f32 %v2795, %v2795
          %v2798 = vmul.f32 %v2796, %v2796
          %v2799 = vsel %vm2593, %v2797, 0.0
          %v2800 = vsel %vm2593, %v2798, 0.0
          %v2801 = vadd.f32 %v2799, %v2800
          %v2802 = vrot.slane %v2801, 4
          %v2803 = vadd.f32 %v2801, %v2802
          %v2804 = vrot.slane %v2803, 2
          %v2805 = vadd.f32 %v2803, %v2804
          %v2806 = vrot.slane %v2805, 1
          %v2807 = vadd.f32 %v2805, %v2806
          %v2808 = vmul.f32 %v2807, %v2603
          %v2809 = vadd.f32 %v2808, 1e-05
          %v2810 = vrsqrt.pop %v2809
          %v2811 = vmul.f32 %v2795, %v2810
          %v2812 = vmul.f32 %v2796, %v2810
          %v2813 = vmax.f32 %v2811, 0.0
          %v2814 = vmax.f32 %v2812, 0.0
          %v2815 = vpack.c.bf16 %v2814, %v2813
          %v2816 = vld [vmem:[%s23] sm:$0xf]
          %v2817 = vld [vmem:[%s23 + $0x4] sm:$0xf]
          %v2818 = vld [vmem:[%s23 + $0x8] sm:$0xf]
          %v2819 = vld [vmem:[%s23 + $0xc] sm:$0xf]
          %v2820 = vld [vmem:[%s23 + $0x10] sm:$0xf]
          %v2821 = vld [vmem:[%s23 + $0x14] sm:$0xf]
          %v2822 = vld [vmem:[%s23 + $0x18] sm:$0xf]
          %v2823 = vld [vmem:[%s23 + $0x1c] sm:$0xf]
          %v2824 = vld [vmem:[%s24] sm:$0x1]
          %v2826 = vlaneseq
          %v2827 = vshrl.u32 %v2826, 7
          %v2828 = vsub.s32 0, %v2827
          %v2829 = vrot.slane %v2824, %v2828
          %v2839 = vunpack.c.l.b16 %v2816
          %v2840 = vunpack.c.l.b16 %v2817
          %v2841 = vunpack.c.l.b16 %v2818
          %v2842 = vunpack.c.l.b16 %v2819
          %v2843 = vunpack.c.l.b16 %v2820
          %v2844 = vunpack.c.l.b16 %v2821
          %v2845 = vunpack.c.l.b16 %v2822
          %v2846 = vunpack.c.l.b16 %v2823
          %v2847 = vpack.c.b16 %v2840, %v2839
          %v2848 = vpack.c.b16 %v2842, %v2841
          %v2849 = vpack.c.b16 %v2844, %v2843
          %v2850 = vpack.c.b16 %v2846, %v2845
          %v2856 = vsel %vm2593, %v2815, 0
          %2858 = vmatprep.subr.bf16.mxu0 0
          %2859 = vmatpush1.bf16.msra.mxu0 %v2847
          %2860 = vmatprep.subr.bf16.mxu0 0
          %2861 = vmatpush1.bf16.msra.mxu0 %v2848
          %2862 = vmatprep.subr.bf16.mxu0 0
          %2863 = vmatpush1.bf16.msra.mxu0 %v2849
          %2864 = vmatprep.subr.bf16.mxu0 0
          %2865 = vmatpush1.bf16.msra.mxu0 %v2850
          %2866 = vmatprep.subr.bf16.mxu0 0
          %2867 = vmatpush1.bf16.msra.mxu0 0
          %2868 = vmatprep.subr.bf16.mxu0 0
          %2869 = vmatpush1.bf16.msra.mxu0 0
          %2870 = vmatprep.subr.bf16.mxu0 0
          %2871 = vmatpush1.bf16.msra.mxu0 0
          %2872 = vmatprep.subr.bf16.mxu0 0
          %2873 = vmatpush1.bf16.msra.mxu0 0
          %2874 = vmatprep.subr.bf16.mxu0 0
          %2875 = vmatpush1.bf16.msra.mxu0 0
          %2876 = vmatprep.subr.bf16.mxu0 0
          %2877 = vmatpush1.bf16.msra.mxu0 0
          %2878 = vmatprep.subr.bf16.mxu0 0
          %2879 = vmatpush1.bf16.msra.mxu0 0
          %2880 = vmatprep.subr.bf16.mxu0 0
          %2881 = vmatpush1.bf16.msra.mxu0 0
          %2882 = vmatprep.subr.bf16.mxu0 0
          %2883 = vmatpush1.bf16.msra.mxu0 0
          %2884 = vmatprep.subr.bf16.mxu0 0
          %2885 = vmatpush1.bf16.msra.mxu0 0
          %2886 = vmatprep.subr.bf16.mxu0 0
          %2887 = vmatpush1.bf16.msra.mxu0 0
          %2888 = vmatprep.subr.bf16.mxu0 0
          %2889 = vmatpush1.bf16.msra.mxu0 0
          %2890 = vmatprep.mubr.bf16.mxu0 0
          %2891 = vmatmul.mubr.bf16.gmra.mrb[0].mxu0 %v2856
          %v2892 = vpop.f32.mrb[0].mxu0
          %v2893 = vadd.f32 %v2829, %v2892
          %v2894 = vpop.f32.mrb[0].mxu0
          %v2895 = vpop.f32.mrb[0].mxu0
          %v2896 = vadd.f32 %v2829, %v2895
          %v2897 = vpop.f32.mrb[0].mxu0
          %2898 = vdwg.mxu0
          %2899 = vst.msk [vmem:[%s1176] sm:$0xff] %vm1819, %v2893
          %2900 = vst.msk [vmem:[%s1176 + $0x8] sm:$0xff] %vm1819, %v2896
        $region176: #{tpu_custom_call.1} parent=119 // pred_fallthru
          _
        %s2901 = sand.u32 %s674, 1
        %s2902 = scalar_lea.sflag [#allocation5], %s2901
        %s2903 = sand.u32 %s674, 1
        %s2904 = smul.addr %s2903, 16
        %s2905 = scalar_lea.vmem [#allocation23], %s2904
        // Predicated region
        $region177: #{tpu_custom_call.1} parent=119 // pred_check
          %p2906 = pneg %p684
        $region178: #{tpu_custom_call.1} parent=119 // pred_check_branch
          %2908 = sbr.rel (%p2906) target = $region180
        $region179: #{tpu_custom_call.1} parent=119 // pred_region
          %s2910 = ssub.s32 256, 256
          %2911 = vsyncadd %s2902, %s2910
          %s2912 = smul.addr %s58, 2
          %s2913 = smul.addr %s2912, 128
          %s2914 = scalar_lea.hbm %s25, %s2913
          %s2915 = sshll.u32 %s2905, 4
          %s2916 = int_to_ptr.vmem [resolvable:$true] %s2915
          %2921 = dma.vmem_to_hbm [thread:$0]  %s2916, 256, %s2914, %s2902, 128, 128, 8
        $region180: #{tpu_custom_call.1} parent=119 // pred_fallthru
          _
      $region120: #{tpu_custom_call.1} parent=5 // pred_fallthru
        _
      %p2922 = scmp.le.s32.totalorder 2, %s49
      // Predicated region
      $region181: #{tpu_custom_call.1} parent=5 // pred_check
        %p2923 = pneg %p2922
      $region182: #{tpu_custom_call.1} parent=5 // pred_check_branch
        %2925 = sbr.rel (%p2923) target = $region184
      $region183: #{tpu_custom_call.1} parent=5 // pred_region
        %s2926 = ssub.s32 %s49, 2
        // Predicated region
        $region185: #{tpu_custom_call.1} parent=183 // pred_check
          %p2927 = pneg %p690
        $region186: #{tpu_custom_call.1} parent=183 // pred_check_branch
          %2929 = sbr.rel (%p2927) target = $region188
        $region187: #{tpu_custom_call.1} parent=183 // pred_region
          %s2930 = sand.u32 %s675, 1
          %s2931 = scalar_lea.sflag [#allocation5], %s2930
          %s2932 = sand.u32 %s675, 1
          %s2933 = smul.addr %s2932, 16
          %s2934 = scalar_lea.vmem [#allocation23], %s2933
          %2935 = dma.done %s2931, 256
        $region188: #{tpu_custom_call.1} parent=183 // pred_fallthru
          _
      $region184: #{tpu_custom_call.1} parent=5 // pred_fallthru
        _
    $region6: #{tpu_custom_call.1} parent=1 // loop_footer
      %s53 = sadd.s32 1, %s49
    $region7: #{tpu_custom_call.1} parent=1 // loop_footer_branch
      %48 = sbr.rel target = $region3
    $region8: #{tpu_custom_call.1} parent=1 // loop_exit
      _
    %2936 = vsyncpa [#allocation4], 1
    %s2937 = scalar_lea.sflag [#allocation4], 1
    %2938 = vsyncpa %s2937, 1
    %2939 = vsyncpa [#allocation7], 1
    %2940 = vsyncpa [#allocation10], 1
    %2941 = vsyncpa [#allocation13], 1
    %s2942 = scalar_lea.sflag [#allocation13], 1
    %2943 = vsyncpa %s2942, 1
    %2944 = vsyncpa [#allocation16], 1
    %s2945 = scalar_lea.sflag [#allocation16], 1
    %2946 = vsyncpa %s2945, 1
    %2947 = vsyncpa [#allocation19], 1
    %s2948 = scalar_lea.sflag [#allocation19], 1
    %2949 = vsyncpa %s2948, 1
    %2950 = vsyncpa [#allocation22], 1
    %s2951 = scalar_lea.sflag [#allocation22], 1
    %2952 = vsyncpa %s2951, 1
    %2953 = vsyncpa [#allocation5], 1
    %s2954 = scalar_lea.sflag [#allocation5], 1
    %2955 = vsyncpa %s2954, 1

</llo_original>
